<compile_context>
chip_gen: v7x
topology: tpu7x:2x2x1
jax: 0.10.0
libtpu: 0.0.40
codegen_flags: <defaults>
</compile_context>

<pallas_src>
import functools
import math

import jax
import jax.numpy as jnp
from jax.experimental import pallas as pl
from jax.experimental.pallas import tpu as pltpu


def _vlm_kernel(lidar_ref, img_ref,
                wqk_ref, uq_ref, uk_ref,
                wv_ref, bv_ref,
                wfl_ref, wvo_ref, bf_ref,
                out_ref, *, bt, n, inv_sqrt_e):
    # In-kernel NCHW -> row-major relayout: per-batch 2-D transposes, then fold the
    # bt batch elements into a single [bt*n, C] operand for lane-dense matmuls.
    def to_rows(ref):
        cols = [ref[b].T for b in range(bt)]               # each [n, C]
        return cols[0] if bt == 1 else jnp.concatenate(cols, axis=0)

    lidar32 = to_rows(lidar_ref)                           # [R, C_lidar] f32
    img32 = to_rows(img_ref)                               # [R, C_img]  f32
    lidar_bf = lidar32.astype(jnp.bfloat16)
    img_bf = img32.astype(jnp.bfloat16)

    # affinity = (Q . K) / sqrt(E) with the Q/K linear layers folded into
    # wqk / uq / uk (the bq.bk constant is dropped: softmax over the spatial
    # axis is shift-invariant).
    lq = jnp.dot(lidar_bf, wqk_ref[...], preferred_element_type=jnp.float32)   # [R, C_img]
    aff = (jnp.sum(lq * img32, axis=-1, keepdims=True)
           + jnp.sum(lidar32 * uq_ref[...], axis=-1, keepdims=True)
           + jnp.sum(img32 * uk_ref[...], axis=-1, keepdims=True)) * inv_sqrt_e  # [R, 1]

    # Softmax over the spatial axis, independently per folded batch element.
    # TODO(synk): nn.Dropout(0.3) on the weights is identity in eval mode; a
    # training-mode mask (pltpu.prng_*) is not implemented.
    parts = []
    for b in range(bt):
        a = aff[b * n:(b + 1) * n]
        m = jnp.max(a, axis=0, keepdims=True)
        e = jnp.exp(a - m)
        parts.append(e * pl.reciprocal(jnp.sum(e, axis=0, keepdims=True), approx=True))
    weights = parts[0] if bt == 1 else jnp.concatenate(parts, axis=0)           # [R, 1]

    # V embed, attention weighting, and fusion (out_fc folded into wvo / bf).
    v = jnp.dot(img_bf, wv_ref[...], preferred_element_type=jnp.float32) + bv_ref[...]
    v_attn = (weights * v).astype(jnp.bfloat16)                                 # [R, E]
    fused = (jnp.dot(lidar_bf, wfl_ref[...], preferred_element_type=jnp.float32)
             + jnp.dot(v_attn, wvo_ref[...], preferred_element_type=jnp.float32)
             + bf_ref[...])                                                     # [R, C_lidar]

    # Write back into the NCHW block (per-batch 2-D transpose).
    for b in range(bt):
        out_ref[b] = fused[b * n:(b + 1) * n].T.astype(out_ref.dtype)


def _choose_batch_tile(B, N, C_lidar, C_img):
    """Fold batch elements into one grid step until the matmul M-dim is >=256 rows
    or the per-step activation footprint would get too large."""
    best = 1
    for bt in range(1, B + 1):
        if B % bt:
            continue
        act = bt * N * (2 * C_lidar + C_img) * 4 * 4   # blocks + intermediates, rough
        if act > (24 << 20):
            break
        best = bt
        if bt * N >= 256:
            break
    return best


def learnable_align_vlm(lidar_feat, img_feat, params, *, embed_dim, batch_tile=None):
    """lidar_feat: [B, C_lidar, H, W], img_feat: [B, C_img, H, W] (NCHW, like PyTorch)."""
    B, C_lidar, H, W = lidar_feat.shape
    C_img = img_feat.shape[1]
    N = H * W
    E = embed_dim

    (wq, bq, wk, bk, wv, bv, wo, bo, wf_l, wf_a, bf) = params

    # --- algebraic folds (tiny one-off matmuls, done in f32) ---
    wqk = wq @ wk.T                       # [Cl, Ci]   Q/K weight product
    uq = (wq @ bk.T).T                    # [1, Cl]    lidar . (wq bk)
    uk = (wk @ bq.T).T                    # [1, Ci]    img   . (wk bq)
    w_vo = wo @ wf_a                      # [E, Cl]    out_fc folded into fusion attn-half
    b_fused = bo @ wf_a + bf              # [1, Cl]

    # bf16 operands for the MXU (f32 accumulation inside the kernel).
    wqk_bf = wqk.astype(jnp.bfloat16)
    wv_bf = wv.astype(jnp.bfloat16)
    wfl_bf = wf_l.astype(jnp.bfloat16)
    wvo_bf = w_vo.astype(jnp.bfloat16)

    # --- layout: free reshapes only; the relayout happens in-kernel ---
    lidar_cn = lidar_feat.reshape(B, C_lidar, N)
    img_cn = img_feat.reshape(B, C_img, N)

    bt = batch_tile if batch_tile is not None else _choose_batch_tile(B, N, C_lidar, C_img)
    assert B % bt == 0, "batch_tile must divide the batch size"

    act_bytes = bt * N * (2 * C_lidar + C_img) * 4                    # in + out blocks (f32)
    w_bytes = 2 * (C_lidar * C_img + C_img * E + C_lidar * C_lidar + E * C_lidar)
    scratch_bytes = bt * N * (3 * C_lidar + 3 * C_img + 2 * E) * 4    # in-kernel temporaries
    vmem_limit = int(max(32 << 20,
                         min(64 << 20, 2 * (act_bytes + w_bytes) + scratch_bytes + (4 << 20))))

    def full2d(a):
        return pl.BlockSpec(a.shape, lambda g: (0, 0))

    kernel = functools.partial(_vlm_kernel, bt=bt, n=N, inv_sqrt_e=1.0 / math.sqrt(E))

    out = pl.pallas_call(
        kernel,
        out_shape=jax.ShapeDtypeStruct((B, C_lidar, N), jnp.float32),
        grid=(B // bt,),
        in_specs=[
            pl.BlockSpec((bt, C_lidar, N), lambda g: (g, 0, 0)),
            pl.BlockSpec((bt, C_img, N), lambda g: (g, 0, 0)),
            full2d(wqk_bf), full2d(uq), full2d(uk),
            full2d(wv_bf), full2d(bv),
            full2d(wfl_bf), full2d(wvo_bf), full2d(b_fused),
        ],
        out_specs=pl.BlockSpec((bt, C_lidar, N), lambda g: (g, 0, 0)),
        compiler_params=pltpu.CompilerParams(
            dimension_semantics=("parallel",),
            vmem_limit_bytes=vmem_limit,
        ),
    )(lidar_cn, img_cn, wqk_bf, uq, uk, wv_bf, bv, wfl_bf, wvo_bf, b_fused)

    return out.reshape(B, C_lidar, H, W)


def init_params(key, lidar_dim, img_dim, embed_dim, out_dim):
    """Deterministic synthetic weights. All weights stored as [in, out] (already
    transposed relative to PyTorch's nn.Linear [out, in] convention)."""
    ks = jax.random.split(key, 11)
    s = 0.02
    wq = s * jax.random.normal(ks[0], (lidar_dim, embed_dim), jnp.float32)
    bq = s * jax.random.normal(ks[1], (1, embed_dim), jnp.float32)
    wk = s * jax.random.normal(ks[2], (img_dim, embed_dim), jnp.float32)
    bk = s * jax.random.normal(ks[3], (1, embed_dim), jnp.float32)
    wv = s * jax.random.normal(ks[4], (img_dim, embed_dim), jnp.float32)
    bv = s * jax.random.normal(ks[5], (1, embed_dim), jnp.float32)
    wo = s * jax.random.normal(ks[6], (embed_dim, out_dim), jnp.float32)
    bo = s * jax.random.normal(ks[7], (1, out_dim), jnp.float32)
    # fusion_fc: in = lidar_dim + out_dim, out = lidar_dim; split the input dim.
    wf = s * jax.random.normal(ks[8], (lidar_dim + out_dim, lidar_dim), jnp.float32)
    wf_l, wf_a = wf[:lidar_dim], wf[lidar_dim:]
    bf = s * jax.random.normal(ks[9], (1, lidar_dim), jnp.float32)
    return (wq, bq, wk, bk, wv, bv, wo, bo, wf_l, wf_a, bf)


def reference(lidar_feat, img_feat, params, embed_dim):
    """Pure-JAX f32 reference mirroring the PyTorch forward (eval mode)."""
    (wq, bq, wk, bk, wv, bv, wo, bo, wf_l, wf_a, bf) = params
    B, Cl, H, W = lidar_feat.shape
    Ci = img_feat.shape[1]
    lidar_flat = jnp.transpose(lidar_feat, (0, 2, 3, 1)).reshape(B, -1, Cl)
    img_flat = jnp.transpose(img_feat, (0, 2, 3, 1)).reshape(B, -1, Ci)
    Q = lidar_flat @ wq + bq
    K = img_flat @ wk + bk
    V = img_flat @ wv + bv
    affinity = jnp.sum(Q * K, axis=-1, keepdims=True) / jnp.sqrt(jnp.float32(embed_dim))
    weights = jax.nn.softmax(affinity, axis=1)
    v_attn = weights * V
    v_attn_proj = v_attn @ wo + bo
    fused = lidar_flat @ wf_l + v_attn_proj @ wf_a + bf
    return jnp.transpose(fused.reshape(B, H, W, Cl), (0, 3, 1, 2))


if __name__ == "__main__":
    # Module-consistent dims (LearnableAlignVLM defaults, tiny spatial grid).
    B, H, W = 2, 8, 8
    lidar_dim, img_dim, embed_dim, out_dim = 384, 256, 256, 192

    key = jax.random.PRNGKey(0)
    k_lidar, k_img, k_params = jax.random.split(key, 3)
    lidar_feat = jax.random.normal(k_lidar, (B, lidar_dim, H, W), jnp.float32)
    img_feat = jax.random.normal(k_img, (B, img_dim, H, W), jnp.float32)
    params = init_params(k_params, lidar_dim, img_dim, embed_dim, out_dim)

    fwd = jax.jit(functools.partial(learnable_align_vlm, embed_dim=embed_dim))
    out = jax.block_until_ready(fwd(lidar_feat, img_feat, params))

    ref = jax.block_until_ready(reference(lidar_feat, img_feat, params, embed_dim))
    assert out.shape == (B, lidar_dim, H, W)
    # bf16 MXU operands + algebraic weight folds change summation order/precision:
    # loosen tolerance vs. the pure-f32 reference.
    assert jnp.allclose(out, ref, atol=1e-2, rtol=1e-2)

    print("KERNEL_OK")
</pallas_src>

<mosaic_0001>
module attributes {stable_mosaic.version = 11 : i64} {
  func.func @_vlm_kernel(%arg0: i32, %arg1: memref<2x384x64xf32, #tpu.memory_space<vmem>>, %arg2: memref<2x256x64xf32, #tpu.memory_space<vmem>>, %arg3: memref<384x256xbf16, #tpu.memory_space<vmem>>, %arg4: memref<1x384xf32, #tpu.memory_space<vmem>>, %arg5: memref<1x256xf32, #tpu.memory_space<vmem>>, %arg6: memref<256x256xbf16, #tpu.memory_space<vmem>>, %arg7: memref<1x256xf32, #tpu.memory_space<vmem>>, %arg8: memref<384x384xbf16, #tpu.memory_space<vmem>>, %arg9: memref<256x384xbf16, #tpu.memory_space<vmem>>, %arg10: memref<1x384xf32, #tpu.memory_space<vmem>>, %arg11: memref<2x384x64xf32, #tpu.memory_space<vmem>>) attributes {dimension_semantics = [#tpu.dimension_semantics<parallel>], iteration_bounds = array<i64: 1>, scalar_prefetch = 0 : i64, scratch_operands = 0 : i64, tpu.core_type = #tpu.core_type<tc>, window_params = [{transform_indices = @transform_0, window_bounds = array<i64: 2, 384, 64>}, {transform_indices = @transform_1, window_bounds = array<i64: 2, 256, 64>}, {pipeline_mode = #tpu.pipeline_mode<synchronous>, transform_indices = @transform_2, window_bounds = array<i64: 384, 256>}, {pipeline_mode = #tpu.pipeline_mode<synchronous>, transform_indices = @transform_3, window_bounds = array<i64: 1, 384>}, {pipeline_mode = #tpu.pipeline_mode<synchronous>, transform_indices = @transform_4, window_bounds = array<i64: 1, 256>}, {pipeline_mode = #tpu.pipeline_mode<synchronous>, transform_indices = @transform_5, window_bounds = array<i64: 256, 256>}, {pipeline_mode = #tpu.pipeline_mode<synchronous>, transform_indices = @transform_6, window_bounds = array<i64: 1, 256>}, {pipeline_mode = #tpu.pipeline_mode<synchronous>, transform_indices = @transform_7, window_bounds = array<i64: 384, 384>}, {pipeline_mode = #tpu.pipeline_mode<synchronous>, transform_indices = @transform_8, window_bounds = array<i64: 256, 384>}, {pipeline_mode = #tpu.pipeline_mode<synchronous>, transform_indices = @transform_9, window_bounds = array<i64: 1, 384>}, {transform_indices = @transform_10, window_bounds = array<i64: 2, 384, 64>}]} {
    %c0 = arith.constant 0 : index
    %c0_0 = arith.constant 0 : index
    %c0_1 = arith.constant 0 : index
    %0 = vector.load %arg1[%c0, %c0_0, %c0_1] : memref<2x384x64xf32, #tpu.memory_space<vmem>>, vector<1x384x64xf32>
    %1 = vector.shape_cast %0 : vector<1x384x64xf32> to vector<384x64xf32>
    %2 = tpu.transpose %1, [1, 0] : vector<384x64xf32> -> vector<64x384xf32>
    %c1 = arith.constant 1 : index
    %c0_2 = arith.constant 0 : index
    %c0_3 = arith.constant 0 : index
    %3 = vector.load %arg1[%c1, %c0_2, %c0_3] : memref<2x384x64xf32, #tpu.memory_space<vmem>>, vector<1x384x64xf32>
    %4 = vector.shape_cast %3 : vector<1x384x64xf32> to vector<384x64xf32>
    %5 = tpu.transpose %4, [1, 0] : vector<384x64xf32> -> vector<64x384xf32>
    %6 = tpu.concatenate %2, %5 in 0 : vector<64x384xf32>, vector<64x384xf32> -> vector<128x384xf32>
    %c0_4 = arith.constant 0 : index
    %c0_5 = arith.constant 0 : index
    %c0_6 = arith.constant 0 : index
    %7 = vector.load %arg2[%c0_4, %c0_5, %c0_6] : memref<2x256x64xf32, #tpu.memory_space<vmem>>, vector<1x256x64xf32>
    %8 = vector.shape_cast %7 : vector<1x256x64xf32> to vector<256x64xf32>
    %9 = tpu.transpose %8, [1, 0] : vector<256x64xf32> -> vector<64x256xf32>
    %c1_7 = arith.constant 1 : index
    %c0_8 = arith.constant 0 : index
    %c0_9 = arith.constant 0 : index
    %10 = vector.load %arg2[%c1_7, %c0_8, %c0_9] : memref<2x256x64xf32, #tpu.memory_space<vmem>>, vector<1x256x64xf32>
    %11 = vector.shape_cast %10 : vector<1x256x64xf32> to vector<256x64xf32>
    %12 = tpu.transpose %11, [1, 0] : vector<256x64xf32> -> vector<64x256xf32>
    %13 = tpu.concatenate %9, %12 in 0 : vector<64x256xf32>, vector<64x256xf32> -> vector<128x256xf32>
    %14 = arith.truncf %6 : vector<128x384xf32> to vector<128x384xbf16>
    %15 = arith.truncf %13 : vector<128x256xf32> to vector<128x256xbf16>
    %c0_10 = arith.constant 0 : index
    %c0_11 = arith.constant 0 : index
    %16 = vector.load %arg3[%c0_10, %c0_11] : memref<384x256xbf16, #tpu.memory_space<vmem>>, vector<384x256xbf16>
    %cst = arith.constant dense<0.000000e+00> : vector<128x256xf32>
    %17 = tpu.matmul %14, %16, %cst {dimension_numbers = #tpu.dot_dimension_numbers<[1], [0], [0], [1], [0, 0, 1, 1], [], []>} : vector<128x384xbf16>, vector<384x256xbf16>, vector<128x256xf32> -> vector<128x256xf32>
    %18 = arith.mulf %17, %13 : vector<128x256xf32>
    %cst_12 = arith.constant dense<0.000000e+00> : vector<128xf32>
    %19 = vector.multi_reduction <add>, %18, %cst_12 [1] : vector<128x256xf32> to vector<128xf32>
    %20 = vector.shape_cast %19 : vector<128xf32> to vector<128x1xf32>
    %c0_13 = arith.constant 0 : index
    %c0_14 = arith.constant 0 : index
    %21 = vector.load %arg4[%c0_13, %c0_14] : memref<1x384xf32, #tpu.memory_space<vmem>>, vector<1x384xf32>
    %22 = vector.broadcast %21 : vector<1x384xf32> to vector<128x384xf32>
    %23 = arith.mulf %6, %22 : vector<128x384xf32>
    %cst_15 = arith.constant dense<0.000000e+00> : vector<128xf32>
    %24 = vector.multi_reduction <add>, %23, %cst_15 [1] : vector<128x384xf32> to vector<128xf32>
    %25 = vector.shape_cast %24 : vector<128xf32> to vector<128x1xf32>
    %26 = arith.addf %20, %25 : vector<128x1xf32>
    %c0_16 = arith.constant 0 : index
    %c0_17 = arith.constant 0 : index
    %27 = vector.load %arg5[%c0_16, %c0_17] : memref<1x256xf32, #tpu.memory_space<vmem>>, vector<1x256xf32>
    %28 = vector.broadcast %27 : vector<1x256xf32> to vector<128x256xf32>
    %29 = arith.mulf %13, %28 : vector<128x256xf32>
    %cst_18 = arith.constant dense<0.000000e+00> : vector<128xf32>
    %30 = vector.multi_reduction <add>, %29, %cst_18 [1] : vector<128x256xf32> to vector<128xf32>
    %31 = vector.shape_cast %30 : vector<128xf32> to vector<128x1xf32>
    %32 = arith.addf %26, %31 : vector<128x1xf32>
    %cst_19 = arith.constant 6.250000e-02 : f32
    %33 = vector.broadcast %cst_19 : f32 to vector<128x1xf32>
    %34 = arith.mulf %32, %33 : vector<128x1xf32>
    %35 = vector.extract_strided_slice %34 {offsets = [0, 0], sizes = [64, 1], strides = [1, 1]} : vector<128x1xf32> to vector<64x1xf32>
    %cst_20 = arith.constant dense<0xFF800000> : vector<1xf32>
    %36 = vector.multi_reduction <maximumf>, %35, %cst_20 [0] : vector<64x1xf32> to vector<1xf32>
    %37 = vector.shape_cast %36 : vector<1xf32> to vector<1x1xf32>
    %38 = vector.broadcast %37 : vector<1x1xf32> to vector<64x1xf32>
    %39 = arith.subf %35, %38 : vector<64x1xf32>
    %40 = math.exp %39 : vector<64x1xf32>
    %cst_21 = arith.constant dense<0.000000e+00> : vector<1xf32>
    %41 = vector.multi_reduction <add>, %40, %cst_21 [0] : vector<64x1xf32> to vector<1xf32>
    %42 = vector.shape_cast %41 : vector<1xf32> to vector<1x1xf32>
    %43 = tpu.reciprocal %42 {approx = true} : vector<1x1xf32> -> vector<1x1xf32>
    %44 = vector.broadcast %43 : vector<1x1xf32> to vector<64x1xf32>
    %45 = arith.mulf %40, %44 : vector<64x1xf32>
    %46 = vector.extract_strided_slice %34 {offsets = [64, 0], sizes = [64, 1], strides = [1, 1]} : vector<128x1xf32> to vector<64x1xf32>
    %cst_22 = arith.constant dense<0xFF800000> : vector<1xf32>
    %47 = vector.multi_reduction <maximumf>, %46, %cst_22 [0] : vector<64x1xf32> to vector<1xf32>
    %48 = vector.shape_cast %47 : vector<1xf32> to vector<1x1xf32>
    %49 = vector.broadcast %48 : vector<1x1xf32> to vector<64x1xf32>
    %50 = arith.subf %46, %49 : vector<64x1xf32>
    %51 = math.exp %50 : vector<64x1xf32>
    %cst_23 = arith.constant dense<0.000000e+00> : vector<1xf32>
    %52 = vector.multi_reduction <add>, %51, %cst_23 [0] : vector<64x1xf32> to vector<1xf32>
    %53 = vector.shape_cast %52 : vector<1xf32> to vector<1x1xf32>
    %54 = tpu.reciprocal %53 {approx = true} : vector<1x1xf32> -> vector<1x1xf32>
    %55 = vector.broadcast %54 : vector<1x1xf32> to vector<64x1xf32>
    %56 = arith.mulf %51, %55 : vector<64x1xf32>
    %57 = tpu.concatenate %45, %56 in 0 : vector<64x1xf32>, vector<64x1xf32> -> vector<128x1xf32>
    %c0_24 = arith.constant 0 : index
    %c0_25 = arith.constant 0 : index
    %58 = vector.load %arg6[%c0_24, %c0_25] : memref<256x256xbf16, #tpu.memory_space<vmem>>, vector<256x256xbf16>
    %cst_26 = arith.constant dense<0.000000e+00> : vector<128x256xf32>
    %59 = tpu.matmul %15, %58, %cst_26 {dimension_numbers = #tpu.dot_dimension_numbers<[1], [0], [0], [1], [0, 0, 1, 1], [], []>} : vector<128x256xbf16>, vector<256x256xbf16>, vector<128x256xf32> -> vector<128x256xf32>
    %c0_27 = arith.constant 0 : index
    %c0_28 = arith.constant 0 : index
    %60 = vector.load %arg7[%c0_27, %c0_28] : memref<1x256xf32, #tpu.memory_space<vmem>>, vector<1x256xf32>
    %61 = vector.broadcast %60 : vector<1x256xf32> to vector<128x256xf32>
    %62 = arith.addf %59, %61 : vector<128x256xf32>
    %63 = vector.broadcast %57 : vector<128x1xf32> to vector<128x256xf32>
    %64 = arith.mulf %63, %62 : vector<128x256xf32>
    %65 = arith.truncf %64 : vector<128x256xf32> to vector<128x256xbf16>
    %c0_29 = arith.constant 0 : index
    %c0_30 = arith.constant 0 : index
    %66 = vector.load %arg8[%c0_29, %c0_30] : memref<384x384xbf16, #tpu.memory_space<vmem>>, vector<384x384xbf16>
    %cst_31 = arith.constant dense<0.000000e+00> : vector<128x384xf32>
    %67 = tpu.matmul %14, %66, %cst_31 {dimension_numbers = #tpu.dot_dimension_numbers<[1], [0], [0], [1], [0, 0, 1, 1], [], []>} : vector<128x384xbf16>, vector<384x384xbf16>, vector<128x384xf32> -> vector<128x384xf32>
    %c0_32 = arith.constant 0 : index
    %c0_33 = arith.constant 0 : index
    %68 = vector.load %arg9[%c0_32, %c0_33] : memref<256x384xbf16, #tpu.memory_space<vmem>>, vector<256x384xbf16>
    %cst_34 = arith.constant dense<0.000000e+00> : vector<128x384xf32>
    %69 = tpu.matmul %65, %68, %cst_34 {dimension_numbers = #tpu.dot_dimension_numbers<[1], [0], [0], [1], [0, 0, 1, 1], [], []>} : vector<128x256xbf16>, vector<256x384xbf16>, vector<128x384xf32> -> vector<128x384xf32>
    %70 = arith.addf %67, %69 : vector<128x384xf32>
    %c0_35 = arith.constant 0 : index
    %c0_36 = arith.constant 0 : index
    %71 = vector.load %arg10[%c0_35, %c0_36] : memref<1x384xf32, #tpu.memory_space<vmem>>, vector<1x384xf32>
    %72 = vector.broadcast %71 : vector<1x384xf32> to vector<128x384xf32>
    %73 = arith.addf %70, %72 : vector<128x384xf32>
    %74 = vector.extract_strided_slice %73 {offsets = [0, 0], sizes = [64, 384], strides = [1, 1]} : vector<128x384xf32> to vector<64x384xf32>
    %75 = tpu.transpose %74, [1, 0] : vector<64x384xf32> -> vector<384x64xf32>
    %c0_37 = arith.constant 0 : index
    %c0_38 = arith.constant 0 : index
    %c0_39 = arith.constant 0 : index
    %76 = vector.load %arg11[%c0_37, %c0_38, %c0_39] : memref<2x384x64xf32, #tpu.memory_space<vmem>>, vector<1x384x64xf32>
    %77 = vector.shape_cast %76 : vector<1x384x64xf32> to vector<384x64xf32>
    %78 = vector.shape_cast %75 : vector<384x64xf32> to vector<1x384x64xf32>
    tpu.vector_store %arg11[%c0_37, %c0_38, %c0_39], %78 {strides = array<i32>} : memref<2x384x64xf32, #tpu.memory_space<vmem>>, vector<1x384x64xf32>,
    %79 = vector.extract_strided_slice %73 {offsets = [64, 0], sizes = [64, 384], strides = [1, 1]} : vector<128x384xf32> to vector<64x384xf32>
    %80 = tpu.transpose %79, [1, 0] : vector<64x384xf32> -> vector<384x64xf32>
    %c1_40 = arith.constant 1 : index
    %c0_41 = arith.constant 0 : index
    %c0_42 = arith.constant 0 : index
    %81 = vector.load %arg11[%c1_40, %c0_41, %c0_42] : memref<2x384x64xf32, #tpu.memory_space<vmem>>, vector<1x384x64xf32>
    %82 = vector.shape_cast %81 : vector<1x384x64xf32> to vector<384x64xf32>
    %83 = vector.shape_cast %80 : vector<384x64xf32> to vector<1x384x64xf32>
    tpu.vector_store %arg11[%c1_40, %c0_41, %c0_42], %83 {strides = array<i32>} : memref<2x384x64xf32, #tpu.memory_space<vmem>>, vector<1x384x64xf32>,
    return
  }
  func.func @transform_0(%arg0: i32) -> (i32, i32, i32) {
    %c0_i32 = arith.constant 0 : i32
    %c0_i32_0 = arith.constant 0 : i32
    %c0_i32_1 = arith.constant 0 : i32
    return %arg0, %c0_i32, %c0_i32_0 : i32, i32, i32
  }
  func.func @transform_1(%arg0: i32) -> (i32, i32, i32) {
    %c0_i32 = arith.constant 0 : i32
    %c0_i32_0 = arith.constant 0 : i32
    %c0_i32_1 = arith.constant 0 : i32
    return %arg0, %c0_i32, %c0_i32_0 : i32, i32, i32
  }
  func.func @transform_2(%arg0: i32) -> (i32, i32) {
    %c0_i32 = arith.constant 0 : i32
    %c0_i32_0 = arith.constant 0 : i32
    %c0_i32_1 = arith.constant 0 : i32
    return %c0_i32, %c0_i32_0 : i32, i32
  }
  func.func @transform_3(%arg0: i32) -> (i32, i32) {
    %c0_i32 = arith.constant 0 : i32
    %c0_i32_0 = arith.constant 0 : i32
    %c0_i32_1 = arith.constant 0 : i32
    return %c0_i32, %c0_i32_0 : i32, i32
  }
  func.func @transform_4(%arg0: i32) -> (i32, i32) {
    %c0_i32 = arith.constant 0 : i32
    %c0_i32_0 = arith.constant 0 : i32
    %c0_i32_1 = arith.constant 0 : i32
    return %c0_i32, %c0_i32_0 : i32, i32
  }
  func.func @transform_5(%arg0: i32) -> (i32, i32) {
    %c0_i32 = arith.constant 0 : i32
    %c0_i32_0 = arith.constant 0 : i32
    %c0_i32_1 = arith.constant 0 : i32
    return %c0_i32, %c0_i32_0 : i32, i32
  }
  func.func @transform_6(%arg0: i32) -> (i32, i32) {
    %c0_i32 = arith.constant 0 : i32
    %c0_i32_0 = arith.constant 0 : i32
    %c0_i32_1 = arith.constant 0 : i32
    return %c0_i32, %c0_i32_0 : i32, i32
  }
  func.func @transform_7(%arg0: i32) -> (i32, i32) {
    %c0_i32 = arith.constant 0 : i32
    %c0_i32_0 = arith.constant 0 : i32
    %c0_i32_1 = arith.constant 0 : i32
    return %c0_i32, %c0_i32_0 : i32, i32
  }
  func.func @transform_8(%arg0: i32) -> (i32, i32) {
    %c0_i32 = arith.constant 0 : i32
    %c0_i32_0 = arith.constant 0 : i32
    %c0_i32_1 = arith.constant 0 : i32
    return %c0_i32, %c0_i32_0 : i32, i32
  }
  func.func @transform_9(%arg0: i32) -> (i32, i32) {
    %c0_i32 = arith.constant 0 : i32
    %c0_i32_0 = arith.constant 0 : i32
    %c0_i32_1 = arith.constant 0 : i32
    return %c0_i32, %c0_i32_0 : i32, i32
  }
  func.func @transform_10(%arg0: i32) -> (i32, i32, i32) {
    %c0_i32 = arith.constant 0 : i32
    %c0_i32_0 = arith.constant 0 : i32
    %c0_i32_1 = arith.constant 0 : i32
    return %arg0, %c0_i32, %c0_i32_0 : i32, i32, i32
  }
}

</mosaic_0001>

<llo_original>
// kernel: learnable_align_vlm.1
$region0: #{learnable_align_vlm.1}
  #allocation0 [shape = 'u32[]', space=smem, size = 0x4, offset = 0x4, fixed_abs, tag = 'smem constant byte address 0x4 - core index']
  #allocation1 [shape = 'u32[144,128]{1,0:T(1,128)}', space=vmem, size = 0x12000, scoped, tag = 'internal scratch']
  %s0 = inlined_call_operand.vmem [shape: f32[2,384,64], index: 0, kind: input, shape index: {}]
  %s1 = inlined_call_operand.vmem [shape: f32[2,256,64], index: 1, kind: input, shape index: {}]
  %s2 = inlined_call_operand.vmem [shape: bf16[384,256], index: 2, kind: input, shape index: {}]
  %s3 = inlined_call_operand.vmem [shape: f32[1,384], index: 3, kind: input, shape index: {}]
  %s4 = inlined_call_operand.vmem [shape: f32[1,256], index: 4, kind: input, shape index: {}]
  %s5 = inlined_call_operand.vmem [shape: bf16[256,256], index: 5, kind: input, shape index: {}]
  %s6 = inlined_call_operand.vmem [shape: f32[1,256], index: 6, kind: input, shape index: {}]
  %s7 = inlined_call_operand.vmem [shape: bf16[384,384], index: 7, kind: input, shape index: {}]
  %s8 = inlined_call_operand.vmem [shape: bf16[256,384], index: 8, kind: input, shape index: {}]
  %s9 = inlined_call_operand.vmem [shape: f32[1,384], index: 9, kind: input, shape index: {}]
  %s10 = inlined_call_operand.vmem [shape: f32[2,384,64], index: 10, kind: output, shape index: {}]
  %s11 = sld [smem:[#allocation0]]
  $region50: #{learnable_align_vlm.1} parent=0
    _
  %s13 = ssub.s32 1, %s11
  %s14 = scalar_select 0, %s13, %s11
  // Predicated region
  $region2: #{learnable_align_vlm.1} parent=0 // pred_check
    _
  $region3: #{learnable_align_vlm.1} parent=0 // pred_check_branch
    %16 = sbr.rel (0) target = $region5
  $region4: #{learnable_align_vlm.1} parent=0 // pred_region
    _
  $region5: #{learnable_align_vlm.1} parent=0 // pred_fallthru
    _
  // Predicated region
  $region6: #{learnable_align_vlm.1} parent=0 // pred_check
    _
  $region7: #{learnable_align_vlm.1} parent=0 // pred_check_branch
    %18 = sbr.rel (0) target = $region9
  $region8: #{learnable_align_vlm.1} parent=0 // pred_region
    _
  $region9: #{learnable_align_vlm.1} parent=0 // pred_fallthru
    _
  // Predicated region
  $region10: #{learnable_align_vlm.1} parent=0 // pred_check
    _
  $region11: #{learnable_align_vlm.1} parent=0 // pred_check_branch
    %20 = sbr.rel (0) target = $region13
  $region12: #{learnable_align_vlm.1} parent=0 // pred_region
    _
  $region13: #{learnable_align_vlm.1} parent=0 // pred_fallthru
    _
  // Predicated region
  $region14: #{learnable_align_vlm.1} parent=0 // pred_check
    _
  $region15: #{learnable_align_vlm.1} parent=0 // pred_check_branch
    %22 = sbr.rel (0) target = $region17
  $region16: #{learnable_align_vlm.1} parent=0 // pred_region
    _
  $region17: #{learnable_align_vlm.1} parent=0 // pred_fallthru
    _
  // Predicated region
  $region18: #{learnable_align_vlm.1} parent=0 // pred_check
    _
  $region19: #{learnable_align_vlm.1} parent=0 // pred_check_branch
    %24 = sbr.rel (0) target = $region21
  $region20: #{learnable_align_vlm.1} parent=0 // pred_region
    _
  $region21: #{learnable_align_vlm.1} parent=0 // pred_fallthru
    _
  // Predicated region
  $region22: #{learnable_align_vlm.1} parent=0 // pred_check
    _
  $region23: #{learnable_align_vlm.1} parent=0 // pred_check_branch
    %26 = sbr.rel (0) target = $region25
  $region24: #{learnable_align_vlm.1} parent=0 // pred_region
    _
  $region25: #{learnable_align_vlm.1} parent=0 // pred_fallthru
    _
  // Predicated region
  $region26: #{learnable_align_vlm.1} parent=0 // pred_check
    _
  $region27: #{learnable_align_vlm.1} parent=0 // pred_check_branch
    %28 = sbr.rel (0) target = $region29
  $region28: #{learnable_align_vlm.1} parent=0 // pred_region
    _
  $region29: #{learnable_align_vlm.1} parent=0 // pred_fallthru
    _
  // Predicated region
  $region30: #{learnable_align_vlm.1} parent=0 // pred_check
    _
  $region31: #{learnable_align_vlm.1} parent=0 // pred_check_branch
    %30 = sbr.rel (0) target = $region33
  $region32: #{learnable_align_vlm.1} parent=0 // pred_region
    _
  $region33: #{learnable_align_vlm.1} parent=0 // pred_fallthru
    _
  // Predicated region
  $region34: #{learnable_align_vlm.1} parent=0 // pred_check
    _
  $region35: #{learnable_align_vlm.1} parent=0 // pred_check_branch
    %32 = sbr.rel (0) target = $region37
  $region36: #{learnable_align_vlm.1} parent=0 // pred_region
    _
  $region37: #{learnable_align_vlm.1} parent=0 // pred_fallthru
    _
  // Predicated region
  $region38: #{learnable_align_vlm.1} parent=0 // pred_check
    _
  $region39: #{learnable_align_vlm.1} parent=0 // pred_check_branch
    %34 = sbr.rel (0) target = $region41
  $region40: #{learnable_align_vlm.1} parent=0 // pred_region
    _
  $region41: #{learnable_align_vlm.1} parent=0 // pred_fallthru
    _
  %v36 = vld [vmem:[%s0] sm:$0xff]
  %v37 = vld [vmem:[%s0 + $0x8] sm:$0xff]
  %v38 = vld [vmem:[%s0 + $0x10] sm:$0xff]
  %v39 = vld [vmem:[%s0 + $0x18] sm:$0xff]
  %v40 = vld [vmem:[%s0 + $0x20] sm:$0xff]
  %v41 = vld [vmem:[%s0 + $0x28] sm:$0xff]
  %v42 = vld [vmem:[%s0 + $0x30] sm:$0xff]
  %v43 = vld [vmem:[%s0 + $0x38] sm:$0xff]
  %v44 = vld [vmem:[%s0 + $0x40] sm:$0xff]
  %v45 = vld [vmem:[%s0 + $0x48] sm:$0xff]
  %v46 = vld [vmem:[%s0 + $0x50] sm:$0xff]
  %v47 = vld [vmem:[%s0 + $0x58] sm:$0xff]
  %v48 = vld [vmem:[%s0 + $0x60] sm:$0xff]
  %v49 = vld [vmem:[%s0 + $0x68] sm:$0xff]
  %v50 = vld [vmem:[%s0 + $0x70] sm:$0xff]
  %v51 = vld [vmem:[%s0 + $0x78] sm:$0xff]
  %v52 = vld [vmem:[%s0 + $0x80] sm:$0xff]
  %v53 = vld [vmem:[%s0 + $0x88] sm:$0xff]
  %v54 = vld [vmem:[%s0 + $0x90] sm:$0xff]
  %v55 = vld [vmem:[%s0 + $0x98] sm:$0xff]
  %v56 = vld [vmem:[%s0 + $0xa0] sm:$0xff]
  %v57 = vld [vmem:[%s0 + $0xa8] sm:$0xff]
  %v58 = vld [vmem:[%s0 + $0xb0] sm:$0xff]
  %v59 = vld [vmem:[%s0 + $0xb8] sm:$0xff]
  %v60 = vld [vmem:[%s0 + $0xc0] sm:$0xff]
  %v61 = vld [vmem:[%s0 + $0xc8] sm:$0xff]
  %v62 = vld [vmem:[%s0 + $0xd0] sm:$0xff]
  %v63 = vld [vmem:[%s0 + $0xd8] sm:$0xff]
  %v64 = vld [vmem:[%s0 + $0xe0] sm:$0xff]
  %v65 = vld [vmem:[%s0 + $0xe8] sm:$0xff]
  %v66 = vld [vmem:[%s0 + $0xf0] sm:$0xff]
  %v67 = vld [vmem:[%s0 + $0xf8] sm:$0xff]
  %v68 = vld [vmem:[%s0 + $0x100] sm:$0xff]
  %v69 = vld [vmem:[%s0 + $0x108] sm:$0xff]
  %v70 = vld [vmem:[%s0 + $0x110] sm:$0xff]
  %v71 = vld [vmem:[%s0 + $0x118] sm:$0xff]
  %v72 = vld [vmem:[%s0 + $0x120] sm:$0xff]
  %v73 = vld [vmem:[%s0 + $0x128] sm:$0xff]
  %v74 = vld [vmem:[%s0 + $0x130] sm:$0xff]
  %v75 = vld [vmem:[%s0 + $0x138] sm:$0xff]
  %v76 = vld [vmem:[%s0 + $0x140] sm:$0xff]
  %v77 = vld [vmem:[%s0 + $0x148] sm:$0xff]
  %v78 = vld [vmem:[%s0 + $0x150] sm:$0xff]
  %v79 = vld [vmem:[%s0 + $0x158] sm:$0xff]
  %v80 = vld [vmem:[%s0 + $0x160] sm:$0xff]
  %v81 = vld [vmem:[%s0 + $0x168] sm:$0xff]
  %v82 = vld [vmem:[%s0 + $0x170] sm:$0xff]
  %v83 = vld [vmem:[%s0 + $0x178] sm:$0xff]
  %84 = vxpose.xlu0.b32.start [1/16] %v36, 128
  %85 = vxpose.xlu0.b32.cont [2/16] %v37, 128
  %86 = vxpose.xlu0.b32.cont [3/16] %v38, 128
  %87 = vxpose.xlu0.b32.cont [4/16] %v39, 128
  %88 = vxpose.xlu0.b32.cont [5/16] %v40, 128
  %89 = vxpose.xlu0.b32.cont [6/16] %v41, 128
  %90 = vxpose.xlu0.b32.cont [7/16] %v42, 128
  %91 = vxpose.xlu0.b32.cont [8/16] %v43, 128
  %92 = vxpose.xlu0.b32.cont [9/16] %v44, 128
  %93 = vxpose.xlu0.b32.cont [10/16] %v45, 128
  %94 = vxpose.xlu0.b32.cont [11/16] %v46, 128
  %95 = vxpose.xlu0.b32.cont [12/16] %v47, 128
  %96 = vxpose.xlu0.b32.cont [13/16] %v48, 128
  %97 = vxpose.xlu0.b32.cont [14/16] %v49, 128
  %98 = vxpose.xlu0.b32.cont [15/16] %v50, 128
  %99 = vxpose.xlu0.b32.end [16/16] %v51, 128
  %v100 = vpop.trf.xlu0
  %v101 = vpop.trf.xlu0
  %v102 = vpop.trf.xlu0
  %v103 = vpop.trf.xlu0
  %v104 = vpop.trf.xlu0
  %v105 = vpop.trf.xlu0
  %v106 = vpop.trf.xlu0
  %v107 = vpop.trf.xlu0
  %v108 = vpop.trf.xlu0
  %v109 = vpop.trf.xlu0
  %v110 = vpop.trf.xlu0
  %v111 = vpop.trf.xlu0
  %v112 = vpop.trf.xlu0
  %v113 = vpop.trf.xlu0
  %v114 = vpop.trf.xlu0
  %v115 = vpop.trf.xlu0
  %116 = vxpose.xlu0.b32.start [1/16] %v52, 128
  %117 = vxpose.xlu0.b32.cont [2/16] %v53, 128
  %118 = vxpose.xlu0.b32.cont [3/16] %v54, 128
  %119 = vxpose.xlu0.b32.cont [4/16] %v55, 128
  %120 = vxpose.xlu0.b32.cont [5/16] %v56, 128
  %121 = vxpose.xlu0.b32.cont [6/16] %v57, 128
  %122 = vxpose.xlu0.b32.cont [7/16] %v58, 128
  %123 = vxpose.xlu0.b32.cont [8/16] %v59, 128
  %124 = vxpose.xlu0.b32.cont [9/16] %v60, 128
  %125 = vxpose.xlu0.b32.cont [10/16] %v61, 128
  %126 = vxpose.xlu0.b32.cont [11/16] %v62, 128
  %127 = vxpose.xlu0.b32.cont [12/16] %v63, 128
  %128 = vxpose.xlu0.b32.cont [13/16] %v64, 128
  %129 = vxpose.xlu0.b32.cont [14/16] %v65, 128
  %130 = vxpose.xlu0.b32.cont [15/16] %v66, 128
  %131 = vxpose.xlu0.b32.end [16/16] %v67, 128
  %v132 = vpop.trf.xlu0
  %v133 = vpop.trf.xlu0
  %v134 = vpop.trf.xlu0
  %v135 = vpop.trf.xlu0
  %v136 = vpop.trf.xlu0
  %v137 = vpop.trf.xlu0
  %v138 = vpop.trf.xlu0
  %v139 = vpop.trf.xlu0
  %v140 = vpop.trf.xlu0
  %v141 = vpop.trf.xlu0
  %v142 = vpop.trf.xlu0
  %v143 = vpop.trf.xlu0
  %v144 = vpop.trf.xlu0
  %v145 = vpop.trf.xlu0
  %v146 = vpop.trf.xlu0
  %v147 = vpop.trf.xlu0
  %148 = vxpose.xlu0.b32.start [1/16] %v68, 128
  %149 = vxpose.xlu0.b32.cont [2/16] %v69, 128
  %150 = vxpose.xlu0.b32.cont [3/16] %v70, 128
  %151 = vxpose.xlu0.b32.cont [4/16] %v71, 128
  %152 = vxpose.xlu0.b32.cont [5/16] %v72, 128
  %153 = vxpose.xlu0.b32.cont [6/16] %v73, 128
  %154 = vxpose.xlu0.b32.cont [7/16] %v74, 128
  %155 = vxpose.xlu0.b32.cont [8/16] %v75, 128
  %156 = vxpose.xlu0.b32.cont [9/16] %v76, 128
  %157 = vxpose.xlu0.b32.cont [10/16] %v77, 128
  %158 = vxpose.xlu0.b32.cont [11/16] %v78, 128
  %159 = vxpose.xlu0.b32.cont [12/16] %v79, 128
  %160 = vxpose.xlu0.b32.cont [13/16] %v80, 128
  %161 = vxpose.xlu0.b32.cont [14/16] %v81, 128
  %162 = vxpose.xlu0.b32.cont [15/16] %v82, 128
  %163 = vxpose.xlu0.b32.end [16/16] %v83, 128
  %v164 = vpop.trf.xlu0
  %v165 = vpop.trf.xlu0
  %v166 = vpop.trf.xlu0
  %v167 = vpop.trf.xlu0
  %v168 = vpop.trf.xlu0
  %v169 = vpop.trf.xlu0
  %v170 = vpop.trf.xlu0
  %v171 = vpop.trf.xlu0
  %v172 = vpop.trf.xlu0
  %v173 = vpop.trf.xlu0
  %v174 = vpop.trf.xlu0
  %v175 = vpop.trf.xlu0
  %v176 = vpop.trf.xlu0
  %v177 = vpop.trf.xlu0
  %v178 = vpop.trf.xlu0
  %v179 = vpop.trf.xlu0
  %s180 = scalar_lea.vmem %s0, 384
  %v181 = vld [vmem:[%s180] sm:$0xff]
  %v182 = vld [vmem:[%s180 + $0x8] sm:$0xff]
  %v183 = vld [vmem:[%s180 + $0x10] sm:$0xff]
  %v184 = vld [vmem:[%s180 + $0x18] sm:$0xff]
  %v185 = vld [vmem:[%s180 + $0x20] sm:$0xff]
  %v186 = vld [vmem:[%s180 + $0x28] sm:$0xff]
  %v187 = vld [vmem:[%s180 + $0x30] sm:$0xff]
  %v188 = vld [vmem:[%s180 + $0x38] sm:$0xff]
  %v189 = vld [vmem:[%s180 + $0x40] sm:$0xff]
  %v190 = vld [vmem:[%s180 + $0x48] sm:$0xff]
  %v191 = vld [vmem:[%s180 + $0x50] sm:$0xff]
  %v192 = vld [vmem:[%s180 + $0x58] sm:$0xff]
  %v193 = vld [vmem:[%s180 + $0x60] sm:$0xff]
  %v194 = vld [vmem:[%s180 + $0x68] sm:$0xff]
  %v195 = vld [vmem:[%s180 + $0x70] sm:$0xff]
  %v196 = vld [vmem:[%s180 + $0x78] sm:$0xff]
  %v197 = vld [vmem:[%s180 + $0x80] sm:$0xff]
  %v198 = vld [vmem:[%s180 + $0x88] sm:$0xff]
  %v199 = vld [vmem:[%s180 + $0x90] sm:$0xff]
  %v200 = vld [vmem:[%s180 + $0x98] sm:$0xff]
  %v201 = vld [vmem:[%s180 + $0xa0] sm:$0xff]
  %v202 = vld [vmem:[%s180 + $0xa8] sm:$0xff]
  %v203 = vld [vmem:[%s180 + $0xb0] sm:$0xff]
  %v204 = vld [vmem:[%s180 + $0xb8] sm:$0xff]
  %v205 = vld [vmem:[%s180 + $0xc0] sm:$0xff]
  %v206 = vld [vmem:[%s180 + $0xc8] sm:$0xff]
  %v207 = vld [vmem:[%s180 + $0xd0] sm:$0xff]
  %v208 = vld [vmem:[%s180 + $0xd8] sm:$0xff]
  %v209 = vld [vmem:[%s180 + $0xe0] sm:$0xff]
  %v210 = vld [vmem:[%s180 + $0xe8] sm:$0xff]
  %v211 = vld [vmem:[%s180 + $0xf0] sm:$0xff]
  %v212 = vld [vmem:[%s180 + $0xf8] sm:$0xff]
  %v213 = vld [vmem:[%s180 + $0x100] sm:$0xff]
  %v214 = vld [vmem:[%s180 + $0x108] sm:$0xff]
  %v215 = vld [vmem:[%s180 + $0x110] sm:$0xff]
  %v216 = vld [vmem:[%s180 + $0x118] sm:$0xff]
  %v217 = vld [vmem:[%s180 + $0x120] sm:$0xff]
  %v218 = vld [vmem:[%s180 + $0x128] sm:$0xff]
  %v219 = vld [vmem:[%s180 + $0x130] sm:$0xff]
  %v220 = vld [vmem:[%s180 + $0x138] sm:$0xff]
  %v221 = vld [vmem:[%s180 + $0x140] sm:$0xff]
  %v222 = vld [vmem:[%s180 + $0x148] sm:$0xff]
  %v223 = vld [vmem:[%s180 + $0x150] sm:$0xff]
  %v224 = vld [vmem:[%s180 + $0x158] sm:$0xff]
  %v225 = vld [vmem:[%s180 + $0x160] sm:$0xff]
  %v226 = vld [vmem:[%s180 + $0x168] sm:$0xff]
  %v227 = vld [vmem:[%s180 + $0x170] sm:$0xff]
  %v228 = vld [vmem:[%s180 + $0x178] sm:$0xff]
  %229 = vxpose.xlu0.b32.start [1/16] %v181, 128
  %230 = vxpose.xlu0.b32.cont [2/16] %v182, 128
  %231 = vxpose.xlu0.b32.cont [3/16] %v183, 128
  %232 = vxpose.xlu0.b32.cont [4/16] %v184, 128
  %233 = vxpose.xlu0.b32.cont [5/16] %v185, 128
  %234 = vxpose.xlu0.b32.cont [6/16] %v186, 128
  %235 = vxpose.xlu0.b32.cont [7/16] %v187, 128
  %236 = vxpose.xlu0.b32.cont [8/16] %v188, 128
  %237 = vxpose.xlu0.b32.cont [9/16] %v189, 128
  %238 = vxpose.xlu0.b32.cont [10/16] %v190, 128
  %239 = vxpose.xlu0.b32.cont [11/16] %v191, 128
  %240 = vxpose.xlu0.b32.cont [12/16] %v192, 128
  %241 = vxpose.xlu0.b32.cont [13/16] %v193, 128
  %242 = vxpose.xlu0.b32.cont [14/16] %v194, 128
  %243 = vxpose.xlu0.b32.cont [15/16] %v195, 128
  %244 = vxpose.xlu0.b32.end [16/16] %v196, 128
  %v245 = vpop.trf.xlu0
  %v246 = vpop.trf.xlu0
  %v247 = vpop.trf.xlu0
  %v248 = vpop.trf.xlu0
  %v249 = vpop.trf.xlu0
  %v250 = vpop.trf.xlu0
  %v251 = vpop.trf.xlu0
  %v252 = vpop.trf.xlu0
  %v253 = vpop.trf.xlu0
  %v254 = vpop.trf.xlu0
  %v255 = vpop.trf.xlu0
  %v256 = vpop.trf.xlu0
  %v257 = vpop.trf.xlu0
  %v258 = vpop.trf.xlu0
  %v259 = vpop.trf.xlu0
  %v260 = vpop.trf.xlu0
  %261 = vxpose.xlu0.b32.start [1/16] %v197, 128
  %262 = vxpose.xlu0.b32.cont [2/16] %v198, 128
  %263 = vxpose.xlu0.b32.cont [3/16] %v199, 128
  %264 = vxpose.xlu0.b32.cont [4/16] %v200, 128
  %265 = vxpose.xlu0.b32.cont [5/16] %v201, 128
  %266 = vxpose.xlu0.b32.cont [6/16] %v202, 128
  %267 = vxpose.xlu0.b32.cont [7/16] %v203, 128
  %268 = vxpose.xlu0.b32.cont [8/16] %v204, 128
  %269 = vxpose.xlu0.b32.cont [9/16] %v205, 128
  %270 = vxpose.xlu0.b32.cont [10/16] %v206, 128
  %271 = vxpose.xlu0.b32.cont [11/16] %v207, 128
  %272 = vxpose.xlu0.b32.cont [12/16] %v208, 128
  %273 = vxpose.xlu0.b32.cont [13/16] %v209, 128
  %274 = vxpose.xlu0.b32.cont [14/16] %v210, 128
  %275 = vxpose.xlu0.b32.cont [15/16] %v211, 128
  %276 = vxpose.xlu0.b32.end [16/16] %v212, 128
  %v277 = vpop.trf.xlu0
  %v278 = vpop.trf.xlu0
  %v279 = vpop.trf.xlu0
  %v280 = vpop.trf.xlu0
  %v281 = vpop.trf.xlu0
  %v282 = vpop.trf.xlu0
  %v283 = vpop.trf.xlu0
  %v284 = vpop.trf.xlu0
  %v285 = vpop.trf.xlu0
  %v286 = vpop.trf.xlu0
  %v287 = vpop.trf.xlu0
  %v288 = vpop.trf.xlu0
  %v289 = vpop.trf.xlu0
  %v290 = vpop.trf.xlu0
  %v291 = vpop.trf.xlu0
  %v292 = vpop.trf.xlu0
  %293 = vxpose.xlu0.b32.start [1/16] %v213, 128
  %294 = vxpose.xlu0.b32.cont [2/16] %v214, 128
  %295 = vxpose.xlu0.b32.cont [3/16] %v215, 128
  %296 = vxpose.xlu0.b32.cont [4/16] %v216, 128
  %297 = vxpose.xlu0.b32.cont [5/16] %v217, 128
  %298 = vxpose.xlu0.b32.cont [6/16] %v218, 128
  %299 = vxpose.xlu0.b32.cont [7/16] %v219, 128
  %300 = vxpose.xlu0.b32.cont [8/16] %v220, 128
  %301 = vxpose.xlu0.b32.cont [9/16] %v221, 128
  %302 = vxpose.xlu0.b32.cont [10/16] %v222, 128
  %303 = vxpose.xlu0.b32.cont [11/16] %v223, 128
  %304 = vxpose.xlu0.b32.cont [12/16] %v224, 128
  %305 = vxpose.xlu0.b32.cont [13/16] %v225, 128
  %306 = vxpose.xlu0.b32.cont [14/16] %v226, 128
  %307 = vxpose.xlu0.b32.cont [15/16] %v227, 128
  %308 = vxpose.xlu0.b32.end [16/16] %v228, 128
  %v309 = vpop.trf.xlu0
  %v310 = vpop.trf.xlu0
  %v311 = vpop.trf.xlu0
  %v312 = vpop.trf.xlu0
  %v313 = vpop.trf.xlu0
  %v314 = vpop.trf.xlu0
  %v315 = vpop.trf.xlu0
  %v316 = vpop.trf.xlu0
  %v317 = vpop.trf.xlu0
  %v318 = vpop.trf.xlu0
  %v319 = vpop.trf.xlu0
  %v320 = vpop.trf.xlu0
  %v321 = vpop.trf.xlu0
  %v322 = vpop.trf.xlu0
  %v323 = vpop.trf.xlu0
  %v324 = vpop.trf.xlu0
  %v325 = vld [vmem:[%s1] sm:$0xff]
  %v326 = vld [vmem:[%s1 + $0x8] sm:$0xff]
  %v327 = vld [vmem:[%s1 + $0x10] sm:$0xff]
  %v328 = vld [vmem:[%s1 + $0x18] sm:$0xff]
  %v329 = vld [vmem:[%s1 + $0x20] sm:$0xff]
  %v330 = vld [vmem:[%s1 + $0x28] sm:$0xff]
  %v331 = vld [vmem:[%s1 + $0x30] sm:$0xff]
  %v332 = vld [vmem:[%s1 + $0x38] sm:$0xff]
  %v333 = vld [vmem:[%s1 + $0x40] sm:$0xff]
  %v334 = vld [vmem:[%s1 + $0x48] sm:$0xff]
  %v335 = vld [vmem:[%s1 + $0x50] sm:$0xff]
  %v336 = vld [vmem:[%s1 + $0x58] sm:$0xff]
  %v337 = vld [vmem:[%s1 + $0x60] sm:$0xff]
  %v338 = vld [vmem:[%s1 + $0x68] sm:$0xff]
  %v339 = vld [vmem:[%s1 + $0x70] sm:$0xff]
  %v340 = vld [vmem:[%s1 + $0x78] sm:$0xff]
  %v341 = vld [vmem:[%s1 + $0x80] sm:$0xff]
  %v342 = vld [vmem:[%s1 + $0x88] sm:$0xff]
  %v343 = vld [vmem:[%s1 + $0x90] sm:$0xff]
  %v344 = vld [vmem:[%s1 + $0x98] sm:$0xff]
  %v345 = vld [vmem:[%s1 + $0xa0] sm:$0xff]
  %v346 = vld [vmem:[%s1 + $0xa8] sm:$0xff]
  %v347 = vld [vmem:[%s1 + $0xb0] sm:$0xff]
  %v348 = vld [vmem:[%s1 + $0xb8] sm:$0xff]
  %v349 = vld [vmem:[%s1 + $0xc0] sm:$0xff]
  %v350 = vld [vmem:[%s1 + $0xc8] sm:$0xff]
  %v351 = vld [vmem:[%s1 + $0xd0] sm:$0xff]
  %v352 = vld [vmem:[%s1 + $0xd8] sm:$0xff]
  %v353 = vld [vmem:[%s1 + $0xe0] sm:$0xff]
  %v354 = vld [vmem:[%s1 + $0xe8] sm:$0xff]
  %v355 = vld [vmem:[%s1 + $0xf0] sm:$0xff]
  %v356 = vld [vmem:[%s1 + $0xf8] sm:$0xff]
  %357 = vxpose.xlu0.b32.start [1/16] %v325, 128
  %358 = vxpose.xlu0.b32.cont [2/16] %v326, 128
  %359 = vxpose.xlu0.b32.cont [3/16] %v327, 128
  %360 = vxpose.xlu0.b32.cont [4/16] %v328, 128
  %361 = vxpose.xlu0.b32.cont [5/16] %v329, 128
  %362 = vxpose.xlu0.b32.cont [6/16] %v330, 128
  %363 = vxpose.xlu0.b32.cont [7/16] %v331, 128
  %364 = vxpose.xlu0.b32.cont [8/16] %v332, 128
  %365 = vxpose.xlu0.b32.cont [9/16] %v333, 128
  %366 = vxpose.xlu0.b32.cont [10/16] %v334, 128
  %367 = vxpose.xlu0.b32.cont [11/16] %v335, 128
  %368 = vxpose.xlu0.b32.cont [12/16] %v336, 128
  %369 = vxpose.xlu0.b32.cont [13/16] %v337, 128
  %370 = vxpose.xlu0.b32.cont [14/16] %v338, 128
  %371 = vxpose.xlu0.b32.cont [15/16] %v339, 128
  %372 = vxpose.xlu0.b32.end [16/16] %v340, 128
  %v373 = vpop.trf.xlu0
  %v374 = vpop.trf.xlu0
  %v375 = vpop.trf.xlu0
  %v376 = vpop.trf.xlu0
  %v377 = vpop.trf.xlu0
  %v378 = vpop.trf.xlu0
  %v379 = vpop.trf.xlu0
  %v380 = vpop.trf.xlu0
  %v381 = vpop.trf.xlu0
  %v382 = vpop.trf.xlu0
  %v383 = vpop.trf.xlu0
  %v384 = vpop.trf.xlu0
  %v385 = vpop.trf.xlu0
  %v386 = vpop.trf.xlu0
  %v387 = vpop.trf.xlu0
  %v388 = vpop.trf.xlu0
  %389 = vxpose.xlu0.b32.start [1/16] %v341, 128
  %390 = vxpose.xlu0.b32.cont [2/16] %v342, 128
  %391 = vxpose.xlu0.b32.cont [3/16] %v343, 128
  %392 = vxpose.xlu0.b32.cont [4/16] %v344, 128
  %393 = vxpose.xlu0.b32.cont [5/16] %v345, 128
  %394 = vxpose.xlu0.b32.cont [6/16] %v346, 128
  %395 = vxpose.xlu0.b32.cont [7/16] %v347, 128
  %396 = vxpose.xlu0.b32.cont [8/16] %v348, 128
  %397 = vxpose.xlu0.b32.cont [9/16] %v349, 128
  %398 = vxpose.xlu0.b32.cont [10/16] %v350, 128
  %399 = vxpose.xlu0.b32.cont [11/16] %v351, 128
  %400 = vxpose.xlu0.b32.cont [12/16] %v352, 128
  %401 = vxpose.xlu0.b32.cont [13/16] %v353, 128
  %402 = vxpose.xlu0.b32.cont [14/16] %v354, 128
  %403 = vxpose.xlu0.b32.cont [15/16] %v355, 128
  %404 = vxpose.xlu0.b32.end [16/16] %v356, 128
  %v405 = vpop.trf.xlu0
  %v406 = vpop.trf.xlu0
  %v407 = vpop.trf.xlu0
  %v408 = vpop.trf.xlu0
  %v409 = vpop.trf.xlu0
  %v410 = vpop.trf.xlu0
  %v411 = vpop.trf.xlu0
  %v412 = vpop.trf.xlu0
  %v413 = vpop.trf.xlu0
  %v414 = vpop.trf.xlu0
  %v415 = vpop.trf.xlu0
  %v416 = vpop.trf.xlu0
  %v417 = vpop.trf.xlu0
  %v418 = vpop.trf.xlu0
  %v419 = vpop.trf.xlu0
  %v420 = vpop.trf.xlu0
  %s421 = scalar_lea.vmem %s1, 256
  %v422 = vld [vmem:[%s421] sm:$0xff]
  %v423 = vld [vmem:[%s421 + $0x8] sm:$0xff]
  %v424 = vld [vmem:[%s421 + $0x10] sm:$0xff]
  %v425 = vld [vmem:[%s421 + $0x18] sm:$0xff]
  %v426 = vld [vmem:[%s421 + $0x20] sm:$0xff]
  %v427 = vld [vmem:[%s421 + $0x28] sm:$0xff]
  %v428 = vld [vmem:[%s421 + $0x30] sm:$0xff]
  %v429 = vld [vmem:[%s421 + $0x38] sm:$0xff]
  %v430 = vld [vmem:[%s421 + $0x40] sm:$0xff]
  %v431 = vld [vmem:[%s421 + $0x48] sm:$0xff]
  %v432 = vld [vmem:[%s421 + $0x50] sm:$0xff]
  %v433 = vld [vmem:[%s421 + $0x58] sm:$0xff]
  %v434 = vld [vmem:[%s421 + $0x60] sm:$0xff]
  %v435 = vld [vmem:[%s421 + $0x68] sm:$0xff]
  %v436 = vld [vmem:[%s421 + $0x70] sm:$0xff]
  %v437 = vld [vmem:[%s421 + $0x78] sm:$0xff]
  %v438 = vld [vmem:[%s421 + $0x80] sm:$0xff]
  %v439 = vld [vmem:[%s421 + $0x88] sm:$0xff]
  %v440 = vld [vmem:[%s421 + $0x90] sm:$0xff]
  %v441 = vld [vmem:[%s421 + $0x98] sm:$0xff]
  %v442 = vld [vmem:[%s421 + $0xa0] sm:$0xff]
  %v443 = vld [vmem:[%s421 + $0xa8] sm:$0xff]
  %v444 = vld [vmem:[%s421 + $0xb0] sm:$0xff]
  %v445 = vld [vmem:[%s421 + $0xb8] sm:$0xff]
  %v446 = vld [vmem:[%s421 + $0xc0] sm:$0xff]
  %v447 = vld [vmem:[%s421 + $0xc8] sm:$0xff]
  %v448 = vld [vmem:[%s421 + $0xd0] sm:$0xff]
  %v449 = vld [vmem:[%s421 + $0xd8] sm:$0xff]
  %v450 = vld [vmem:[%s421 + $0xe0] sm:$0xff]
  %v451 = vld [vmem:[%s421 + $0xe8] sm:$0xff]
  %v452 = vld [vmem:[%s421 + $0xf0] sm:$0xff]
  %v453 = vld [vmem:[%s421 + $0xf8] sm:$0xff]
  %454 = vxpose.xlu0.b32.start [1/16] %v422, 128
  %455 = vxpose.xlu0.b32.cont [2/16] %v423, 128
  %456 = vxpose.xlu0.b32.cont [3/16] %v424, 128
  %457 = vxpose.xlu0.b32.cont [4/16] %v425, 128
  %458 = vxpose.xlu0.b32.cont [5/16] %v426, 128
  %459 = vxpose.xlu0.b32.cont [6/16] %v427, 128
  %460 = vxpose.xlu0.b32.cont [7/16] %v428, 128
  %461 = vxpose.xlu0.b32.cont [8/16] %v429, 128
  %462 = vxpose.xlu0.b32.cont [9/16] %v430, 128
  %463 = vxpose.xlu0.b32.cont [10/16] %v431, 128
  %464 = vxpose.xlu0.b32.cont [11/16] %v432, 128
  %465 = vxpose.xlu0.b32.cont [12/16] %v433, 128
  %466 = vxpose.xlu0.b32.cont [13/16] %v434, 128
  %467 = vxpose.xlu0.b32.cont [14/16] %v435, 128
  %468 = vxpose.xlu0.b32.cont [15/16] %v436, 128
  %469 = vxpose.xlu0.b32.end [16/16] %v437, 128
  %v470 = vpop.trf.xlu0
  %v471 = vpop.trf.xlu0
  %v472 = vpop.trf.xlu0
  %v473 = vpop.trf.xlu0
  %v474 = vpop.trf.xlu0
  %v475 = vpop.trf.xlu0
  %v476 = vpop.trf.xlu0
  %v477 = vpop.trf.xlu0
  %v478 = vpop.trf.xlu0
  %v479 = vpop.trf.xlu0
  %v480 = vpop.trf.xlu0
  %v481 = vpop.trf.xlu0
  %v482 = vpop.trf.xlu0
  %v483 = vpop.trf.xlu0
  %v484 = vpop.trf.xlu0
  %v485 = vpop.trf.xlu0
  %486 = vxpose.xlu0.b32.start [1/16] %v438, 128
  %487 = vxpose.xlu0.b32.cont [2/16] %v439, 128
  %488 = vxpose.xlu0.b32.cont [3/16] %v440, 128
  %489 = vxpose.xlu0.b32.cont [4/16] %v441, 128
  %490 = vxpose.xlu0.b32.cont [5/16] %v442, 128
  %491 = vxpose.xlu0.b32.cont [6/16] %v443, 128
  %492 = vxpose.xlu0.b32.cont [7/16] %v444, 128
  %493 = vxpose.xlu0.b32.cont [8/16] %v445, 128
  %494 = vxpose.xlu0.b32.cont [9/16] %v446, 128
  %495 = vxpose.xlu0.b32.cont [10/16] %v447, 128
  %496 = vxpose.xlu0.b32.cont [11/16] %v448, 128
  %497 = vxpose.xlu0.b32.cont [12/16] %v449, 128
  %498 = vxpose.xlu0.b32.cont [13/16] %v450, 128
  %499 = vxpose.xlu0.b32.cont [14/16] %v451, 128
  %500 = vxpose.xlu0.b32.cont [15/16] %v452, 128
  %501 = vxpose.xlu0.b32.end [16/16] %v453, 128
  %v502 = vpop.trf.xlu0
  %v503 = vpop.trf.xlu0
  %v504 = vpop.trf.xlu0
  %v505 = vpop.trf.xlu0
  %v506 = vpop.trf.xlu0
  %v507 = vpop.trf.xlu0
  %v508 = vpop.trf.xlu0
  %v509 = vpop.trf.xlu0
  %v510 = vpop.trf.xlu0
  %v511 = vpop.trf.xlu0
  %v512 = vpop.trf.xlu0
  %v513 = vpop.trf.xlu0
  %v514 = vpop.trf.xlu0
  %v515 = vpop.trf.xlu0
  %v516 = vpop.trf.xlu0
  %v517 = vpop.trf.xlu0
  %v518 = vpack.c.bf16 %v101, %v100
  %v519 = vpack.c.bf16 %v133, %v132
  %v520 = vpack.c.bf16 %v165, %v164
  %v521 = vpack.c.bf16 %v103, %v102
  %v522 = vpack.c.bf16 %v135, %v134
  %v523 = vpack.c.bf16 %v167, %v166
  %v524 = vpack.c.bf16 %v105, %v104
  %v525 = vpack.c.bf16 %v137, %v136
  %v526 = vpack.c.bf16 %v169, %v168
  %v527 = vpack.c.bf16 %v107, %v106
  %v528 = vpack.c.bf16 %v139, %v138
  %v529 = vpack.c.bf16 %v171, %v170
  %v530 = vpack.c.bf16 %v246, %v245
  %v531 = vpack.c.bf16 %v278, %v277
  %v532 = vpack.c.bf16 %v310, %v309
  %v533 = vpack.c.bf16 %v248, %v247
  %v534 = vpack.c.bf16 %v280, %v279
  %v535 = vpack.c.bf16 %v312, %v311
  %v536 = vpack.c.bf16 %v250, %v249
  %v537 = vpack.c.bf16 %v282, %v281
  %v538 = vpack.c.bf16 %v314, %v313
  %v539 = vpack.c.bf16 %v252, %v251
  %v540 = vpack.c.bf16 %v284, %v283
  %v541 = vpack.c.bf16 %v316, %v315
  %v542 = vpack.c.bf16 %v374, %v373
  %v543 = vpack.c.bf16 %v406, %v405
  %v544 = vpack.c.bf16 %v376, %v375
  %v545 = vpack.c.bf16 %v408, %v407
  %v546 = vpack.c.bf16 %v378, %v377
  %v547 = vpack.c.bf16 %v410, %v409
  %v548 = vpack.c.bf16 %v380, %v379
  %v549 = vpack.c.bf16 %v412, %v411
  %v550 = vpack.c.bf16 %v471, %v470
  %v551 = vpack.c.bf16 %v503, %v502
  %v552 = vpack.c.bf16 %v473, %v472
  %v553 = vpack.c.bf16 %v505, %v504
  %v554 = vpack.c.bf16 %v475, %v474
  %v555 = vpack.c.bf16 %v507, %v506
  %v556 = vpack.c.bf16 %v477, %v476
  %v557 = vpack.c.bf16 %v509, %v508
  %v558 = vld [vmem:[%s2] sm:$0xff]
  %v559 = vld [vmem:[%s2 + $0x8] sm:$0xff]
  %v560 = vld [vmem:[%s2 + $0x10] sm:$0xff]
  %v561 = vld [vmem:[%s2 + $0x18] sm:$0xff]
  %v562 = vld [vmem:[%s2 + $0x20] sm:$0xff]
  %v563 = vld [vmem:[%s2 + $0x28] sm:$0xff]
  %v564 = vld [vmem:[%s2 + $0x30] sm:$0xff]
  %v565 = vld [vmem:[%s2 + $0x38] sm:$0xff]
  %v566 = vld [vmem:[%s2 + $0x40] sm:$0xff]
  %v567 = vld [vmem:[%s2 + $0x48] sm:$0xff]
  %v568 = vld [vmem:[%s2 + $0x50] sm:$0xff]
  %v569 = vld [vmem:[%s2 + $0x58] sm:$0xff]
  %v570 = vld [vmem:[%s2 + $0x60] sm:$0xff]
  %v571 = vld [vmem:[%s2 + $0x68] sm:$0xff]
  %v572 = vld [vmem:[%s2 + $0x70] sm:$0xff]
  %v573 = vld [vmem:[%s2 + $0x78] sm:$0xff]
  %v574 = vld [vmem:[%s2 + $0x80] sm:$0xff]
  %v575 = vld [vmem:[%s2 + $0x88] sm:$0xff]
  %v576 = vld [vmem:[%s2 + $0x90] sm:$0xff]
  %v577 = vld [vmem:[%s2 + $0x98] sm:$0xff]
  %v578 = vld [vmem:[%s2 + $0xa0] sm:$0xff]
  %v579 = vld [vmem:[%s2 + $0xa8] sm:$0xff]
  %v580 = vld [vmem:[%s2 + $0xb0] sm:$0xff]
  %v581 = vld [vmem:[%s2 + $0xb8] sm:$0xff]
  %v582 = vld [vmem:[%s2 + $0xc0] sm:$0xff]
  %v583 = vld [vmem:[%s2 + $0xc8] sm:$0xff]
  %v584 = vld [vmem:[%s2 + $0xd0] sm:$0xff]
  %v585 = vld [vmem:[%s2 + $0xd8] sm:$0xff]
  %v586 = vld [vmem:[%s2 + $0xe0] sm:$0xff]
  %v587 = vld [vmem:[%s2 + $0xe8] sm:$0xff]
  %v588 = vld [vmem:[%s2 + $0xf0] sm:$0xff]
  %v589 = vld [vmem:[%s2 + $0xf8] sm:$0xff]
  %v590 = vld [vmem:[%s2 + $0x100] sm:$0xff]
  %v591 = vld [vmem:[%s2 + $0x108] sm:$0xff]
  %v592 = vld [vmem:[%s2 + $0x110] sm:$0xff]
  %v593 = vld [vmem:[%s2 + $0x118] sm:$0xff]
  %v594 = vld [vmem:[%s2 + $0x120] sm:$0xff]
  %v595 = vld [vmem:[%s2 + $0x128] sm:$0xff]
  %v596 = vld [vmem:[%s2 + $0x130] sm:$0xff]
  %v597 = vld [vmem:[%s2 + $0x138] sm:$0xff]
  %v598 = vld [vmem:[%s2 + $0x140] sm:$0xff]
  %v599 = vld [vmem:[%s2 + $0x148] sm:$0xff]
  %v600 = vld [vmem:[%s2 + $0x150] sm:$0xff]
  %v601 = vld [vmem:[%s2 + $0x158] sm:$0xff]
  %v602 = vld [vmem:[%s2 + $0x160] sm:$0xff]
  %v603 = vld [vmem:[%s2 + $0x168] sm:$0xff]
  %v604 = vld [vmem:[%s2 + $0x170] sm:$0xff]
  %v605 = vld [vmem:[%s2 + $0x178] sm:$0xff]
  %v654 = vunpack.c.l.b16 %v558
  %v655 = vunpack.c.h.b16 %v558
  %v656 = vunpack.c.l.b16 %v559
  %v657 = vunpack.c.h.b16 %v559
  %v658 = vunpack.c.l.b16 %v560
  %v659 = vunpack.c.h.b16 %v560
  %v660 = vunpack.c.l.b16 %v561
  %v661 = vunpack.c.h.b16 %v561
  %v662 = vunpack.c.l.b16 %v562
  %v663 = vunpack.c.h.b16 %v562
  %v664 = vunpack.c.l.b16 %v563
  %v665 = vunpack.c.h.b16 %v563
  %v666 = vunpack.c.l.b16 %v564
  %v667 = vunpack.c.h.b16 %v564
  %v668 = vunpack.c.l.b16 %v565
  %v669 = vunpack.c.h.b16 %v565
  %v670 = vunpack.c.l.b16 %v566
  %v671 = vunpack.c.h.b16 %v566
  %v672 = vunpack.c.l.b16 %v567
  %v673 = vunpack.c.h.b16 %v567
  %v674 = vunpack.c.l.b16 %v568
  %v675 = vunpack.c.h.b16 %v568
  %v676 = vunpack.c.l.b16 %v569
  %v677 = vunpack.c.h.b16 %v569
  %v678 = vunpack.c.l.b16 %v570
  %v679 = vunpack.c.h.b16 %v570
  %v680 = vunpack.c.l.b16 %v571
  %v681 = vunpack.c.h.b16 %v571
  %v682 = vunpack.c.l.b16 %v572
  %v683 = vunpack.c.h.b16 %v572
  %v684 = vunpack.c.l.b16 %v573
  %v685 = vunpack.c.h.b16 %v573
  %v686 = vunpack.c.l.b16 %v574
  %v687 = vunpack.c.h.b16 %v574
  %v688 = vunpack.c.l.b16 %v575
  %v689 = vunpack.c.h.b16 %v575
  %v690 = vunpack.c.l.b16 %v576
  %v691 = vunpack.c.h.b16 %v576
  %v692 = vunpack.c.l.b16 %v577
  %v693 = vunpack.c.h.b16 %v577
  %v694 = vunpack.c.l.b16 %v578
  %v695 = vunpack.c.h.b16 %v578
  %v696 = vunpack.c.l.b16 %v579
  %v697 = vunpack.c.h.b16 %v579
  %v698 = vunpack.c.l.b16 %v580
  %v699 = vunpack.c.h.b16 %v580
  %v700 = vunpack.c.l.b16 %v581
  %v701 = vunpack.c.h.b16 %v581
  %v702 = vunpack.c.l.b16 %v582
  %v703 = vunpack.c.h.b16 %v582
  %v704 = vunpack.c.l.b16 %v583
  %v705 = vunpack.c.h.b16 %v583
  %v706 = vunpack.c.l.b16 %v584
  %v707 = vunpack.c.h.b16 %v584
  %v708 = vunpack.c.l.b16 %v585
  %v709 = vunpack.c.h.b16 %v585
  %v710 = vunpack.c.l.b16 %v586
  %v711 = vunpack.c.h.b16 %v586
  %v712 = vunpack.c.l.b16 %v587
  %v713 = vunpack.c.h.b16 %v587
  %v714 = vunpack.c.l.b16 %v588
  %v715 = vunpack.c.h.b16 %v588
  %v716 = vunpack.c.l.b16 %v589
  %v717 = vunpack.c.h.b16 %v589
  %v718 = vunpack.c.l.b16 %v590
  %v719 = vunpack.c.h.b16 %v590
  %v720 = vunpack.c.l.b16 %v591
  %v721 = vunpack.c.h.b16 %v591
  %v722 = vunpack.c.l.b16 %v592
  %v723 = vunpack.c.h.b16 %v592
  %v724 = vunpack.c.l.b16 %v593
  %v725 = vunpack.c.h.b16 %v593
  %v726 = vunpack.c.l.b16 %v594
  %v727 = vunpack.c.h.b16 %v594
  %v728 = vunpack.c.l.b16 %v595
  %v729 = vunpack.c.h.b16 %v595
  %v730 = vunpack.c.l.b16 %v596
  %v731 = vunpack.c.h.b16 %v596
  %v732 = vunpack.c.l.b16 %v597
  %v733 = vunpack.c.h.b16 %v597
  %v734 = vunpack.c.l.b16 %v598
  %v735 = vunpack.c.h.b16 %v598
  %v736 = vunpack.c.l.b16 %v599
  %v737 = vunpack.c.h.b16 %v599
  %v738 = vunpack.c.l.b16 %v600
  %v739 = vunpack.c.h.b16 %v600
  %v740 = vunpack.c.l.b16 %v601
  %v741 = vunpack.c.h.b16 %v601
  %v742 = vunpack.c.l.b16 %v602
  %v743 = vunpack.c.h.b16 %v602
  %v744 = vunpack.c.l.b16 %v603
  %v745 = vunpack.c.h.b16 %v603
  %v746 = vunpack.c.l.b16 %v604
  %v747 = vunpack.c.h.b16 %v604
  %v748 = vunpack.c.l.b16 %v605
  %v749 = vunpack.c.h.b16 %v605
  %v750 = vpack.c.b16 %v656, %v654
  %v751 = vpack.c.b16 %v657, %v655
  %v752 = vpack.c.b16 %v660, %v658
  %v753 = vpack.c.b16 %v661, %v659
  %v754 = vpack.c.b16 %v664, %v662
  %v755 = vpack.c.b16 %v665, %v663
  %v756 = vpack.c.b16 %v668, %v666
  %v757 = vpack.c.b16 %v669, %v667
  %v758 = vpack.c.b16 %v672, %v670
  %v759 = vpack.c.b16 %v673, %v671
  %v760 = vpack.c.b16 %v676, %v674
  %v761 = vpack.c.b16 %v677, %v675
  %v762 = vpack.c.b16 %v680, %v678
  %v763 = vpack.c.b16 %v681, %v679
  %v764 = vpack.c.b16 %v684, %v682
  %v765 = vpack.c.b16 %v685, %v683
  %v766 = vpack.c.b16 %v688, %v686
  %v767 = vpack.c.b16 %v689, %v687
  %v768 = vpack.c.b16 %v692, %v690
  %v769 = vpack.c.b16 %v693, %v691
  %v770 = vpack.c.b16 %v696, %v694
  %v771 = vpack.c.b16 %v697, %v695
  %v772 = vpack.c.b16 %v700, %v698
  %v773 = vpack.c.b16 %v701, %v699
  %v774 = vpack.c.b16 %v704, %v702
  %v775 = vpack.c.b16 %v705, %v703
  %v776 = vpack.c.b16 %v708, %v706
  %v777 = vpack.c.b16 %v709, %v707
  %v778 = vpack.c.b16 %v712, %v710
  %v779 = vpack.c.b16 %v713, %v711
  %v780 = vpack.c.b16 %v716, %v714
  %v781 = vpack.c.b16 %v717, %v715
  %v782 = vpack.c.b16 %v720, %v718
  %v783 = vpack.c.b16 %v721, %v719
  %v784 = vpack.c.b16 %v724, %v722
  %v785 = vpack.c.b16 %v725, %v723
  %v786 = vpack.c.b16 %v728, %v726
  %v787 = vpack.c.b16 %v729, %v727
  %v788 = vpack.c.b16 %v732, %v730
  %v789 = vpack.c.b16 %v733, %v731
  %v790 = vpack.c.b16 %v736, %v734
  %v791 = vpack.c.b16 %v737, %v735
  %v792 = vpack.c.b16 %v740, %v738
  %v793 = vpack.c.b16 %v741, %v739
  %v794 = vpack.c.b16 %v744, %v742
  %v795 = vpack.c.b16 %v745, %v743
  %v796 = vpack.c.b16 %v748, %v746
  %v797 = vpack.c.b16 %v749, %v747
  %846 = vmatprep.subr.bf16.mxu0 %v751
  %847 = vmatpush1.bf16.msra.mxu0 %v750
  %848 = vmatprep.subr.bf16.mxu0 %v753
  %849 = vmatpush1.bf16.msra.mxu0 %v752
  %850 = vmatprep.subr.bf16.mxu0 %v755
  %851 = vmatpush1.bf16.msra.mxu0 %v754
  %852 = vmatprep.subr.bf16.mxu0 %v757
  %853 = vmatpush1.bf16.msra.mxu0 %v756
  %854 = vmatprep.subr.bf16.mxu0 %v759
  %855 = vmatpush1.bf16.msra.mxu0 %v758
  %856 = vmatprep.subr.bf16.mxu0 %v761
  %857 = vmatpush1.bf16.msra.mxu0 %v760
  %858 = vmatprep.subr.bf16.mxu0 %v763
  %859 = vmatpush1.bf16.msra.mxu0 %v762
  %860 = vmatprep.subr.bf16.mxu0 %v765
  %861 = vmatpush1.bf16.msra.mxu0 %v764
  %862 = vmatprep.subr.bf16.mxu0 %v767
  %863 = vmatpush1.bf16.msra.mxu0 %v766
  %864 = vmatprep.subr.bf16.mxu0 %v769
  %865 = vmatpush1.bf16.msra.mxu0 %v768
  %866 = vmatprep.subr.bf16.mxu0 %v771
  %867 = vmatpush1.bf16.msra.mxu0 %v770
  %868 = vmatprep.subr.bf16.mxu0 %v773
  %869 = vmatpush1.bf16.msra.mxu0 %v772
  %870 = vmatprep.subr.bf16.mxu0 %v775
  %871 = vmatpush1.bf16.msra.mxu0 %v774
  %872 = vmatprep.subr.bf16.mxu0 %v777
  %873 = vmatpush1.bf16.msra.mxu0 %v776
  %874 = vmatprep.subr.bf16.mxu0 %v779
  %875 = vmatpush1.bf16.msra.mxu0 %v778
  %876 = vmatprep.subr.bf16.mxu0 %v781
  %877 = vmatpush1.bf16.msra.mxu0 %v780
  %878 = vmatprep.mubr.bf16.mxu0 %v519
  %879 = vmatmul.mubr.bf16.gmra.mrb[0].mxu0 %v518
  %v880 = vpop.f32.mrb[0].mxu0
  %v881 = vadd.f32 0.0, %v880
  %v882 = vpop.f32.mrb[0].mxu0
  %v883 = vadd.f32 0.0, %v882
  %v884 = vpop.f32.mrb[0].mxu0
  %v885 = vadd.f32 0.0, %v884
  %v886 = vpop.f32.mrb[0].mxu0
  %v887 = vadd.f32 0.0, %v886
  %888 = vmatprep.mubr.bf16.mxu0 %v522
  %889 = vmatmul.mubr.bf16.gmra.mrb[0].mxu0 %v521
  %v890 = vpop.f32.mrb[0].mxu0
  %v891 = vadd.f32 0.0, %v890
  %v892 = vpop.f32.mrb[0].mxu0
  %v893 = vadd.f32 0.0, %v892
  %v894 = vpop.f32.mrb[0].mxu0
  %v895 = vadd.f32 0.0, %v894
  %v896 = vpop.f32.mrb[0].mxu0
  %v897 = vadd.f32 0.0, %v896
  %898 = vmatprep.mubr.bf16.mxu0 %v525
  %899 = vmatmul.mubr.bf16.gmra.mrb[0].mxu0 %v524
  %v900 = vpop.f32.mrb[0].mxu0
  %v901 = vadd.f32 0.0, %v900
  %v902 = vpop.f32.mrb[0].mxu0
  %v903 = vadd.f32 0.0, %v902
  %v904 = vpop.f32.mrb[0].mxu0
  %v905 = vadd.f32 0.0, %v904
  %v906 = vpop.f32.mrb[0].mxu0
  %v907 = vadd.f32 0.0, %v906
  %908 = vmatprep.mubr.bf16.mxu0 %v528
  %909 = vmatmul.mubr.bf16.gmra.mrb[0].mxu0 %v527
  %v910 = vpop.f32.mrb[0].mxu0
  %v911 = vadd.f32 0.0, %v910
  %v912 = vpop.f32.mrb[0].mxu0
  %v913 = vadd.f32 0.0, %v912
  %v914 = vpop.f32.mrb[0].mxu0
  %v915 = vadd.f32 0.0, %v914
  %v916 = vpop.f32.mrb[0].mxu0
  %v917 = vadd.f32 0.0, %v916
  %918 = vmatprep.mubr.bf16.mxu0 %v531
  %919 = vmatmul.mubr.bf16.gmra.mrb[0].mxu0 %v530
  %v920 = vpop.f32.mrb[0].mxu0
  %v921 = vadd.f32 0.0, %v920
  %v922 = vpop.f32.mrb[0].mxu0
  %v923 = vadd.f32 0.0, %v922
  %v924 = vpop.f32.mrb[0].mxu0
  %v925 = vadd.f32 0.0, %v924
  %v926 = vpop.f32.mrb[0].mxu0
  %v927 = vadd.f32 0.0, %v926
  %928 = vmatprep.mubr.bf16.mxu0 %v534
  %929 = vmatmul.mubr.bf16.gmra.mrb[0].mxu0 %v533
  %v930 = vpop.f32.mrb[0].mxu0
  %v931 = vadd.f32 0.0, %v930
  %v932 = vpop.f32.mrb[0].mxu0
  %v933 = vadd.f32 0.0, %v932
  %v934 = vpop.f32.mrb[0].mxu0
  %v935 = vadd.f32 0.0, %v934
  %v936 = vpop.f32.mrb[0].mxu0
  %v937 = vadd.f32 0.0, %v936
  %938 = vmatprep.mubr.bf16.mxu0 %v537
  %939 = vmatmul.mubr.bf16.gmra.mrb[0].mxu0 %v536
  %v940 = vpop.f32.mrb[0].mxu0
  %v941 = vadd.f32 0.0, %v940
  %v942 = vpop.f32.mrb[0].mxu0
  %v943 = vadd.f32 0.0, %v942
  %v944 = vpop.f32.mrb[0].mxu0
  %v945 = vadd.f32 0.0, %v944
  %v946 = vpop.f32.mrb[0].mxu0
  %v947 = vadd.f32 0.0, %v946
  %948 = vmatprep.mubr.bf16.mxu0 %v540
  %949 = vmatmul.mubr.bf16.gmra.mrb[0].mxu0 %v539
  %v950 = vpop.f32.mrb[0].mxu0
  %v951 = vadd.f32 0.0, %v950
  %v952 = vpop.f32.mrb[0].mxu0
  %v953 = vadd.f32 0.0, %v952
  %v954 = vpop.f32.mrb[0].mxu0
  %v955 = vadd.f32 0.0, %v954
  %v956 = vpop.f32.mrb[0].mxu0
  %v957 = vadd.f32 0.0, %v956
  %958 = vdwg.mxu0
  %959 = vmatprep.subr.bf16.mxu0 %v783
  %960 = vmatpush1.bf16.msra.mxu0 %v782
  %961 = vmatprep.subr.bf16.mxu0 %v785
  %962 = vmatpush1.bf16.msra.mxu0 %v784
  %963 = vmatprep.subr.bf16.mxu0 %v787
  %964 = vmatpush1.bf16.msra.mxu0 %v786
  %965 = vmatprep.subr.bf16.mxu0 %v789
  %966 = vmatpush1.bf16.msra.mxu0 %v788
  %967 = vmatprep.subr.bf16.mxu0 %v791
  %968 = vmatpush1.bf16.msra.mxu0 %v790
  %969 = vmatprep.subr.bf16.mxu0 %v793
  %970 = vmatpush1.bf16.msra.mxu0 %v792
  %971 = vmatprep.subr.bf16.mxu0 %v795
  %972 = vmatpush1.bf16.msra.mxu0 %v794
  %973 = vmatprep.subr.bf16.mxu0 %v797
  %974 = vmatpush1.bf16.msra.mxu0 %v796
  %975 = vmatprep.subr.bf16.mxu0 0
  %976 = vmatpush1.bf16.msra.mxu0 0
  %977 = vmatprep.subr.bf16.mxu0 0
  %978 = vmatpush1.bf16.msra.mxu0 0
  %979 = vmatprep.subr.bf16.mxu0 0
  %980 = vmatpush1.bf16.msra.mxu0 0
  %981 = vmatprep.subr.bf16.mxu0 0
  %982 = vmatpush1.bf16.msra.mxu0 0
  %983 = vmatprep.subr.bf16.mxu0 0
  %984 = vmatpush1.bf16.msra.mxu0 0
  %985 = vmatprep.subr.bf16.mxu0 0
  %986 = vmatpush1.bf16.msra.mxu0 0
  %987 = vmatprep.subr.bf16.mxu0 0
  %988 = vmatpush1.bf16.msra.mxu0 0
  %989 = vmatprep.subr.bf16.mxu0 0
  %990 = vmatpush1.bf16.msra.mxu0 0
  %991 = vmatprep.mubr.bf16.mxu0 0
  %992 = vmatmul.mubr.bf16.gmra.mrb[0].mxu0 %v520
  %v993 = vpop.f32.mrb[0].mxu0
  %v994 = vadd.f32 %v881, %v993
  %v995 = vpop.f32.mrb[0].mxu0
  %v996 = vadd.f32 %v883, %v995
  %v997 = vpop.f32.mrb[0].mxu0
  %v998 = vadd.f32 %v885, %v997
  %v999 = vpop.f32.mrb[0].mxu0
  %v1000 = vadd.f32 %v887, %v999
  %1001 = vmatprep.mubr.bf16.mxu0 0
  %1002 = vmatmul.mubr.bf16.gmra.mrb[0].mxu0 %v523
  %v1003 = vpop.f32.mrb[0].mxu0
  %v1004 = vadd.f32 %v891, %v1003
  %v1005 = vpop.f32.mrb[0].mxu0
  %v1006 = vadd.f32 %v893, %v1005
  %v1007 = vpop.f32.mrb[0].mxu0
  %v1008 = vadd.f32 %v895, %v1007
  %v1009 = vpop.f32.mrb[0].mxu0
  %v1010 = vadd.f32 %v897, %v1009
  %1011 = vmatprep.mubr.bf16.mxu0 0
  %1012 = vmatmul.mubr.bf16.gmra.mrb[0].mxu0 %v526
  %v1013 = vpop.f32.mrb[0].mxu0
  %v1014 = vadd.f32 %v901, %v1013
  %v1015 = vpop.f32.mrb[0].mxu0
  %v1016 = vadd.f32 %v903, %v1015
  %v1017 = vpop.f32.mrb[0].mxu0
  %v1018 = vadd.f32 %v905, %v1017
  %v1019 = vpop.f32.mrb[0].mxu0
  %v1020 = vadd.f32 %v907, %v1019
  %1021 = vmatprep.mubr.bf16.mxu0 0
  %1022 = vmatmul.mubr.bf16.gmra.mrb[0].mxu0 %v529
  %v1023 = vpop.f32.mrb[0].mxu0
  %v1024 = vadd.f32 %v911, %v1023
  %v1025 = vpop.f32.mrb[0].mxu0
  %v1026 = vadd.f32 %v913, %v1025
  %v1027 = vpop.f32.mrb[0].mxu0
  %v1028 = vadd.f32 %v915, %v1027
  %v1029 = vpop.f32.mrb[0].mxu0
  %v1030 = vadd.f32 %v917, %v1029
  %1031 = vmatprep.mubr.bf16.mxu0 0
  %1032 = vmatmul.mubr.bf16.gmra.mrb[0].mxu0 %v532
  %v1033 = vpop.f32.mrb[0].mxu0
  %v1034 = vadd.f32 %v921, %v1033
  %v1035 = vpop.f32.mrb[0].mxu0
  %v1036 = vadd.f32 %v923, %v1035
  %v1037 = vpop.f32.mrb[0].mxu0
  %v1038 = vadd.f32 %v925, %v1037
  %v1039 = vpop.f32.mrb[0].mxu0
  %v1040 = vadd.f32 %v927, %v1039
  %1041 = vmatprep.mubr.bf16.mxu0 0
  %1042 = vmatmul.mubr.bf16.gmra.mrb[0].mxu0 %v535
  %v1043 = vpop.f32.mrb[0].mxu0
  %v1044 = vadd.f32 %v931, %v1043
  %v1045 = vpop.f32.mrb[0].mxu0
  %v1046 = vadd.f32 %v933, %v1045
  %v1047 = vpop.f32.mrb[0].mxu0
  %v1048 = vadd.f32 %v935, %v1047
  %v1049 = vpop.f32.mrb[0].mxu0
  %v1050 = vadd.f32 %v937, %v1049
  %1051 = vmatprep.mubr.bf16.mxu0 0
  %1052 = vmatmul.mubr.bf16.gmra.mrb[0].mxu0 %v538
  %v1053 = vpop.f32.mrb[0].mxu0
  %v1054 = vadd.f32 %v941, %v1053
  %v1055 = vpop.f32.mrb[0].mxu0
  %v1056 = vadd.f32 %v943, %v1055
  %v1057 = vpop.f32.mrb[0].mxu0
  %v1058 = vadd.f32 %v945, %v1057
  %v1059 = vpop.f32.mrb[0].mxu0
  %v1060 = vadd.f32 %v947, %v1059
  %1061 = vmatprep.mubr.bf16.mxu0 0
  %1062 = vmatmul.mubr.bf16.gmra.mrb[0].mxu0 %v541
  %v1063 = vpop.f32.mrb[0].mxu0
  %v1064 = vadd.f32 %v951, %v1063
  %v1065 = vpop.f32.mrb[0].mxu0
  %v1066 = vadd.f32 %v953, %v1065
  %v1067 = vpop.f32.mrb[0].mxu0
  %v1068 = vadd.f32 %v955, %v1067
  %v1069 = vpop.f32.mrb[0].mxu0
  %v1070 = vadd.f32 %v957, %v1069
  %1071 = vdwg.mxu0
  %v1072 = vmul.f32 %v994, %v373
  %v1073 = vmul.f32 %v996, %v405
  %v1074 = vmul.f32 %v998, %v374
  %v1075 = vmul.f32 %v1000, %v406
  %v1076 = vmul.f32 %v1004, %v375
  %v1077 = vmul.f32 %v1006, %v407
  %v1078 = vmul.f32 %v1008, %v376
  %v1079 = vmul.f32 %v1010, %v408
  %v1080 = vmul.f32 %v1014, %v377
  %v1081 = vmul.f32 %v1016, %v409
  %v1082 = vmul.f32 %v1018, %v378
  %v1083 = vmul.f32 %v1020, %v410
  %v1084 = vmul.f32 %v1024, %v379
  %v1085 = vmul.f32 %v1026, %v411
  %v1086 = vmul.f32 %v1028, %v380
  %v1087 = vmul.f32 %v1030, %v412
  %v1088 = vmul.f32 %v1034, %v470
  %v1089 = vmul.f32 %v1036, %v502
  %v1090 = vmul.f32 %v1038, %v471
  %v1091 = vmul.f32 %v1040, %v503
  %v1092 = vmul.f32 %v1044, %v472
  %v1093 = vmul.f32 %v1046, %v504
  %v1094 = vmul.f32 %v1048, %v473
  %v1095 = vmul.f32 %v1050, %v505
  %v1096 = vmul.f32 %v1054, %v474
  %v1097 = vmul.f32 %v1056, %v506
  %v1098 = vmul.f32 %v1058, %v475
  %v1099 = vmul.f32 %v1060, %v507
  %v1100 = vmul.f32 %v1064, %v476
  %v1101 = vmul.f32 %v1066, %v508
  %v1102 = vmul.f32 %v1068, %v477
  %v1103 = vmul.f32 %v1070, %v509
  %v1104 = vadd.f32 %v1072, %v1073
  %1105 = vadd.xlane.f32.xlu0 %v1104
  %v1106 = vpop.xlane.xlu0 %1105
  %v1107 = vadd.f32 %v1074, %v1075
  %1108 = vadd.xlane.f32.xlu0 %v1107
  %v1109 = vpop.xlane.xlu0 %1108
  %v1110 = vadd.f32 %v1076, %v1077
  %1111 = vadd.xlane.f32.xlu0 %v1110
  %v1112 = vpop.xlane.xlu0 %1111
  %v1113 = vadd.f32 %v1078, %v1079
  %1114 = vadd.xlane.f32.xlu0 %v1113
  %v1115 = vpop.xlane.xlu0 %1114
  %v1116 = vadd.f32 %v1080, %v1081
  %1117 = vadd.xlane.f32.xlu0 %v1116
  %v1118 = vpop.xlane.xlu0 %1117
  %v1119 = vadd.f32 %v1082, %v1083
  %1120 = vadd.xlane.f32.xlu0 %v1119
  %v1121 = vpop.xlane.xlu0 %1120
  %v1122 = vadd.f32 %v1084, %v1085
  %1123 = vadd.xlane.f32.xlu0 %v1122
  %v1124 = vpop.xlane.xlu0 %1123
  %v1125 = vadd.f32 %v1086, %v1087
  %1126 = vadd.xlane.f32.xlu0 %v1125
  %v1127 = vpop.xlane.xlu0 %1126
  %v1128 = vadd.f32 %v1088, %v1089
  %1129 = vadd.xlane.f32.xlu0 %v1128
  %v1130 = vpop.xlane.xlu0 %1129
  %v1131 = vadd.f32 %v1090, %v1091
  %1132 = vadd.xlane.f32.xlu0 %v1131
  %v1133 = vpop.xlane.xlu0 %1132
  %v1134 = vadd.f32 %v1092, %v1093
  %1135 = vadd.xlane.f32.xlu0 %v1134
  %v1136 = vpop.xlane.xlu0 %1135
  %v1137 = vadd.f32 %v1094, %v1095
  %1138 = vadd.xlane.f32.xlu0 %v1137
  %v1139 = vpop.xlane.xlu0 %1138
  %v1140 = vadd.f32 %v1096, %v1097
  %1141 = vadd.xlane.f32.xlu0 %v1140
  %v1142 = vpop.xlane.xlu0 %1141
  %v1143 = vadd.f32 %v1098, %v1099
  %1144 = vadd.xlane.f32.xlu0 %v1143
  %v1145 = vpop.xlane.xlu0 %1144
  %v1146 = vadd.f32 %v1100, %v1101
  %1147 = vadd.xlane.f32.xlu0 %v1146
  %v1148 = vpop.xlane.xlu0 %1147
  %v1149 = vadd.f32 %v1102, %v1103
  %1150 = vadd.xlane.f32.xlu0 %v1149
  %v1151 = vpop.xlane.xlu0 %1150
  %v1152 = vld [vmem:[%s3] sm:$0x7]
  %v1154 = vlaneseq
  %v1155 = vshrl.u32 %v1154, 7
  %v1156 = vsub.s32 0, %v1155
  %v1157 = vrot.slane %v1152, %v1156
  %v1158 = vlaneseq
  %v1159 = vshrl.u32 %v1158, 7
  %v1160 = vsub.s32 1, %v1159
  %v1161 = vrot.slane %v1152, %v1160
  %v1162 = vlaneseq
  %v1163 = vshrl.u32 %v1162, 7
  %v1164 = vsub.s32 2, %v1163
  %v1165 = vrot.slane %v1152, %v1164
  %v1169 = vmul.f32 %v100, %v1157
  %v1170 = vmul.f32 %v132, %v1161
  %v1171 = vmul.f32 %v164, %v1165
  %v1172 = vmul.f32 %v101, %v1157
  %v1173 = vmul.f32 %v133, %v1161
  %v1174 = vmul.f32 %v165, %v1165
  %v1175 = vmul.f32 %v102, %v1157
  %v1176 = vmul.f32 %v134, %v1161
  %v1177 = vmul.f32 %v166, %v1165
  %v1178 = vmul.f32 %v103, %v1157
  %v1179 = vmul.f32 %v135, %v1161
  %v1180 = vmul.f32 %v167, %v1165
  %v1181 = vmul.f32 %v104, %v1157
  %v1182 = vmul.f32 %v136, %v1161
  %v1183 = vmul.f32 %v168, %v1165
  %v1184 = vmul.f32 %v105, %v1157
  %v1185 = vmul.f32 %v137, %v1161
  %v1186 = vmul.f32 %v169, %v1165
  %v1187 = vmul.f32 %v106, %v1157
  %v1188 = vmul.f32 %v138, %v1161
  %v1189 = vmul.f32 %v170, %v1165
  %v1190 = vmul.f32 %v107, %v1157
  %v1191 = vmul.f32 %v139, %v1161
  %v1192 = vmul.f32 %v171, %v1165
  %v1193 = vmul.f32 %v245, %v1157
  %v1194 = vmul.f32 %v277, %v1161
  %v1195 = vmul.f32 %v309, %v1165
  %v1196 = vmul.f32 %v246, %v1157
  %v1197 = vmul.f32 %v278, %v1161
  %v1198 = vmul.f32 %v310, %v1165
  %v1199 = vmul.f32 %v247, %v1157
  %v1200 = vmul.f32 %v279, %v1161
  %v1201 = vmul.f32 %v311, %v1165
  %v1202 = vmul.f32 %v248, %v1157
  %v1203 = vmul.f32 %v280, %v1161
  %v1204 = vmul.f32 %v312, %v1165
  %v1205 = vmul.f32 %v249, %v1157
  %v1206 = vmul.f32 %v281, %v1161
  %v1207 = vmul.f32 %v313, %v1165
  %v1208 = vmul.f32 %v250, %v1157
  %v1209 = vmul.f32 %v282, %v1161
  %v1210 = vmul.f32 %v314, %v1165
  %v1211 = vmul.f32 %v251, %v1157
  %v1212 = vmul.f32 %v283, %v1161
  %v1213 = vmul.f32 %v315, %v1165
  %v1214 = vmul.f32 %v252, %v1157
  %v1215 = vmul.f32 %v284, %v1161
  %v1216 = vmul.f32 %v316, %v1165
  %v1217 = vadd.f32 %v1169, %v1170
  %v1218 = vadd.f32 %v1217, %v1171
  %1219 = vadd.xlane.f32.xlu0 %v1218
  %v1220 = vpop.xlane.xlu0 %1219
  %v1221 = vadd.f32 %v1172, %v1173
  %v1222 = vadd.f32 %v1221, %v1174
  %1223 = vadd.xlane.f32.xlu0 %v1222
  %v1224 = vpop.xlane.xlu0 %1223
  %v1225 = vadd.f32 %v1175, %v1176
  %v1226 = vadd.f32 %v1225, %v1177
  %1227 = vadd.xlane.f32.xlu0 %v1226
  %v1228 = vpop.xlane.xlu0 %1227
  %v1229 = vadd.f32 %v1178, %v1179
  %v1230 = vadd.f32 %v1229, %v1180
  %1231 = vadd.xlane.f32.xlu0 %v1230
  %v1232 = vpop.xlane.xlu0 %1231
  %v1233 = vadd.f32 %v1181, %v1182
  %v1234 = vadd.f32 %v1233, %v1183
  %1235 = vadd.xlane.f32.xlu0 %v1234
  %v1236 = vpop.xlane.xlu0 %1235
  %v1237 = vadd.f32 %v1184, %v1185
  %v1238 = vadd.f32 %v1237, %v1186
  %1239 = vadd.xlane.f32.xlu0 %v1238
  %v1240 = vpop.xlane.xlu0 %1239
  %v1241 = vadd.f32 %v1187, %v1188
  %v1242 = vadd.f32 %v1241, %v1189
  %1243 = vadd.xlane.f32.xlu0 %v1242
  %v1244 = vpop.xlane.xlu0 %1243
  %v1245 = vadd.f32 %v1190, %v1191
  %v1246 = vadd.f32 %v1245, %v1192
  %1247 = vadd.xlane.f32.xlu0 %v1246
  %v1248 = vpop.xlane.xlu0 %1247
  %v1249 = vadd.f32 %v1193, %v1194
  %v1250 = vadd.f32 %v1249, %v1195
  %1251 = vadd.xlane.f32.xlu0 %v1250
  %v1252 = vpop.xlane.xlu0 %1251
  %v1253 = vadd.f32 %v1196, %v1197
  %v1254 = vadd.f32 %v1253, %v1198
  %1255 = vadd.xlane.f32.xlu0 %v1254
  %v1256 = vpop.xlane.xlu0 %1255
  %v1257 = vadd.f32 %v1199, %v1200
  %v1258 = vadd.f32 %v1257, %v1201
  %1259 = vadd.xlane.f32.xlu0 %v1258
  %v1260 = vpop.xlane.xlu0 %1259
  %v1261 = vadd.f32 %v1202, %v1203
  %v1262 = vadd.f32 %v1261, %v1204
  %1263 = vadd.xlane.f32.xlu0 %v1262
  %v1264 = vpop.xlane.xlu0 %1263
  %v1265 = vadd.f32 %v1205, %v1206
  %v1266 = vadd.f32 %v1265, %v1207
  %1267 = vadd.xlane.f32.xlu0 %v1266
  %v1268 = vpop.xlane.xlu0 %1267
  %v1269 = vadd.f32 %v1208, %v1209
  %v1270 = vadd.f32 %v1269, %v1210
  %1271 = vadd.xlane.f32.xlu0 %v1270
  %v1272 = vpop.xlane.xlu0 %1271
  %v1273 = vadd.f32 %v1211, %v1212
  %v1274 = vadd.f32 %v1273, %v1213
  %1275 = vadd.xlane.f32.xlu0 %v1274
  %v1276 = vpop.xlane.xlu0 %1275
  %v1277 = vadd.f32 %v1214, %v1215
  %v1278 = vadd.f32 %v1277, %v1216
  %1279 = vadd.xlane.f32.xlu0 %v1278
  %v1280 = vpop.xlane.xlu0 %1279
  %v1281 = vadd.f32 %v1106, %v1220
  %v1282 = vadd.f32 %v1109, %v1224
  %v1283 = vadd.f32 %v1112, %v1228
  %v1284 = vadd.f32 %v1115, %v1232
  %v1285 = vadd.f32 %v1118, %v1236
  %v1286 = vadd.f32 %v1121, %v1240
  %v1287 = vadd.f32 %v1124, %v1244
  %v1288 = vadd.f32 %v1127, %v1248
  %v1289 = vadd.f32 %v1130, %v1252
  %v1290 = vadd.f32 %v1133, %v1256
  %v1291 = vadd.f32 %v1136, %v1260
  %v1292 = vadd.f32 %v1139, %v1264
  %v1293 = vadd.f32 %v1142, %v1268
  %v1294 = vadd.f32 %v1145, %v1272
  %v1295 = vadd.f32 %v1148, %v1276
  %v1296 = vadd.f32 %v1151, %v1280
  %v1297 = vld [vmem:[%s4] sm:$0x3]
  %v1299 = vlaneseq
  %v1300 = vshrl.u32 %v1299, 7
  %v1301 = vsub.s32 0, %v1300
  %v1302 = vrot.slane %v1297, %v1301
  %v1303 = vlaneseq
  %v1304 = vshrl.u32 %v1303, 7
  %v1305 = vsub.s32 1, %v1304
  %v1306 = vrot.slane %v1297, %v1305
  %v1309 = vmul.f32 %v373, %v1302
  %v1310 = vmul.f32 %v405, %v1306
  %v1311 = vmul.f32 %v374, %v1302
  %v1312 = vmul.f32 %v406, %v1306
  %v1313 = vmul.f32 %v375, %v1302
  %v1314 = vmul.f32 %v407, %v1306
  %v1315 = vmul.f32 %v376, %v1302
  %v1316 = vmul.f32 %v408, %v1306
  %v1317 = vmul.f32 %v377, %v1302
  %v1318 = vmul.f32 %v409, %v1306
  %v1319 = vmul.f32 %v378, %v1302
  %v1320 = vmul.f32 %v410, %v1306
  %v1321 = vmul.f32 %v379, %v1302
  %v1322 = vmul.f32 %v411, %v1306
  %v1323 = vmul.f32 %v380, %v1302
  %v1324 = vmul.f32 %v412, %v1306
  %v1325 = vmul.f32 %v470, %v1302
  %v1326 = vmul.f32 %v502, %v1306
  %v1327 = vmul.f32 %v471, %v1302
  %v1328 = vmul.f32 %v503, %v1306
  %v1329 = vmul.f32 %v472, %v1302
  %v1330 = vmul.f32 %v504, %v1306
  %v1331 = vmul.f32 %v473, %v1302
  %v1332 = vmul.f32 %v505, %v1306
  %v1333 = vmul.f32 %v474, %v1302
  %v1334 = vmul.f32 %v506, %v1306
  %v1335 = vmul.f32 %v475, %v1302
  %v1336 = vmul.f32 %v507, %v1306
  %v1337 = vmul.f32 %v476, %v1302
  %v1338 = vmul.f32 %v508, %v1306
  %v1339 = vmul.f32 %v477, %v1302
  %v1340 = vmul.f32 %v509, %v1306
  %v1341 = vadd.f32 %v1309, %v1310
  %1342 = vadd.xlane.f32.xlu0 %v1341
  %v1343 = vpop.xlane.xlu0 %1342
  %v1344 = vadd.f32 %v1311, %v1312
  %1345 = vadd.xlane.f32.xlu0 %v1344
  %v1346 = vpop.xlane.xlu0 %1345
  %v1347 = vadd.f32 %v1313, %v1314
  %1348 = vadd.xlane.f32.xlu0 %v1347
  %v1349 = vpop.xlane.xlu0 %1348
  %v1350 = vadd.f32 %v1315, %v1316
  %1351 = vadd.xlane.f32.xlu0 %v1350
  %v1352 = vpop.xlane.xlu0 %1351
  %v1353 = vadd.f32 %v1317, %v1318
  %1354 = vadd.xlane.f32.xlu0 %v1353
  %v1355 = vpop.xlane.xlu0 %1354
  %v1356 = vadd.f32 %v1319, %v1320
  %1357 = vadd.xlane.f32.xlu0 %v1356
  %v1358 = vpop.xlane.xlu0 %1357
  %v1359 = vadd.f32 %v1321, %v1322
  %1360 = vadd.xlane.f32.xlu0 %v1359
  %v1361 = vpop.xlane.xlu0 %1360
  %v1362 = vadd.f32 %v1323, %v1324
  %1363 = vadd.xlane.f32.xlu0 %v1362
  %v1364 = vpop.xlane.xlu0 %1363
  %v1365 = vadd.f32 %v1325, %v1326
  %1366 = vadd.xlane.f32.xlu0 %v1365
  %v1367 = vpop.xlane.xlu0 %1366
  %v1368 = vadd.f32 %v1327, %v1328
  %1369 = vadd.xlane.f32.xlu0 %v1368
  %v1370 = vpop.xlane.xlu0 %1369
  %v1371 = vadd.f32 %v1329, %v1330
  %1372 = vadd.xlane.f32.xlu0 %v1371
  %v1373 = vpop.xlane.xlu0 %1372
  %v1374 = vadd.f32 %v1331, %v1332
  %1375 = vadd.xlane.f32.xlu0 %v1374
  %v1376 = vpop.xlane.xlu0 %1375
  %v1377 = vadd.f32 %v1333, %v1334
  %1378 = vadd.xlane.f32.xlu0 %v1377
  %v1379 = vpop.xlane.xlu0 %1378
  %v1380 = vadd.f32 %v1335, %v1336
  %1381 = vadd.xlane.f32.xlu0 %v1380
  %v1382 = vpop.xlane.xlu0 %1381
  %v1383 = vadd.f32 %v1337, %v1338
  %1384 = vadd.xlane.f32.xlu0 %v1383
  %v1385 = vpop.xlane.xlu0 %1384
  %v1386 = vadd.f32 %v1339, %v1340
  %1387 = vadd.xlane.f32.xlu0 %v1386
  %v1388 = vpop.xlane.xlu0 %1387
  %v1389 = vadd.f32 %v1281, %v1343
  %v1390 = vadd.f32 %v1282, %v1346
  %v1391 = vadd.f32 %v1283, %v1349
  %v1392 = vadd.f32 %v1284, %v1352
  %v1393 = vadd.f32 %v1285, %v1355
  %v1394 = vadd.f32 %v1286, %v1358
  %v1395 = vadd.f32 %v1287, %v1361
  %v1396 = vadd.f32 %v1288, %v1364
  %v1397 = vadd.f32 %v1289, %v1367
  %v1398 = vadd.f32 %v1290, %v1370
  %v1399 = vadd.f32 %v1291, %v1373
  %v1400 = vadd.f32 %v1292, %v1376
  %v1401 = vadd.f32 %v1293, %v1379
  %v1402 = vadd.f32 %v1294, %v1382
  %v1403 = vadd.f32 %v1295, %v1385
  %v1404 = vadd.f32 %v1296, %v1388
  %v1405 = vmul.f32 %v1389, 0.0625
  %v1406 = vmul.f32 %v1390, 0.0625
  %v1407 = vmul.f32 %v1391, 0.0625
  %v1408 = vmul.f32 %v1392, 0.0625
  %v1409 = vmul.f32 %v1393, 0.0625
  %v1410 = vmul.f32 %v1394, 0.0625
  %v1411 = vmul.f32 %v1395, 0.0625
  %v1412 = vmul.f32 %v1396, 0.0625
  %v1413 = vmul.f32 %v1397, 0.0625
  %v1414 = vmul.f32 %v1398, 0.0625
  %v1415 = vmul.f32 %v1399, 0.0625
  %v1416 = vmul.f32 %v1400, 0.0625
  %v1417 = vmul.f32 %v1401, 0.0625
  %v1418 = vmul.f32 %v1402, 0.0625
  %v1419 = vmul.f32 %v1403, 0.0625
  %v1420 = vmul.f32 %v1404, 0.0625
  %v1421 = vmax.f32 %v1405, %v1409
  %v1422 = vmax.f32 %v1406, %v1410
  %v1423 = vmax.f32 %v1407, %v1411
  %v1424 = vmax.f32 %v1408, %v1412
  %v1425 = vmax.f32 %v1421, %v1422
  %v1426 = vmax.f32 %v1423, %v1424
  %v1427 = vmax.f32 %v1425, %v1426
  %v1428 = vrot.slane %v1427, 4
  %v1429 = vmax.f32 %v1427, %v1428
  %v1430 = vrot.slane %v1429, 2
  %v1431 = vmax.f32 %v1429, %v1430
  %v1432 = vrot.slane %v1431, 1
  %v1433 = vmax.f32 %v1431, %v1432
  %v1434 = vsub.f32 %v1405, %v1433
  %v1435 = vsub.f32 %v1406, %v1433
  %v1436 = vsub.f32 %v1407, %v1433
  %v1437 = vsub.f32 %v1408, %v1433
  %v1438 = vsub.f32 %v1409, %v1433
  %v1439 = vsub.f32 %v1410, %v1433
  %v1440 = vsub.f32 %v1411, %v1433
  %v1441 = vsub.f32 %v1412, %v1433
  %v1442 = vmul.f32 %v1434, 1.442695
  %v1443 = vpow.pop %v1442
  %v1444 = vmul.f32 %v1435, 1.442695
  %v1445 = vpow.pop %v1444
  %v1446 = vmul.f32 %v1436, 1.442695
  %v1447 = vpow.pop %v1446
  %v1448 = vmul.f32 %v1437, 1.442695
  %v1449 = vpow.pop %v1448
  %v1450 = vmul.f32 %v1438, 1.442695
  %v1451 = vpow.pop %v1450
  %v1452 = vmul.f32 %v1439, 1.442695
  %v1453 = vpow.pop %v1452
  %v1454 = vmul.f32 %v1440, 1.442695
  %v1455 = vpow.pop %v1454
  %v1456 = vmul.f32 %v1441, 1.442695
  %v1457 = vpow.pop %v1456
  %v1458 = vadd.f32 %v1443, %v1445
  %v1459 = vadd.f32 %v1458, %v1447
  %v1460 = vadd.f32 %v1459, %v1449
  %v1461 = vadd.f32 %v1460, %v1451
  %v1462 = vadd.f32 %v1461, %v1453
  %v1463 = vadd.f32 %v1462, %v1455
  %v1464 = vadd.f32 %v1463, %v1457
  %v1465 = vrot.slane %v1464, 4
  %v1466 = vadd.f32 %v1464, %v1465
  %v1467 = vrot.slane %v1466, 2
  %v1468 = vadd.f32 %v1466, %v1467
  %v1469 = vrot.slane %v1468, 1
  %v1470 = vadd.f32 %v1468, %v1469
  %v1471 = vrcp.pop %v1470
  %v1472 = vmul.f32 %v1443, %v1471
  %v1473 = vmul.f32 %v1445, %v1471
  %v1474 = vmul.f32 %v1447, %v1471
  %v1475 = vmul.f32 %v1449, %v1471
  %v1476 = vmul.f32 %v1451, %v1471
  %v1477 = vmul.f32 %v1453, %v1471
  %v1478 = vmul.f32 %v1455, %v1471
  %v1479 = vmul.f32 %v1457, %v1471
  %v1480 = vmax.f32 %v1413, %v1417
  %v1481 = vmax.f32 %v1414, %v1418
  %v1482 = vmax.f32 %v1415, %v1419
  %v1483 = vmax.f32 %v1416, %v1420
  %v1484 = vmax.f32 %v1480, %v1481
  %v1485 = vmax.f32 %v1482, %v1483
  %v1486 = vmax.f32 %v1484, %v1485
  %v1487 = vrot.slane %v1486, 4
  %v1488 = vmax.f32 %v1486, %v1487
  %v1489 = vrot.slane %v1488, 2
  %v1490 = vmax.f32 %v1488, %v1489
  %v1491 = vrot.slane %v1490, 1
  %v1492 = vmax.f32 %v1490, %v1491
  %v1493 = vsub.f32 %v1413, %v1492
  %v1494 = vsub.f32 %v1414, %v1492
  %v1495 = vsub.f32 %v1415, %v1492
  %v1496 = vsub.f32 %v1416, %v1492
  %v1497 = vsub.f32 %v1417, %v1492
  %v1498 = vsub.f32 %v1418, %v1492
  %v1499 = vsub.f32 %v1419, %v1492
  %v1500 = vsub.f32 %v1420, %v1492
  %v1501 = vmul.f32 %v1493, 1.442695
  %v1502 = vpow.pop %v1501
  %v1503 = vmul.f32 %v1494, 1.442695
  %v1504 = vpow.pop %v1503
  %v1505 = vmul.f32 %v1495, 1.442695
  %v1506 = vpow.pop %v1505
  %v1507 = vmul.f32 %v1496, 1.442695
  %v1508 = vpow.pop %v1507
  %v1509 = vmul.f32 %v1497, 1.442695
  %v1510 = vpow.pop %v1509
  %v1511 = vmul.f32 %v1498, 1.442695
  %v1512 = vpow.pop %v1511
  %v1513 = vmul.f32 %v1499, 1.442695
  %v1514 = vpow.pop %v1513
  %v1515 = vmul.f32 %v1500, 1.442695
  %v1516 = vpow.pop %v1515
  %v1517 = vadd.f32 %v1502, %v1504
  %v1518 = vadd.f32 %v1517, %v1506
  %v1519 = vadd.f32 %v1518, %v1508
  %v1520 = vadd.f32 %v1519, %v1510
  %v1521 = vadd.f32 %v1520, %v1512
  %v1522 = vadd.f32 %v1521, %v1514
  %v1523 = vadd.f32 %v1522, %v1516
  %v1524 = vrot.slane %v1523, 4
  %v1525 = vadd.f32 %v1523, %v1524
  %v1526 = vrot.slane %v1525, 2
  %v1527 = vadd.f32 %v1525, %v1526
  %v1528 = vrot.slane %v1527, 1
  %v1529 = vadd.f32 %v1527, %v1528
  %v1530 = vrcp.pop %v1529
  %v1531 = vmul.f32 %v1502, %v1530
  %v1532 = vmul.f32 %v1504, %v1530
  %v1533 = vmul.f32 %v1506, %v1530
  %v1534 = vmul.f32 %v1508, %v1530
  %v1535 = vmul.f32 %v1510, %v1530
  %v1536 = vmul.f32 %v1512, %v1530
  %v1537 = vmul.f32 %v1514, %v1530
  %v1538 = vmul.f32 %v1516, %v1530
  %v1539 = vld [vmem:[%s5] sm:$0xff]
  %v1540 = vld [vmem:[%s5 + $0x8] sm:$0xff]
  %v1541 = vld [vmem:[%s5 + $0x10] sm:$0xff]
  %v1542 = vld [vmem:[%s5 + $0x18] sm:$0xff]
  %v1543 = vld [vmem:[%s5 + $0x20] sm:$0xff]
  %v1544 = vld [vmem:[%s5 + $0x28] sm:$0xff]
  %v1545 = vld [vmem:[%s5 + $0x30] sm:$0xff]
  %v1546 = vld [vmem:[%s5 + $0x38] sm:$0xff]
  %v1547 = vld [vmem:[%s5 + $0x40] sm:$0xff]
  %v1548 = vld [vmem:[%s5 + $0x48] sm:$0xff]
  %v1549 = vld [vmem:[%s5 + $0x50] sm:$0xff]
  %v1550 = vld [vmem:[%s5 + $0x58] sm:$0xff]
  %v1551 = vld [vmem:[%s5 + $0x60] sm:$0xff]
  %v1552 = vld [vmem:[%s5 + $0x68] sm:$0xff]
  %v1553 = vld [vmem:[%s5 + $0x70] sm:$0xff]
  %v1554 = vld [vmem:[%s5 + $0x78] sm:$0xff]
  %v1555 = vld [vmem:[%s5 + $0x80] sm:$0xff]
  %v1556 = vld [vmem:[%s5 + $0x88] sm:$0xff]
  %v1557 = vld [vmem:[%s5 + $0x90] sm:$0xff]
  %v1558 = vld [vmem:[%s5 + $0x98] sm:$0xff]
  %v1559 = vld [vmem:[%s5 + $0xa0] sm:$0xff]
  %v1560 = vld [vmem:[%s5 + $0xa8] sm:$0xff]
  %v1561 = vld [vmem:[%s5 + $0xb0] sm:$0xff]
  %v1562 = vld [vmem:[%s5 + $0xb8] sm:$0xff]
  %v1563 = vld [vmem:[%s5 + $0xc0] sm:$0xff]
  %v1564 = vld [vmem:[%s5 + $0xc8] sm:$0xff]
  %v1565 = vld [vmem:[%s5 + $0xd0] sm:$0xff]
  %v1566 = vld [vmem:[%s5 + $0xd8] sm:$0xff]
  %v1567 = vld [vmem:[%s5 + $0xe0] sm:$0xff]
  %v1568 = vld [vmem:[%s5 + $0xe8] sm:$0xff]
  %v1569 = vld [vmem:[%s5 + $0xf0] sm:$0xff]
  %v1570 = vld [vmem:[%s5 + $0xf8] sm:$0xff]
  %v1571 = vld [vmem:[%s6] sm:$0x3]
  %v1573 = vlaneseq
  %v1574 = vshrl.u32 %v1573, 7
  %v1575 = vsub.s32 0, %v1574
  %v1576 = vrot.slane %v1571, %v1575
  %v1577 = vlaneseq
  %v1578 = vshrl.u32 %v1577, 7
  %v1579 = vsub.s32 1, %v1578
  %v1580 = vrot.slane %v1571, %v1579
  %v1615 = vunpack.c.l.b16 %v1539
  %v1616 = vunpack.c.h.b16 %v1539
  %v1617 = vunpack.c.l.b16 %v1540
  %v1618 = vunpack.c.h.b16 %v1540
  %v1619 = vunpack.c.l.b16 %v1541
  %v1620 = vunpack.c.h.b16 %v1541
  %v1621 = vunpack.c.l.b16 %v1542
  %v1622 = vunpack.c.h.b16 %v1542
  %v1623 = vunpack.c.l.b16 %v1543
  %v1624 = vunpack.c.h.b16 %v1543
  %v1625 = vunpack.c.l.b16 %v1544
  %v1626 = vunpack.c.h.b16 %v1544
  %v1627 = vunpack.c.l.b16 %v1545
  %v1628 = vunpack.c.h.b16 %v1545
  %v1629 = vunpack.c.l.b16 %v1546
  %v1630 = vunpack.c.h.b16 %v1546
  %v1631 = vunpack.c.l.b16 %v1547
  %v1632 = vunpack.c.h.b16 %v1547
  %v1633 = vunpack.c.l.b16 %v1548
  %v1634 = vunpack.c.h.b16 %v1548
  %v1635 = vunpack.c.l.b16 %v1549
  %v1636 = vunpack.c.h.b16 %v1549
  %v1637 = vunpack.c.l.b16 %v1550
  %v1638 = vunpack.c.h.b16 %v1550
  %v1639 = vunpack.c.l.b16 %v1551
  %v1640 = vunpack.c.h.b16 %v1551
  %v1641 = vunpack.c.l.b16 %v1552
  %v1642 = vunpack.c.h.b16 %v1552
  %v1643 = vunpack.c.l.b16 %v1553
  %v1644 = vunpack.c.h.b16 %v1553
  %v1645 = vunpack.c.l.b16 %v1554
  %v1646 = vunpack.c.h.b16 %v1554
  %v1647 = vunpack.c.l.b16 %v1555
  %v1648 = vunpack.c.h.b16 %v1555
  %v1649 = vunpack.c.l.b16 %v1556
  %v1650 = vunpack.c.h.b16 %v1556
  %v1651 = vunpack.c.l.b16 %v1557
  %v1652 = vunpack.c.h.b16 %v1557
  %v1653 = vunpack.c.l.b16 %v1558
  %v1654 = vunpack.c.h.b16 %v1558
  %v1655 = vunpack.c.l.b16 %v1559
  %v1656 = vunpack.c.h.b16 %v1559
  %v1657 = vunpack.c.l.b16 %v1560
  %v1658 = vunpack.c.h.b16 %v1560
  %v1659 = vunpack.c.l.b16 %v1561
  %v1660 = vunpack.c.h.b16 %v1561
  %v1661 = vunpack.c.l.b16 %v1562
  %v1662 = vunpack.c.h.b16 %v1562
  %v1663 = vunpack.c.l.b16 %v1563
  %v1664 = vunpack.c.h.b16 %v1563
  %v1665 = vunpack.c.l.b16 %v1564
  %v1666 = vunpack.c.h.b16 %v1564
  %v1667 = vunpack.c.l.b16 %v1565
  %v1668 = vunpack.c.h.b16 %v1565
  %v1669 = vunpack.c.l.b16 %v1566
  %v1670 = vunpack.c.h.b16 %v1566
  %v1671 = vunpack.c.l.b16 %v1567
  %v1672 = vunpack.c.h.b16 %v1567
  %v1673 = vunpack.c.l.b16 %v1568
  %v1674 = vunpack.c.h.b16 %v1568
  %v1675 = vunpack.c.l.b16 %v1569
  %v1676 = vunpack.c.h.b16 %v1569
  %v1677 = vunpack.c.l.b16 %v1570
  %v1678 = vunpack.c.h.b16 %v1570
  %v1679 = vpack.c.b16 %v1617, %v1615
  %v1680 = vpack.c.b16 %v1618, %v1616
  %v1681 = vpack.c.b16 %v1621, %v1619
  %v1682 = vpack.c.b16 %v1622, %v1620
  %v1683 = vpack.c.b16 %v1625, %v1623
  %v1684 = vpack.c.b16 %v1626, %v1624
  %v1685 = vpack.c.b16 %v1629, %v1627
  %v1686 = vpack.c.b16 %v1630, %v1628
  %v1687 = vpack.c.b16 %v1633, %v1631
  %v1688 = vpack.c.b16 %v1634, %v1632
  %v1689 = vpack.c.b16 %v1637, %v1635
  %v1690 = vpack.c.b16 %v1638, %v1636
  %v1691 = vpack.c.b16 %v1641, %v1639
  %v1692 = vpack.c.b16 %v1642, %v1640
  %v1693 = vpack.c.b16 %v1645, %v1643
  %v1694 = vpack.c.b16 %v1646, %v1644
  %v1695 = vpack.c.b16 %v1649, %v1647
  %v1696 = vpack.c.b16 %v1650, %v1648
  %v1697 = vpack.c.b16 %v1653, %v1651
  %v1698 = vpack.c.b16 %v1654, %v1652
  %v1699 = vpack.c.b16 %v1657, %v1655
  %v1700 = vpack.c.b16 %v1658, %v1656
  %v1701 = vpack.c.b16 %v1661, %v1659
  %v1702 = vpack.c.b16 %v1662, %v1660
  %v1703 = vpack.c.b16 %v1665, %v1663
  %v1704 = vpack.c.b16 %v1666, %v1664
  %v1705 = vpack.c.b16 %v1669, %v1667
  %v1706 = vpack.c.b16 %v1670, %v1668
  %v1707 = vpack.c.b16 %v1673, %v1671
  %v1708 = vpack.c.b16 %v1674, %v1672
  %v1709 = vpack.c.b16 %v1677, %v1675
  %v1710 = vpack.c.b16 %v1678, %v1676
  %1743 = vmatprep.subr.bf16.mxu0 %v1680
  %1744 = vmatpush1.bf16.msra.mxu0 %v1679
  %1745 = vmatprep.subr.bf16.mxu0 %v1682
  %1746 = vmatpush1.bf16.msra.mxu0 %v1681
  %1747 = vmatprep.subr.bf16.mxu0 %v1684
  %1748 = vmatpush1.bf16.msra.mxu0 %v1683
  %1749 = vmatprep.subr.bf16.mxu0 %v1686
  %1750 = vmatpush1.bf16.msra.mxu0 %v1685
  %1751 = vmatprep.subr.bf16.mxu0 %v1688
  %1752 = vmatpush1.bf16.msra.mxu0 %v1687
  %1753 = vmatprep.subr.bf16.mxu0 %v1690
  %1754 = vmatpush1.bf16.msra.mxu0 %v1689
  %1755 = vmatprep.subr.bf16.mxu0 %v1692
  %1756 = vmatpush1.bf16.msra.mxu0 %v1691
  %1757 = vmatprep.subr.bf16.mxu0 %v1694
  %1758 = vmatpush1.bf16.msra.mxu0 %v1693
  %1759 = vmatprep.subr.bf16.mxu0 %v1696
  %1760 = vmatpush1.bf16.msra.mxu0 %v1695
  %1761 = vmatprep.subr.bf16.mxu0 %v1698
  %1762 = vmatpush1.bf16.msra.mxu0 %v1697
  %1763 = vmatprep.subr.bf16.mxu0 %v1700
  %1764 = vmatpush1.bf16.msra.mxu0 %v1699
  %1765 = vmatprep.subr.bf16.mxu0 %v1702
  %1766 = vmatpush1.bf16.msra.mxu0 %v1701
  %1767 = vmatprep.subr.bf16.mxu0 %v1704
  %1768 = vmatpush1.bf16.msra.mxu0 %v1703
  %1769 = vmatprep.subr.bf16.mxu0 %v1706
  %1770 = vmatpush1.bf16.msra.mxu0 %v1705
  %1771 = vmatprep.subr.bf16.mxu0 %v1708
  %1772 = vmatpush1.bf16.msra.mxu0 %v1707
  %1773 = vmatprep.subr.bf16.mxu0 %v1710
  %1774 = vmatpush1.bf16.msra.mxu0 %v1709
  %1775 = vmatprep.mubr.bf16.mxu0 %v543
  %1776 = vmatmul.mubr.bf16.gmra.mrb[0].mxu0 %v542
  %v1777 = vpop.f32.mrb[0].mxu0
  %v1778 = vadd.f32 %v1576, %v1777
  %v1779 = vpop.f32.mrb[0].mxu0
  %v1780 = vadd.f32 %v1580, %v1779
  %v1781 = vpop.f32.mrb[0].mxu0
  %v1782 = vadd.f32 %v1576, %v1781
  %v1783 = vpop.f32.mrb[0].mxu0
  %v1784 = vadd.f32 %v1580, %v1783
  %1785 = vmatprep.mubr.bf16.mxu0 %v545
  %1786 = vmatmul.mubr.bf16.gmra.mrb[0].mxu0 %v544
  %v1787 = vpop.f32.mrb[0].mxu0
  %v1788 = vadd.f32 %v1576, %v1787
  %v1789 = vpop.f32.mrb[0].mxu0
  %v1790 = vadd.f32 %v1580, %v1789
  %v1791 = vpop.f32.mrb[0].mxu0
  %v1792 = vadd.f32 %v1576, %v1791
  %v1793 = vpop.f32.mrb[0].mxu0
  %v1794 = vadd.f32 %v1580, %v1793
  %1795 = vmatprep.mubr.bf16.mxu0 %v547
  %1796 = vmatmul.mubr.bf16.gmra.mrb[0].mxu0 %v546
  %v1797 = vpop.f32.mrb[0].mxu0
  %v1798 = vadd.f32 %v1576, %v1797
  %v1799 = vpop.f32.mrb[0].mxu0
  %v1800 = vadd.f32 %v1580, %v1799
  %v1801 = vpop.f32.mrb[0].mxu0
  %v1802 = vadd.f32 %v1576, %v1801
  %v1803 = vpop.f32.mrb[0].mxu0
  %v1804 = vadd.f32 %v1580, %v1803
  %1805 = vmatprep.mubr.bf16.mxu0 %v549
  %1806 = vmatmul.mubr.bf16.gmra.mrb[0].mxu0 %v548
  %v1807 = vpop.f32.mrb[0].mxu0
  %v1808 = vadd.f32 %v1576, %v1807
  %v1809 = vpop.f32.mrb[0].mxu0
  %v1810 = vadd.f32 %v1580, %v1809
  %v1811 = vpop.f32.mrb[0].mxu0
  %v1812 = vadd.f32 %v1576, %v1811
  %v1813 = vpop.f32.mrb[0].mxu0
  %v1814 = vadd.f32 %v1580, %v1813
  %1815 = vmatprep.mubr.bf16.mxu0 %v551
  %1816 = vmatmul.mubr.bf16.gmra.mrb[0].mxu0 %v550
  %v1817 = vpop.f32.mrb[0].mxu0
  %v1818 = vadd.f32 %v1576, %v1817
  %v1819 = vpop.f32.mrb[0].mxu0
  %v1820 = vadd.f32 %v1580, %v1819
  %v1821 = vpop.f32.mrb[0].mxu0
  %v1822 = vadd.f32 %v1576, %v1821
  %v1823 = vpop.f32.mrb[0].mxu0
  %v1824 = vadd.f32 %v1580, %v1823
  %1825 = vmatprep.mubr.bf16.mxu0 %v553
  %1826 = vmatmul.mubr.bf16.gmra.mrb[0].mxu0 %v552
  %v1827 = vpop.f32.mrb[0].mxu0
  %v1828 = vadd.f32 %v1576, %v1827
  %v1829 = vpop.f32.mrb[0].mxu0
  %v1830 = vadd.f32 %v1580, %v1829
  %v1831 = vpop.f32.mrb[0].mxu0
  %v1832 = vadd.f32 %v1576, %v1831
  %v1833 = vpop.f32.mrb[0].mxu0
  %v1834 = vadd.f32 %v1580, %v1833
  %1835 = vmatprep.mubr.bf16.mxu0 %v555
  %1836 = vmatmul.mubr.bf16.gmra.mrb[0].mxu0 %v554
  %v1837 = vpop.f32.mrb[0].mxu0
  %v1838 = vadd.f32 %v1576, %v1837
  %v1839 = vpop.f32.mrb[0].mxu0
  %v1840 = vadd.f32 %v1580, %v1839
  %v1841 = vpop.f32.mrb[0].mxu0
  %v1842 = vadd.f32 %v1576, %v1841
  %v1843 = vpop.f32.mrb[0].mxu0
  %v1844 = vadd.f32 %v1580, %v1843
  %1845 = vmatprep.mubr.bf16.mxu0 %v557
  %1846 = vmatmul.mubr.bf16.gmra.mrb[0].mxu0 %v556
  %v1847 = vpop.f32.mrb[0].mxu0
  %v1848 = vadd.f32 %v1576, %v1847
  %v1849 = vpop.f32.mrb[0].mxu0
  %v1850 = vadd.f32 %v1580, %v1849
  %v1851 = vpop.f32.mrb[0].mxu0
  %v1852 = vadd.f32 %v1576, %v1851
  %v1853 = vpop.f32.mrb[0].mxu0
  %v1854 = vadd.f32 %v1580, %v1853
  %1855 = vdwg.mxu0
  %1857 = vset.pattern.permute.xlu0 0
  %1858 = vperm.xlu0 %1857, %v1472
  %v1859 = vpop.permute.xlu0 %1858
  %1862 = vset.pattern.permute.xlu0 0
  %1863 = vperm.xlu0 %1862, %v1473
  %v1864 = vpop.permute.xlu0 %1863
  %1867 = vset.pattern.permute.xlu0 0
  %1868 = vperm.xlu0 %1867, %v1474
  %v1869 = vpop.permute.xlu0 %1868
  %1872 = vset.pattern.permute.xlu0 0
  %1873 = vperm.xlu0 %1872, %v1475
  %v1874 = vpop.permute.xlu0 %1873
  %1877 = vset.pattern.permute.xlu0 0
  %1878 = vperm.xlu0 %1877, %v1476
  %v1879 = vpop.permute.xlu0 %1878
  %1882 = vset.pattern.permute.xlu0 0
  %1883 = vperm.xlu0 %1882, %v1477
  %v1884 = vpop.permute.xlu0 %1883
  %1887 = vset.pattern.permute.xlu0 0
  %1888 = vperm.xlu0 %1887, %v1478
  %v1889 = vpop.permute.xlu0 %1888
  %1892 = vset.pattern.permute.xlu0 0
  %1893 = vperm.xlu0 %1892, %v1479
  %v1894 = vpop.permute.xlu0 %1893
  %1897 = vset.pattern.permute.xlu0 0
  %1898 = vperm.xlu0 %1897, %v1531
  %v1899 = vpop.permute.xlu0 %1898
  %1902 = vset.pattern.permute.xlu0 0
  %1903 = vperm.xlu0 %1902, %v1532
  %v1904 = vpop.permute.xlu0 %1903
  %1907 = vset.pattern.permute.xlu0 0
  %1908 = vperm.xlu0 %1907, %v1533
  %v1909 = vpop.permute.xlu0 %1908
  %1912 = vset.pattern.permute.xlu0 0
  %1913 = vperm.xlu0 %1912, %v1534
  %v1914 = vpop.permute.xlu0 %1913
  %1917 = vset.pattern.permute.xlu0 0
  %1918 = vperm.xlu0 %1917, %v1535
  %v1919 = vpop.permute.xlu0 %1918
  %1922 = vset.pattern.permute.xlu0 0
  %1923 = vperm.xlu0 %1922, %v1536
  %v1924 = vpop.permute.xlu0 %1923
  %1927 = vset.pattern.permute.xlu0 0
  %1928 = vperm.xlu0 %1927, %v1537
  %v1929 = vpop.permute.xlu0 %1928
  %1932 = vset.pattern.permute.xlu0 0
  %1933 = vperm.xlu0 %1932, %v1538
  %v1934 = vpop.permute.xlu0 %1933
  %v1936 = vmul.f32 %v1859, %v1778
  %v1937 = vmul.f32 %v1859, %v1780
  %v1938 = vmul.f32 %v1864, %v1782
  %v1939 = vmul.f32 %v1864, %v1784
  %v1940 = vmul.f32 %v1869, %v1788
  %v1941 = vmul.f32 %v1869, %v1790
  %v1942 = vmul.f32 %v1874, %v1792
  %v1943 = vmul.f32 %v1874, %v1794
  %v1944 = vmul.f32 %v1879, %v1798
  %v1945 = vmul.f32 %v1879, %v1800
  %v1946 = vmul.f32 %v1884, %v1802
  %v1947 = vmul.f32 %v1884, %v1804
  %v1948 = vmul.f32 %v1889, %v1808
  %v1949 = vmul.f32 %v1889, %v1810
  %v1950 = vmul.f32 %v1894, %v1812
  %v1951 = vmul.f32 %v1894, %v1814
  %v1952 = vmul.f32 %v1899, %v1818
  %v1953 = vmul.f32 %v1899, %v1820
  %v1954 = vmul.f32 %v1904, %v1822
  %v1955 = vmul.f32 %v1904, %v1824
  %v1956 = vmul.f32 %v1909, %v1828
  %v1957 = vmul.f32 %v1909, %v1830
  %v1958 = vmul.f32 %v1914, %v1832
  %v1959 = vmul.f32 %v1914, %v1834
  %v1960 = vmul.f32 %v1919, %v1838
  %v1961 = vmul.f32 %v1919, %v1840
  %v1962 = vmul.f32 %v1924, %v1842
  %v1963 = vmul.f32 %v1924, %v1844
  %v1964 = vmul.f32 %v1929, %v1848
  %v1965 = vmul.f32 %v1929, %v1850
  %v1966 = vmul.f32 %v1934, %v1852
  %v1967 = vmul.f32 %v1934, %v1854
  %v1968 = vpack.c.bf16 %v1938, %v1936
  %v1969 = vpack.c.bf16 %v1939, %v1937
  %v1970 = vpack.c.bf16 %v1942, %v1940
  %v1971 = vpack.c.bf16 %v1943, %v1941
  %v1972 = vpack.c.bf16 %v1946, %v1944
  %v1973 = vpack.c.bf16 %v1947, %v1945
  %v1974 = vpack.c.bf16 %v1950, %v1948
  %v1975 = vpack.c.bf16 %v1951, %v1949
  %v1976 = vpack.c.bf16 %v1954, %v1952
  %v1977 = vpack.c.bf16 %v1955, %v1953
  %v1978 = vpack.c.bf16 %v1958, %v1956
  %v1979 = vpack.c.bf16 %v1959, %v1957
  %v1980 = vpack.c.bf16 %v1962, %v1960
  %v1981 = vpack.c.bf16 %v1963, %v1961
  %v1982 = vpack.c.bf16 %v1966, %v1964
  %v1983 = vpack.c.bf16 %v1967, %v1965
  %v1984 = vld [vmem:[%s7] sm:$0xff]
  %v1985 = vld [vmem:[%s7 + $0x8] sm:$0xf]
  %v1986 = vld [vmem:[%s7 + $0xc] sm:$0xff]
  %v1987 = vld [vmem:[%s7 + $0x14] sm:$0xf]
  %v1988 = vld [vmem:[%s7 + $0x18] sm:$0xff]
  %v1989 = vld [vmem:[%s7 + $0x20] sm:$0xf]
  %v1990 = vld [vmem:[%s7 + $0x24] sm:$0xff]
  %v1991 = vld [vmem:[%s7 + $0x2c] sm:$0xf]
  %v1992 = vld [vmem:[%s7 + $0x30] sm:$0xff]
  %v1993 = vld [vmem:[%s7 + $0x38] sm:$0xf]
  %v1994 = vld [vmem:[%s7 + $0x3c] sm:$0xff]
  %v1995 = vld [vmem:[%s7 + $0x44] sm:$0xf]
  %v1996 = vld [vmem:[%s7 + $0x48] sm:$0xff]
  %v1997 = vld [vmem:[%s7 + $0x50] sm:$0xf]
  %v1998 = vld [vmem:[%s7 + $0x54] sm:$0xff]
  %v1999 = vld [vmem:[%s7 + $0x5c] sm:$0xf]
  %v2000 = vld [vmem:[%s7 + $0x60] sm:$0xff]
  %v2001 = vld [vmem:[%s7 + $0x68] sm:$0xf]
  %v2002 = vld [vmem:[%s7 + $0x6c] sm:$0xff]
  %v2003 = vld [vmem:[%s7 + $0x74] sm:$0xf]
  %v2004 = vld [vmem:[%s7 + $0x78] sm:$0xff]
  %v2005 = vld [vmem:[%s7 + $0x80] sm:$0xf]
  %v2006 = vld [vmem:[%s7 + $0x84] sm:$0xff]
  %v2007 = vld [vmem:[%s7 + $0x8c] sm:$0xf]
  %v2008 = vld [vmem:[%s7 + $0x90] sm:$0xff]
  %v2009 = vld [vmem:[%s7 + $0x98] sm:$0xf]
  %v2010 = vld [vmem:[%s7 + $0x9c] sm:$0xff]
  %v2011 = vld [vmem:[%s7 + $0xa4] sm:$0xf]
  %v2012 = vld [vmem:[%s7 + $0xa8] sm:$0xff]
  %v2013 = vld [vmem:[%s7 + $0xb0] sm:$0xf]
  %v2014 = vld [vmem:[%s7 + $0xb4] sm:$0xff]
  %v2015 = vld [vmem:[%s7 + $0xbc] sm:$0xf]
  %v2016 = vld [vmem:[%s7 + $0xc0] sm:$0xff]
  %v2017 = vld [vmem:[%s7 + $0xc8] sm:$0xf]
  %v2018 = vld [vmem:[%s7 + $0xcc] sm:$0xff]
  %v2019 = vld [vmem:[%s7 + $0xd4] sm:$0xf]
  %v2020 = vld [vmem:[%s7 + $0xd8] sm:$0xff]
  %v2021 = vld [vmem:[%s7 + $0xe0] sm:$0xf]
  %v2022 = vld [vmem:[%s7 + $0xe4] sm:$0xff]
  %v2023 = vld [vmem:[%s7 + $0xec] sm:$0xf]
  %v2024 = vld [vmem:[%s7 + $0xf0] sm:$0xff]
  %v2025 = vld [vmem:[%s7 + $0xf8] sm:$0xf]
  %v2026 = vld [vmem:[%s7 + $0xfc] sm:$0xff]
  %v2027 = vld [vmem:[%s7 + $0x104] sm:$0xf]
  %v2028 = vld [vmem:[%s7 + $0x108] sm:$0xff]
  %v2029 = vld [vmem:[%s7 + $0x110] sm:$0xf]
  %v2030 = vld [vmem:[%s7 + $0x114] sm:$0xff]
  %v2031 = vld [vmem:[%s7 + $0x11c] sm:$0xf]
  %v2032 = vld [vmem:[%s7 + $0x120] sm:$0xff]
  %v2033 = vld [vmem:[%s7 + $0x128] sm:$0xf]
  %v2034 = vld [vmem:[%s7 + $0x12c] sm:$0xff]
  %v2035 = vld [vmem:[%s7 + $0x134] sm:$0xf]
  %v2036 = vld [vmem:[%s7 + $0x138] sm:$0xff]
  %v2037 = vld [vmem:[%s7 + $0x140] sm:$0xf]
  %v2038 = vld [vmem:[%s7 + $0x144] sm:$0xff]
  %v2039 = vld [vmem:[%s7 + $0x14c] sm:$0xf]
  %v2040 = vld [vmem:[%s7 + $0x150] sm:$0xff]
  %v2041 = vld [vmem:[%s7 + $0x158] sm:$0xf]
  %v2042 = vld [vmem:[%s7 + $0x15c] sm:$0xff]
  %v2043 = vld [vmem:[%s7 + $0x164] sm:$0xf]
  %v2044 = vld [vmem:[%s7 + $0x168] sm:$0xff]
  %v2045 = vld [vmem:[%s7 + $0x170] sm:$0xf]
  %v2046 = vld [vmem:[%s7 + $0x174] sm:$0xff]
  %v2047 = vld [vmem:[%s7 + $0x17c] sm:$0xf]
  %v2048 = vld [vmem:[%s7 + $0x180] sm:$0xff]
  %v2049 = vld [vmem:[%s7 + $0x188] sm:$0xf]
  %v2050 = vld [vmem:[%s7 + $0x18c] sm:$0xff]
  %v2051 = vld [vmem:[%s7 + $0x194] sm:$0xf]
  %v2052 = vld [vmem:[%s7 + $0x198] sm:$0xff]
  %v2053 = vld [vmem:[%s7 + $0x1a0] sm:$0xf]
  %v2054 = vld [vmem:[%s7 + $0x1a4] sm:$0xff]
  %v2055 = vld [vmem:[%s7 + $0x1ac] sm:$0xf]
  %v2056 = vld [vmem:[%s7 + $0x1b0] sm:$0xff]
  %v2057 = vld [vmem:[%s7 + $0x1b8] sm:$0xf]
  %v2058 = vld [vmem:[%s7 + $0x1bc] sm:$0xff]
  %v2059 = vld [vmem:[%s7 + $0x1c4] sm:$0xf]
  %v2060 = vld [vmem:[%s7 + $0x1c8] sm:$0xff]
  %v2061 = vld [vmem:[%s7 + $0x1d0] sm:$0xf]
  %v2062 = vld [vmem:[%s7 + $0x1d4] sm:$0xff]
  %v2063 = vld [vmem:[%s7 + $0x1dc] sm:$0xf]
  %v2064 = vld [vmem:[%s7 + $0x1e0] sm:$0xff]
  %v2065 = vld [vmem:[%s7 + $0x1e8] sm:$0xf]
  %v2066 = vld [vmem:[%s7 + $0x1ec] sm:$0xff]
  %v2067 = vld [vmem:[%s7 + $0x1f4] sm:$0xf]
  %v2068 = vld [vmem:[%s7 + $0x1f8] sm:$0xff]
  %v2069 = vld [vmem:[%s7 + $0x200] sm:$0xf]
  %v2070 = vld [vmem:[%s7 + $0x204] sm:$0xff]
  %v2071 = vld [vmem:[%s7 + $0x20c] sm:$0xf]
  %v2072 = vld [vmem:[%s7 + $0x210] sm:$0xff]
  %v2073 = vld [vmem:[%s7 + $0x218] sm:$0xf]
  %v2074 = vld [vmem:[%s7 + $0x21c] sm:$0xff]
  %v2075 = vld [vmem:[%s7 + $0x224] sm:$0xf]
  %v2076 = vld [vmem:[%s7 + $0x228] sm:$0xff]
  %v2077 = vld [vmem:[%s7 + $0x230] sm:$0xf]
  %v2078 = vld [vmem:[%s7 + $0x234] sm:$0xff]
  %v2079 = vld [vmem:[%s7 + $0x23c] sm:$0xf]
  %v2080 = vld [vmem:[%s8] sm:$0xff]
  %v2081 = vld [vmem:[%s8 + $0x8] sm:$0xf]
  %v2082 = vld [vmem:[%s8 + $0xc] sm:$0xff]
  %v2083 = vld [vmem:[%s8 + $0x14] sm:$0xf]
  %v2084 = vld [vmem:[%s8 + $0x18] sm:$0xff]
  %v2085 = vld [vmem:[%s8 + $0x20] sm:$0xf]
  %v2086 = vld [vmem:[%s8 + $0x24] sm:$0xff]
  %v2087 = vld [vmem:[%s8 + $0x2c] sm:$0xf]
  %v2088 = vld [vmem:[%s8 + $0x30] sm:$0xff]
  %v2089 = vld [vmem:[%s8 + $0x38] sm:$0xf]
  %v2090 = vld [vmem:[%s8 + $0x3c] sm:$0xff]
  %v2091 = vld [vmem:[%s8 + $0x44] sm:$0xf]
  %v2092 = vld [vmem:[%s8 + $0x48] sm:$0xff]
  %v2093 = vld [vmem:[%s8 + $0x50] sm:$0xf]
  %v2094 = vld [vmem:[%s8 + $0x54] sm:$0xff]
  %v2095 = vld [vmem:[%s8 + $0x5c] sm:$0xf]
  %v2096 = vld [vmem:[%s8 + $0x60] sm:$0xff]
  %v2097 = vld [vmem:[%s8 + $0x68] sm:$0xf]
  %v2098 = vld [vmem:[%s8 + $0x6c] sm:$0xff]
  %v2099 = vld [vmem:[%s8 + $0x74] sm:$0xf]
  %v2100 = vld [vmem:[%s8 + $0x78] sm:$0xff]
  %v2101 = vld [vmem:[%s8 + $0x80] sm:$0xf]
  %v2102 = vld [vmem:[%s8 + $0x84] sm:$0xff]
  %v2103 = vld [vmem:[%s8 + $0x8c] sm:$0xf]
  %v2104 = vld [vmem:[%s8 + $0x90] sm:$0xff]
  %v2105 = vld [vmem:[%s8 + $0x98] sm:$0xf]
  %v2106 = vld [vmem:[%s8 + $0x9c] sm:$0xff]
  %v2107 = vld [vmem:[%s8 + $0xa4] sm:$0xf]
  %v2108 = vld [vmem:[%s8 + $0xa8] sm:$0xff]
  %v2109 = vld [vmem:[%s8 + $0xb0] sm:$0xf]
  %v2110 = vld [vmem:[%s8 + $0xb4] sm:$0xff]
  %v2111 = vld [vmem:[%s8 + $0xbc] sm:$0xf]
  %v2112 = vld [vmem:[%s8 + $0xc0] sm:$0xff]
  %v2113 = vld [vmem:[%s8 + $0xc8] sm:$0xf]
  %v2114 = vld [vmem:[%s8 + $0xcc] sm:$0xff]
  %v2115 = vld [vmem:[%s8 + $0xd4] sm:$0xf]
  %v2116 = vld [vmem:[%s8 + $0xd8] sm:$0xff]
  %v2117 = vld [vmem:[%s8 + $0xe0] sm:$0xf]
  %v2118 = vld [vmem:[%s8 + $0xe4] sm:$0xff]
  %v2119 = vld [vmem:[%s8 + $0xec] sm:$0xf]
  %v2120 = vld [vmem:[%s8 + $0xf0] sm:$0xff]
  %v2121 = vld [vmem:[%s8 + $0xf8] sm:$0xf]
  %v2122 = vld [vmem:[%s8 + $0xfc] sm:$0xff]
  %v2123 = vld [vmem:[%s8 + $0x104] sm:$0xf]
  %v2124 = vld [vmem:[%s8 + $0x108] sm:$0xff]
  %v2125 = vld [vmem:[%s8 + $0x110] sm:$0xf]
  %v2126 = vld [vmem:[%s8 + $0x114] sm:$0xff]
  %v2127 = vld [vmem:[%s8 + $0x11c] sm:$0xf]
  %v2128 = vld [vmem:[%s8 + $0x120] sm:$0xff]
  %v2129 = vld [vmem:[%s8 + $0x128] sm:$0xf]
  %v2130 = vld [vmem:[%s8 + $0x12c] sm:$0xff]
  %v2131 = vld [vmem:[%s8 + $0x134] sm:$0xf]
  %v2132 = vld [vmem:[%s8 + $0x138] sm:$0xff]
  %v2133 = vld [vmem:[%s8 + $0x140] sm:$0xf]
  %v2134 = vld [vmem:[%s8 + $0x144] sm:$0xff]
  %v2135 = vld [vmem:[%s8 + $0x14c] sm:$0xf]
  %v2136 = vld [vmem:[%s8 + $0x150] sm:$0xff]
  %v2137 = vld [vmem:[%s8 + $0x158] sm:$0xf]
  %v2138 = vld [vmem:[%s8 + $0x15c] sm:$0xff]
  %v2139 = vld [vmem:[%s8 + $0x164] sm:$0xf]
  %v2140 = vld [vmem:[%s8 + $0x168] sm:$0xff]
  %v2141 = vld [vmem:[%s8 + $0x170] sm:$0xf]
  %v2142 = vld [vmem:[%s8 + $0x174] sm:$0xff]
  %v2143 = vld [vmem:[%s8 + $0x17c] sm:$0xf]
  %v2208 = vunpack.c.l.b16 %v2080
  %v2209 = vunpack.c.h.b16 %v2080
  %v2210 = vunpack.c.l.b16 %v2081
  %v2211 = vunpack.c.l.b16 %v2082
  %v2212 = vunpack.c.h.b16 %v2082
  %v2213 = vunpack.c.l.b16 %v2083
  %v2214 = vunpack.c.l.b16 %v2084
  %v2215 = vunpack.c.h.b16 %v2084
  %v2216 = vunpack.c.l.b16 %v2085
  %v2217 = vunpack.c.l.b16 %v2086
  %v2218 = vunpack.c.h.b16 %v2086
  %v2219 = vunpack.c.l.b16 %v2087
  %v2220 = vunpack.c.l.b16 %v2088
  %v2221 = vunpack.c.h.b16 %v2088
  %v2222 = vunpack.c.l.b16 %v2089
  %v2223 = vunpack.c.l.b16 %v2090
  %v2224 = vunpack.c.h.b16 %v2090
  %v2225 = vunpack.c.l.b16 %v2091
  %v2226 = vunpack.c.l.b16 %v2092
  %v2227 = vunpack.c.h.b16 %v2092
  %v2228 = vunpack.c.l.b16 %v2093
  %v2229 = vunpack.c.l.b16 %v2094
  %v2230 = vunpack.c.h.b16 %v2094
  %v2231 = vunpack.c.l.b16 %v2095
  %v2232 = vunpack.c.l.b16 %v2096
  %v2233 = vunpack.c.h.b16 %v2096
  %v2234 = vunpack.c.l.b16 %v2097
  %v2235 = vunpack.c.l.b16 %v2098
  %v2236 = vunpack.c.h.b16 %v2098
  %v2237 = vunpack.c.l.b16 %v2099
  %v2238 = vunpack.c.l.b16 %v2100
  %v2239 = vunpack.c.h.b16 %v2100
  %v2240 = vunpack.c.l.b16 %v2101
  %v2241 = vunpack.c.l.b16 %v2102
  %v2242 = vunpack.c.h.b16 %v2102
  %v2243 = vunpack.c.l.b16 %v2103
  %v2244 = vunpack.c.l.b16 %v2104
  %v2245 = vunpack.c.h.b16 %v2104
  %v2246 = vunpack.c.l.b16 %v2105
  %v2247 = vunpack.c.l.b16 %v2106
  %v2248 = vunpack.c.h.b16 %v2106
  %v2249 = vunpack.c.l.b16 %v2107
  %v2250 = vunpack.c.l.b16 %v2108
  %v2251 = vunpack.c.h.b16 %v2108
  %v2252 = vunpack.c.l.b16 %v2109
  %v2253 = vunpack.c.l.b16 %v2110
  %v2254 = vunpack.c.h.b16 %v2110
  %v2255 = vunpack.c.l.b16 %v2111
  %v2256 = vunpack.c.l.b16 %v2112
  %v2257 = vunpack.c.h.b16 %v2112
  %v2258 = vunpack.c.l.b16 %v2113
  %v2259 = vunpack.c.l.b16 %v2114
  %v2260 = vunpack.c.h.b16 %v2114
  %v2261 = vunpack.c.l.b16 %v2115
  %v2262 = vunpack.c.l.b16 %v2116
  %v2263 = vunpack.c.h.b16 %v2116
  %v2264 = vunpack.c.l.b16 %v2117
  %v2265 = vunpack.c.l.b16 %v2118
  %v2266 = vunpack.c.h.b16 %v2118
  %v2267 = vunpack.c.l.b16 %v2119
  %v2268 = vunpack.c.l.b16 %v2120
  %v2269 = vunpack.c.h.b16 %v2120
  %v2270 = vunpack.c.l.b16 %v2121
  %v2271 = vunpack.c.l.b16 %v2122
  %v2272 = vunpack.c.h.b16 %v2122
  %v2273 = vunpack.c.l.b16 %v2123
  %v2274 = vunpack.c.l.b16 %v2124
  %v2275 = vunpack.c.h.b16 %v2124
  %v2276 = vunpack.c.l.b16 %v2125
  %v2277 = vunpack.c.l.b16 %v2126
  %v2278 = vunpack.c.h.b16 %v2126
  %v2279 = vunpack.c.l.b16 %v2127
  %v2280 = vunpack.c.l.b16 %v2128
  %v2281 = vunpack.c.h.b16 %v2128
  %v2282 = vunpack.c.l.b16 %v2129
  %v2283 = vunpack.c.l.b16 %v2130
  %v2284 = vunpack.c.h.b16 %v2130
  %v2285 = vunpack.c.l.b16 %v2131
  %v2286 = vunpack.c.l.b16 %v2132
  %v2287 = vunpack.c.h.b16 %v2132
  %v2288 = vunpack.c.l.b16 %v2133
  %v2289 = vunpack.c.l.b16 %v2134
  %v2290 = vunpack.c.h.b16 %v2134
  %v2291 = vunpack.c.l.b16 %v2135
  %v2292 = vunpack.c.l.b16 %v2136
  %v2293 = vunpack.c.h.b16 %v2136
  %v2294 = vunpack.c.l.b16 %v2137
  %v2295 = vunpack.c.l.b16 %v2138
  %v2296 = vunpack.c.h.b16 %v2138
  %v2297 = vunpack.c.l.b16 %v2139
  %v2298 = vunpack.c.l.b16 %v2140
  %v2299 = vunpack.c.h.b16 %v2140
  %v2300 = vunpack.c.l.b16 %v2141
  %v2301 = vunpack.c.l.b16 %v2142
  %v2302 = vunpack.c.h.b16 %v2142
  %v2303 = vunpack.c.l.b16 %v2143
  %v2304 = vpack.c.b16 %v2211, %v2208
  %v2305 = vpack.c.b16 %v2212, %v2209
  %v2306 = vpack.c.b16 %v2213, %v2210
  %v2307 = vpack.c.b16 %v2217, %v2214
  %v2308 = vpack.c.b16 %v2218, %v2215
  %v2309 = vpack.c.b16 %v2219, %v2216
  %v2310 = vpack.c.b16 %v2223, %v2220
  %v2311 = vpack.c.b16 %v2224, %v2221
  %v2312 = vpack.c.b16 %v2225, %v2222
  %v2313 = vpack.c.b16 %v2229, %v2226
  %v2314 = vpack.c.b16 %v2230, %v2227
  %v2315 = vpack.c.b16 %v2231, %v2228
  %v2316 = vpack.c.b16 %v2235, %v2232
  %v2317 = vpack.c.b16 %v2236, %v2233
  %v2318 = vpack.c.b16 %v2237, %v2234
  %v2319 = vpack.c.b16 %v2241, %v2238
  %v2320 = vpack.c.b16 %v2242, %v2239
  %v2321 = vpack.c.b16 %v2243, %v2240
  %v2322 = vpack.c.b16 %v2247, %v2244
  %v2323 = vpack.c.b16 %v2248, %v2245
  %v2324 = vpack.c.b16 %v2249, %v2246
  %v2325 = vpack.c.b16 %v2253, %v2250
  %v2326 = vpack.c.b16 %v2254, %v2251
  %v2327 = vpack.c.b16 %v2255, %v2252
  %v2328 = vpack.c.b16 %v2259, %v2256
  %v2329 = vpack.c.b16 %v2260, %v2257
  %v2330 = vpack.c.b16 %v2261, %v2258
  %v2331 = vpack.c.b16 %v2265, %v2262
  %v2332 = vpack.c.b16 %v2266, %v2263
  %v2333 = vpack.c.b16 %v2267, %v2264
  %v2334 = vpack.c.b16 %v2271, %v2268
  %v2335 = vpack.c.b16 %v2272, %v2269
  %v2336 = vpack.c.b16 %v2273, %v2270
  %v2337 = vpack.c.b16 %v2277, %v2274
  %v2338 = vpack.c.b16 %v2278, %v2275
  %v2339 = vpack.c.b16 %v2279, %v2276
  %v2340 = vpack.c.b16 %v2283, %v2280
  %v2341 = vpack.c.b16 %v2284, %v2281
  %v2342 = vpack.c.b16 %v2285, %v2282
  %v2343 = vpack.c.b16 %v2289, %v2286
  %v2344 = vpack.c.b16 %v2290, %v2287
  %v2345 = vpack.c.b16 %v2291, %v2288
  %v2346 = vpack.c.b16 %v2295, %v2292
  %v2347 = vpack.c.b16 %v2296, %v2293
  %v2348 = vpack.c.b16 %v2297, %v2294
  %v2349 = vpack.c.b16 %v2301, %v2298
  %v2350 = vpack.c.b16 %v2302, %v2299
  %v2351 = vpack.c.b16 %v2303, %v2300
  %2400 = vmatprep.subr.bf16.mxu0 %v2305
  %2401 = vmatpush1.bf16.msra.mxu0 %v2304
  %2402 = vmatprep.subr.bf16.mxu0 %v2308
  %2403 = vmatpush1.bf16.msra.mxu0 %v2307
  %2404 = vmatprep.subr.bf16.mxu0 %v2311
  %2405 = vmatpush1.bf16.msra.mxu0 %v2310
  %2406 = vmatprep.subr.bf16.mxu0 %v2314
  %2407 = vmatpush1.bf16.msra.mxu0 %v2313
  %2408 = vmatprep.subr.bf16.mxu0 %v2317
  %2409 = vmatpush1.bf16.msra.mxu0 %v2316
  %2410 = vmatprep.subr.bf16.mxu0 %v2320
  %2411 = vmatpush1.bf16.msra.mxu0 %v2319
  %2412 = vmatprep.subr.bf16.mxu0 %v2323
  %2413 = vmatpush1.bf16.msra.mxu0 %v2322
  %2414 = vmatprep.subr.bf16.mxu0 %v2326
  %2415 = vmatpush1.bf16.msra.mxu0 %v2325
  %2416 = vmatprep.subr.bf16.mxu0 %v2329
  %2417 = vmatpush1.bf16.msra.mxu0 %v2328
  %2418 = vmatprep.subr.bf16.mxu0 %v2332
  %2419 = vmatpush1.bf16.msra.mxu0 %v2331
  %2420 = vmatprep.subr.bf16.mxu0 %v2335
  %2421 = vmatpush1.bf16.msra.mxu0 %v2334
  %2422 = vmatprep.subr.bf16.mxu0 %v2338
  %2423 = vmatpush1.bf16.msra.mxu0 %v2337
  %2424 = vmatprep.subr.bf16.mxu0 %v2341
  %2425 = vmatpush1.bf16.msra.mxu0 %v2340
  %2426 = vmatprep.subr.bf16.mxu0 %v2344
  %2427 = vmatpush1.bf16.msra.mxu0 %v2343
  %2428 = vmatprep.subr.bf16.mxu0 %v2347
  %2429 = vmatpush1.bf16.msra.mxu0 %v2346
  %2430 = vmatprep.subr.bf16.mxu0 %v2350
  %2431 = vmatpush1.bf16.msra.mxu0 %v2349
  %2432 = vmatprep.mubr.bf16.mxu0 %v1969
  %2433 = vmatmul.mubr.bf16.gmra.mrb[0].mxu0 %v1968
  %v2434 = vpop.f32.mrb[0].mxu0
  %v2435 = vadd.f32 0.0, %v2434
  %v2436 = vpop.f32.mrb[0].mxu0
  %v2437 = vadd.f32 0.0, %v2436
  %v2438 = vpop.f32.mrb[0].mxu0
  %v2439 = vadd.f32 0.0, %v2438
  %v2440 = vpop.f32.mrb[0].mxu0
  %v2441 = vadd.f32 0.0, %v2440
  %2442 = vmatprep.mubr.bf16.mxu0 %v1971
  %2443 = vmatmul.mubr.bf16.gmra.mrb[0].mxu0 %v1970
  %v2444 = vpop.f32.mrb[0].mxu0
  %v2445 = vadd.f32 0.0, %v2444
  %v2446 = vpop.f32.mrb[0].mxu0
  %v2447 = vadd.f32 0.0, %v2446
  %v2448 = vpop.f32.mrb[0].mxu0
  %v2449 = vadd.f32 0.0, %v2448
  %v2450 = vpop.f32.mrb[0].mxu0
  %v2451 = vadd.f32 0.0, %v2450
  %2452 = vmatprep.mubr.bf16.mxu0 %v1973
  %2453 = vmatmul.mubr.bf16.gmra.mrb[0].mxu0 %v1972
  %v2454 = vpop.f32.mrb[0].mxu0
  %v2455 = vadd.f32 0.0, %v2454
  %v2456 = vpop.f32.mrb[0].mxu0
  %v2457 = vadd.f32 0.0, %v2456
  %v2458 = vpop.f32.mrb[0].mxu0
  %v2459 = vadd.f32 0.0, %v2458
  %v2460 = vpop.f32.mrb[0].mxu0
  %v2461 = vadd.f32 0.0, %v2460
  %2462 = vmatprep.mubr.bf16.mxu0 %v1975
  %2463 = vmatmul.mubr.bf16.gmra.mrb[0].mxu0 %v1974
  %v2464 = vpop.f32.mrb[0].mxu0
  %v2465 = vadd.f32 0.0, %v2464
  %v2466 = vpop.f32.mrb[0].mxu0
  %v2467 = vadd.f32 0.0, %v2466
  %v2468 = vpop.f32.mrb[0].mxu0
  %v2469 = vadd.f32 0.0, %v2468
  %v2470 = vpop.f32.mrb[0].mxu0
  %v2471 = vadd.f32 0.0, %v2470
  %2472 = vmatprep.mubr.bf16.mxu0 %v1977
  %2473 = vmatmul.mubr.bf16.gmra.mrb[0].mxu0 %v1976
  %v2474 = vpop.f32.mrb[0].mxu0
  %v2475 = vadd.f32 0.0, %v2474
  %v2476 = vpop.f32.mrb[0].mxu0
  %v2477 = vadd.f32 0.0, %v2476
  %v2478 = vpop.f32.mrb[0].mxu0
  %v2479 = vadd.f32 0.0, %v2478
  %v2480 = vpop.f32.mrb[0].mxu0
  %v2481 = vadd.f32 0.0, %v2480
  %2482 = vmatprep.mubr.bf16.mxu0 %v1979
  %2483 = vmatmul.mubr.bf16.gmra.mrb[0].mxu0 %v1978
  %v2484 = vpop.f32.mrb[0].mxu0
  %v2485 = vadd.f32 0.0, %v2484
  %v2486 = vpop.f32.mrb[0].mxu0
  %v2487 = vadd.f32 0.0, %v2486
  %v2488 = vpop.f32.mrb[0].mxu0
  %v2489 = vadd.f32 0.0, %v2488
  %v2490 = vpop.f32.mrb[0].mxu0
  %v2491 = vadd.f32 0.0, %v2490
  %2492 = vmatprep.mubr.bf16.mxu0 %v1981
  %2493 = vmatmul.mubr.bf16.gmra.mrb[0].mxu0 %v1980
  %v2494 = vpop.f32.mrb[0].mxu0
  %v2495 = vadd.f32 0.0, %v2494
  %v2496 = vpop.f32.mrb[0].mxu0
  %v2497 = vadd.f32 0.0, %v2496
  %v2498 = vpop.f32.mrb[0].mxu0
  %v2499 = vadd.f32 0.0, %v2498
  %v2500 = vpop.f32.mrb[0].mxu0
  %v2501 = vadd.f32 0.0, %v2500
  %2502 = vmatprep.mubr.bf16.mxu0 %v1983
  %2503 = vmatmul.mubr.bf16.gmra.mrb[0].mxu0 %v1982
  %v2504 = vpop.f32.mrb[0].mxu0
  %v2505 = vadd.f32 0.0, %v2504
  %v2506 = vpop.f32.mrb[0].mxu0
  %v2507 = vadd.f32 0.0, %v2506
  %v2508 = vpop.f32.mrb[0].mxu0
  %v2509 = vadd.f32 0.0, %v2508
  %v2510 = vpop.f32.mrb[0].mxu0
  %v2511 = vadd.f32 0.0, %v2510
  %2512 = vdwg.mxu0
  %2513 = vmatprep.subr.bf16.mxu0 0
  %2514 = vmatpush1.bf16.msra.mxu0 %v2306
  %2515 = vmatprep.subr.bf16.mxu0 0
  %2516 = vmatpush1.bf16.msra.mxu0 %v2309
  %2517 = vmatprep.subr.bf16.mxu0 0
  %2518 = vmatpush1.bf16.msra.mxu0 %v2312
  %2519 = vmatprep.subr.bf16.mxu0 0
  %2520 = vmatpush1.bf16.msra.mxu0 %v2315
  %2521 = vmatprep.subr.bf16.mxu0 0
  %2522 = vmatpush1.bf16.msra.mxu0 %v2318
  %2523 = vmatprep.subr.bf16.mxu0 0
  %2524 = vmatpush1.bf16.msra.mxu0 %v2321
  %2525 = vmatprep.subr.bf16.mxu0 0
  %2526 = vmatpush1.bf16.msra.mxu0 %v2324
  %2527 = vmatprep.subr.bf16.mxu0 0
  %2528 = vmatpush1.bf16.msra.mxu0 %v2327
  %2529 = vmatprep.subr.bf16.mxu0 0
  %2530 = vmatpush1.bf16.msra.mxu0 %v2330
  %2531 = vmatprep.subr.bf16.mxu0 0
  %2532 = vmatpush1.bf16.msra.mxu0 %v2333
  %2533 = vmatprep.subr.bf16.mxu0 0
  %2534 = vmatpush1.bf16.msra.mxu0 %v2336
  %2535 = vmatprep.subr.bf16.mxu0 0
  %2536 = vmatpush1.bf16.msra.mxu0 %v2339
  %2537 = vmatprep.subr.bf16.mxu0 0
  %2538 = vmatpush1.bf16.msra.mxu0 %v2342
  %2539 = vmatprep.subr.bf16.mxu0 0
  %2540 = vmatpush1.bf16.msra.mxu0 %v2345
  %2541 = vmatprep.subr.bf16.mxu0 0
  %2542 = vmatpush1.bf16.msra.mxu0 %v2348
  %2543 = vmatprep.subr.bf16.mxu0 0
  %2544 = vmatpush1.bf16.msra.mxu0 %v2351
  %2545 = vmatprep.mubr.bf16.mxu0 %v1969
  %2546 = vmatmul.mubr.bf16.gmra.mrb[0].mxu0 %v1968
  %v2547 = vpop.f32.mrb[0].mxu0
  %v2548 = vadd.f32 0.0, %v2547
  %v2549 = vpop.f32.mrb[0].mxu0
  %v2550 = vpop.f32.mrb[0].mxu0
  %v2551 = vadd.f32 0.0, %v2550
  %v2552 = vpop.f32.mrb[0].mxu0
  %2553 = vmatprep.mubr.bf16.mxu0 %v1971
  %2554 = vmatmul.mubr.bf16.gmra.mrb[0].mxu0 %v1970
  %v2555 = vpop.f32.mrb[0].mxu0
  %v2556 = vadd.f32 0.0, %v2555
  %v2557 = vpop.f32.mrb[0].mxu0
  %v2558 = vpop.f32.mrb[0].mxu0
  %v2559 = vadd.f32 0.0, %v2558
  %v2560 = vpop.f32.mrb[0].mxu0
  %2561 = vmatprep.mubr.bf16.mxu0 %v1973
  %2562 = vmatmul.mubr.bf16.gmra.mrb[0].mxu0 %v1972
  %v2563 = vpop.f32.mrb[0].mxu0
  %v2564 = vadd.f32 0.0, %v2563
  %v2565 = vpop.f32.mrb[0].mxu0
  %v2566 = vpop.f32.mrb[0].mxu0
  %v2567 = vadd.f32 0.0, %v2566
  %v2568 = vpop.f32.mrb[0].mxu0
  %2569 = vmatprep.mubr.bf16.mxu0 %v1975
  %2570 = vmatmul.mubr.bf16.gmra.mrb[0].mxu0 %v1974
  %v2571 = vpop.f32.mrb[0].mxu0
  %v2572 = vadd.f32 0.0, %v2571
  %v2573 = vpop.f32.mrb[0].mxu0
  %v2574 = vpop.f32.mrb[0].mxu0
  %v2575 = vadd.f32 0.0, %v2574
  %v2576 = vpop.f32.mrb[0].mxu0
  %2577 = vmatprep.mubr.bf16.mxu0 %v1977
  %2578 = vmatmul.mubr.bf16.gmra.mrb[0].mxu0 %v1976
  %v2579 = vpop.f32.mrb[0].mxu0
  %v2580 = vadd.f32 0.0, %v2579
  %v2581 = vpop.f32.mrb[0].mxu0
  %v2582 = vpop.f32.mrb[0].mxu0
  %v2583 = vadd.f32 0.0, %v2582
  %v2584 = vpop.f32.mrb[0].mxu0
  %2585 = vmatprep.mubr.bf16.mxu0 %v1979
  %2586 = vmatmul.mubr.bf16.gmra.mrb[0].mxu0 %v1978
  %v2587 = vpop.f32.mrb[0].mxu0
  %v2588 = vadd.f32 0.0, %v2587
  %v2589 = vpop.f32.mrb[0].mxu0
  %v2590 = vpop.f32.mrb[0].mxu0
  %v2591 = vadd.f32 0.0, %v2590
  %v2592 = vpop.f32.mrb[0].mxu0
  %2593 = vmatprep.mubr.bf16.mxu0 %v1981
  %2594 = vmatmul.mubr.bf16.gmra.mrb[0].mxu0 %v1980
  %v2595 = vpop.f32.mrb[0].mxu0
  %v2596 = vadd.f32 0.0, %v2595
  %v2597 = vpop.f32.mrb[0].mxu0
  %v2598 = vpop.f32.mrb[0].mxu0
  %v2599 = vadd.f32 0.0, %v2598
  %v2600 = vpop.f32.mrb[0].mxu0
  %2601 = vmatprep.mubr.bf16.mxu0 %v1983
  %2602 = vmatmul.mubr.bf16.gmra.mrb[0].mxu0 %v1982
  %v2603 = vpop.f32.mrb[0].mxu0
  %v2604 = vadd.f32 0.0, %v2603
  %v2605 = vpop.f32.mrb[0].mxu0
  %v2606 = vpop.f32.mrb[0].mxu0
  %v2607 = vadd.f32 0.0, %v2606
  %v2608 = vpop.f32.mrb[0].mxu0
  %2609 = vdwg.mxu0
  %v2706 = vunpack.c.l.b16 %v1984
  %v2707 = vunpack.c.h.b16 %v1984
  %v2708 = vunpack.c.l.b16 %v1985
  %v2709 = vunpack.c.l.b16 %v1986
  %v2710 = vunpack.c.h.b16 %v1986
  %v2711 = vunpack.c.l.b16 %v1987
  %v2712 = vunpack.c.l.b16 %v1988
  %v2713 = vunpack.c.h.b16 %v1988
  %v2714 = vunpack.c.l.b16 %v1989
  %v2715 = vunpack.c.l.b16 %v1990
  %v2716 = vunpack.c.h.b16 %v1990
  %v2717 = vunpack.c.l.b16 %v1991
  %v2718 = vunpack.c.l.b16 %v1992
  %v2719 = vunpack.c.h.b16 %v1992
  %v2720 = vunpack.c.l.b16 %v1993
  %v2721 = vunpack.c.l.b16 %v1994
  %v2722 = vunpack.c.h.b16 %v1994
  %v2723 = vunpack.c.l.b16 %v1995
  %v2724 = vunpack.c.l.b16 %v1996
  %v2725 = vunpack.c.h.b16 %v1996
  %v2726 = vunpack.c.l.b16 %v1997
  %v2727 = vunpack.c.l.b16 %v1998
  %v2728 = vunpack.c.h.b16 %v1998
  %v2729 = vunpack.c.l.b16 %v1999
  %v2730 = vunpack.c.l.b16 %v2000
  %v2731 = vunpack.c.h.b16 %v2000
  %v2732 = vunpack.c.l.b16 %v2001
  %v2733 = vunpack.c.l.b16 %v2002
  %v2734 = vunpack.c.h.b16 %v2002
  %v2735 = vunpack.c.l.b16 %v2003
  %v2736 = vunpack.c.l.b16 %v2004
  %v2737 = vunpack.c.h.b16 %v2004
  %v2738 = vunpack.c.l.b16 %v2005
  %v2739 = vunpack.c.l.b16 %v2006
  %v2740 = vunpack.c.h.b16 %v2006
  %v2741 = vunpack.c.l.b16 %v2007
  %v2742 = vunpack.c.l.b16 %v2008
  %v2743 = vunpack.c.h.b16 %v2008
  %v2744 = vunpack.c.l.b16 %v2009
  %v2745 = vunpack.c.l.b16 %v2010
  %v2746 = vunpack.c.h.b16 %v2010
  %v2747 = vunpack.c.l.b16 %v2011
  %v2748 = vunpack.c.l.b16 %v2012
  %v2749 = vunpack.c.h.b16 %v2012
  %v2750 = vunpack.c.l.b16 %v2013
  %v2751 = vunpack.c.l.b16 %v2014
  %v2752 = vunpack.c.h.b16 %v2014
  %v2753 = vunpack.c.l.b16 %v2015
  %v2754 = vunpack.c.l.b16 %v2016
  %v2755 = vunpack.c.h.b16 %v2016
  %v2756 = vunpack.c.l.b16 %v2017
  %v2757 = vunpack.c.l.b16 %v2018
  %v2758 = vunpack.c.h.b16 %v2018
  %v2759 = vunpack.c.l.b16 %v2019
  %v2760 = vunpack.c.l.b16 %v2020
  %v2761 = vunpack.c.h.b16 %v2020
  %v2762 = vunpack.c.l.b16 %v2021
  %v2763 = vunpack.c.l.b16 %v2022
  %v2764 = vunpack.c.h.b16 %v2022
  %v2765 = vunpack.c.l.b16 %v2023
  %v2766 = vunpack.c.l.b16 %v2024
  %v2767 = vunpack.c.h.b16 %v2024
  %v2768 = vunpack.c.l.b16 %v2025
  %v2769 = vunpack.c.l.b16 %v2026
  %v2770 = vunpack.c.h.b16 %v2026
  %v2771 = vunpack.c.l.b16 %v2027
  %v2772 = vunpack.c.l.b16 %v2028
  %v2773 = vunpack.c.h.b16 %v2028
  %v2774 = vunpack.c.l.b16 %v2029
  %v2775 = vunpack.c.l.b16 %v2030
  %v2776 = vunpack.c.h.b16 %v2030
  %v2777 = vunpack.c.l.b16 %v2031
  %v2778 = vunpack.c.l.b16 %v2032
  %v2779 = vunpack.c.h.b16 %v2032
  %v2780 = vunpack.c.l.b16 %v2033
  %v2781 = vunpack.c.l.b16 %v2034
  %v2782 = vunpack.c.h.b16 %v2034
  %v2783 = vunpack.c.l.b16 %v2035
  %v2784 = vunpack.c.l.b16 %v2036
  %v2785 = vunpack.c.h.b16 %v2036
  %v2786 = vunpack.c.l.b16 %v2037
  %v2787 = vunpack.c.l.b16 %v2038
  %v2788 = vunpack.c.h.b16 %v2038
  %v2789 = vunpack.c.l.b16 %v2039
  %v2790 = vunpack.c.l.b16 %v2040
  %v2791 = vunpack.c.h.b16 %v2040
  %v2792 = vunpack.c.l.b16 %v2041
  %v2793 = vunpack.c.l.b16 %v2042
  %v2794 = vunpack.c.h.b16 %v2042
  %v2795 = vunpack.c.l.b16 %v2043
  %v2796 = vunpack.c.l.b16 %v2044
  %v2797 = vunpack.c.h.b16 %v2044
  %v2798 = vunpack.c.l.b16 %v2045
  %v2799 = vunpack.c.l.b16 %v2046
  %v2800 = vunpack.c.h.b16 %v2046
  %v2801 = vunpack.c.l.b16 %v2047
  %v2802 = vunpack.c.l.b16 %v2048
  %v2803 = vunpack.c.h.b16 %v2048
  %v2804 = vunpack.c.l.b16 %v2049
  %v2805 = vunpack.c.l.b16 %v2050
  %v2806 = vunpack.c.h.b16 %v2050
  %v2807 = vunpack.c.l.b16 %v2051
  %v2808 = vunpack.c.l.b16 %v2052
  %v2809 = vunpack.c.h.b16 %v2052
  %v2810 = vunpack.c.l.b16 %v2053
  %v2811 = vunpack.c.l.b16 %v2054
  %v2812 = vunpack.c.h.b16 %v2054
  %v2813 = vunpack.c.l.b16 %v2055
  %v2814 = vunpack.c.l.b16 %v2056
  %v2815 = vunpack.c.h.b16 %v2056
  %v2816 = vunpack.c.l.b16 %v2057
  %v2817 = vunpack.c.l.b16 %v2058
  %v2818 = vunpack.c.h.b16 %v2058
  %v2819 = vunpack.c.l.b16 %v2059
  %v2820 = vunpack.c.l.b16 %v2060
  %v2821 = vunpack.c.h.b16 %v2060
  %v2822 = vunpack.c.l.b16 %v2061
  %v2823 = vunpack.c.l.b16 %v2062
  %v2824 = vunpack.c.h.b16 %v2062
  %v2825 = vunpack.c.l.b16 %v2063
  %v2826 = vunpack.c.l.b16 %v2064
  %v2827 = vunpack.c.h.b16 %v2064
  %v2828 = vunpack.c.l.b16 %v2065
  %v2829 = vunpack.c.l.b16 %v2066
  %v2830 = vunpack.c.h.b16 %v2066
  %v2831 = vunpack.c.l.b16 %v2067
  %v2832 = vunpack.c.l.b16 %v2068
  %v2833 = vunpack.c.h.b16 %v2068
  %v2834 = vunpack.c.l.b16 %v2069
  %v2835 = vunpack.c.l.b16 %v2070
  %v2836 = vunpack.c.h.b16 %v2070
  %v2837 = vunpack.c.l.b16 %v2071
  %v2838 = vunpack.c.l.b16 %v2072
  %v2839 = vunpack.c.h.b16 %v2072
  %v2840 = vunpack.c.l.b16 %v2073
  %v2841 = vunpack.c.l.b16 %v2074
  %v2842 = vunpack.c.h.b16 %v2074
  %v2843 = vunpack.c.l.b16 %v2075
  %v2844 = vunpack.c.l.b16 %v2076
  %v2845 = vunpack.c.h.b16 %v2076
  %v2846 = vunpack.c.l.b16 %v2077
  %v2847 = vunpack.c.l.b16 %v2078
  %v2848 = vunpack.c.h.b16 %v2078
  %v2849 = vunpack.c.l.b16 %v2079
  %v2850 = vpack.c.b16 %v2709, %v2706
  %v2851 = vpack.c.b16 %v2710, %v2707
  %v2852 = vpack.c.b16 %v2711, %v2708
  %v2853 = vpack.c.b16 %v2715, %v2712
  %v2854 = vpack.c.b16 %v2716, %v2713
  %v2855 = vpack.c.b16 %v2717, %v2714
  %v2856 = vpack.c.b16 %v2721, %v2718
  %v2857 = vpack.c.b16 %v2722, %v2719
  %v2858 = vpack.c.b16 %v2723, %v2720
  %v2859 = vpack.c.b16 %v2727, %v2724
  %v2860 = vpack.c.b16 %v2728, %v2725
  %v2861 = vpack.c.b16 %v2729, %v2726
  %v2862 = vpack.c.b16 %v2733, %v2730
  %v2863 = vpack.c.b16 %v2734, %v2731
  %v2864 = vpack.c.b16 %v2735, %v2732
  %v2865 = vpack.c.b16 %v2739, %v2736
  %v2866 = vpack.c.b16 %v2740, %v2737
  %v2867 = vpack.c.b16 %v2741, %v2738
  %v2868 = vpack.c.b16 %v2745, %v2742
  %v2869 = vpack.c.b16 %v2746, %v2743
  %v2870 = vpack.c.b16 %v2747, %v2744
  %v2871 = vpack.c.b16 %v2751, %v2748
  %v2872 = vpack.c.b16 %v2752, %v2749
  %v2873 = vpack.c.b16 %v2753, %v2750
  %v2874 = vpack.c.b16 %v2757, %v2754
  %v2875 = vpack.c.b16 %v2758, %v2755
  %v2876 = vpack.c.b16 %v2759, %v2756
  %v2877 = vpack.c.b16 %v2763, %v2760
  %v2878 = vpack.c.b16 %v2764, %v2761
  %v2879 = vpack.c.b16 %v2765, %v2762
  %v2880 = vpack.c.b16 %v2769, %v2766
  %v2881 = vpack.c.b16 %v2770, %v2767
  %v2882 = vpack.c.b16 %v2771, %v2768
  %v2883 = vpack.c.b16 %v2775, %v2772
  %v2884 = vpack.c.b16 %v2776, %v2773
  %v2885 = vpack.c.b16 %v2777, %v2774
  %v2886 = vpack.c.b16 %v2781, %v2778
  %v2887 = vpack.c.b16 %v2782, %v2779
  %v2888 = vpack.c.b16 %v2783, %v2780
  %v2889 = vpack.c.b16 %v2787, %v2784
  %v2890 = vpack.c.b16 %v2788, %v2785
  %v2891 = vpack.c.b16 %v2789, %v2786
  %v2892 = vpack.c.b16 %v2793, %v2790
  %v2893 = vpack.c.b16 %v2794, %v2791
  %v2894 = vpack.c.b16 %v2795, %v2792
  %v2895 = vpack.c.b16 %v2799, %v2796
  %v2896 = vpack.c.b16 %v2800, %v2797
  %v2897 = vpack.c.b16 %v2801, %v2798
  %v2898 = vpack.c.b16 %v2805, %v2802
  %v2899 = vpack.c.b16 %v2806, %v2803
  %v2900 = vpack.c.b16 %v2807, %v2804
  %v2901 = vpack.c.b16 %v2811, %v2808
  %v2902 = vpack.c.b16 %v2812, %v2809
  %v2903 = vpack.c.b16 %v2813, %v2810
  %v2904 = vpack.c.b16 %v2817, %v2814
  %v2905 = vpack.c.b16 %v2818, %v2815
  %v2906 = vpack.c.b16 %v2819, %v2816
  %v2907 = vpack.c.b16 %v2823, %v2820
  %v2908 = vpack.c.b16 %v2824, %v2821
  %v2909 = vpack.c.b16 %v2825, %v2822
  %v2910 = vpack.c.b16 %v2829, %v2826
  %v2911 = vpack.c.b16 %v2830, %v2827
  %v2912 = vpack.c.b16 %v2831, %v2828
  %v2913 = vpack.c.b16 %v2835, %v2832
  %v2914 = vpack.c.b16 %v2836, %v2833
  %v2915 = vpack.c.b16 %v2837, %v2834
  %v2916 = vpack.c.b16 %v2841, %v2838
  %v2917 = vpack.c.b16 %v2842, %v2839
  %v2918 = vpack.c.b16 %v2843, %v2840
  %v2919 = vpack.c.b16 %v2847, %v2844
  %v2920 = vpack.c.b16 %v2848, %v2845
  %v2921 = vpack.c.b16 %v2849, %v2846
  %2994 = vmatprep.subr.bf16.mxu0 %v2851
  %2995 = vmatpush1.bf16.msra.mxu0 %v2850
  %2996 = vmatprep.subr.bf16.mxu0 %v2854
  %2997 = vmatpush1.bf16.msra.mxu0 %v2853
  %2998 = vmatprep.subr.bf16.mxu0 %v2857
  %2999 = vmatpush1.bf16.msra.mxu0 %v2856
  %3000 = vmatprep.subr.bf16.mxu0 %v2860
  %3001 = vmatpush1.bf16.msra.mxu0 %v2859
  %3002 = vmatprep.subr.bf16.mxu0 %v2863
  %3003 = vmatpush1.bf16.msra.mxu0 %v2862
  %3004 = vmatprep.subr.bf16.mxu0 %v2866
  %3005 = vmatpush1.bf16.msra.mxu0 %v2865
  %3006 = vmatprep.subr.bf16.mxu0 %v2869
  %3007 = vmatpush1.bf16.msra.mxu0 %v2868
  %3008 = vmatprep.subr.bf16.mxu0 %v2872
  %3009 = vmatpush1.bf16.msra.mxu0 %v2871
  %3010 = vmatprep.subr.bf16.mxu0 %v2875
  %3011 = vmatpush1.bf16.msra.mxu0 %v2874
  %3012 = vmatprep.subr.bf16.mxu0 %v2878
  %3013 = vmatpush1.bf16.msra.mxu0 %v2877
  %3014 = vmatprep.subr.bf16.mxu0 %v2881
  %3015 = vmatpush1.bf16.msra.mxu0 %v2880
  %3016 = vmatprep.subr.bf16.mxu0 %v2884
  %3017 = vmatpush1.bf16.msra.mxu0 %v2883
  %3018 = vmatprep.subr.bf16.mxu0 %v2887
  %3019 = vmatpush1.bf16.msra.mxu0 %v2886
  %3020 = vmatprep.subr.bf16.mxu0 %v2890
  %3021 = vmatpush1.bf16.msra.mxu0 %v2889
  %3022 = vmatprep.subr.bf16.mxu0 %v2893
  %3023 = vmatpush1.bf16.msra.mxu0 %v2892
  %3024 = vmatprep.subr.bf16.mxu0 %v2896
  %3025 = vmatpush1.bf16.msra.mxu0 %v2895
  %3026 = vmatprep.mubr.bf16.mxu0 %v519
  %3027 = vmatmul.mubr.bf16.gmra.mrb[0].mxu0 %v518
  %v3028 = vpop.f32.mrb[0].mxu0
  %v3029 = vadd.f32 %v2435, %v3028
  %v3030 = vpop.f32.mrb[0].mxu0
  %v3031 = vadd.f32 %v2437, %v3030
  %v3032 = vpop.f32.mrb[0].mxu0
  %v3033 = vadd.f32 %v2439, %v3032
  %v3034 = vpop.f32.mrb[0].mxu0
  %v3035 = vadd.f32 %v2441, %v3034
  %3036 = vmatprep.mubr.bf16.mxu0 %v522
  %3037 = vmatmul.mubr.bf16.gmra.mrb[0].mxu0 %v521
  %v3038 = vpop.f32.mrb[0].mxu0
  %v3039 = vadd.f32 %v2445, %v3038
  %v3040 = vpop.f32.mrb[0].mxu0
  %v3041 = vadd.f32 %v2447, %v3040
  %v3042 = vpop.f32.mrb[0].mxu0
  %v3043 = vadd.f32 %v2449, %v3042
  %v3044 = vpop.f32.mrb[0].mxu0
  %v3045 = vadd.f32 %v2451, %v3044
  %3046 = vmatprep.mubr.bf16.mxu0 %v525
  %3047 = vmatmul.mubr.bf16.gmra.mrb[0].mxu0 %v524
  %v3048 = vpop.f32.mrb[0].mxu0
  %v3049 = vadd.f32 %v2455, %v3048
  %v3050 = vpop.f32.mrb[0].mxu0
  %v3051 = vadd.f32 %v2457, %v3050
  %v3052 = vpop.f32.mrb[0].mxu0
  %v3053 = vadd.f32 %v2459, %v3052
  %v3054 = vpop.f32.mrb[0].mxu0
  %v3055 = vadd.f32 %v2461, %v3054
  %3056 = vmatprep.mubr.bf16.mxu0 %v528
  %3057 = vmatmul.mubr.bf16.gmra.mrb[0].mxu0 %v527
  %v3058 = vpop.f32.mrb[0].mxu0
  %v3059 = vadd.f32 %v2465, %v3058
  %v3060 = vpop.f32.mrb[0].mxu0
  %v3061 = vadd.f32 %v2467, %v3060
  %v3062 = vpop.f32.mrb[0].mxu0
  %v3063 = vadd.f32 %v2469, %v3062
  %v3064 = vpop.f32.mrb[0].mxu0
  %v3065 = vadd.f32 %v2471, %v3064
  %3066 = vmatprep.mubr.bf16.mxu0 %v531
  %3067 = vmatmul.mubr.bf16.gmra.mrb[0].mxu0 %v530
  %v3068 = vpop.f32.mrb[0].mxu0
  %v3069 = vadd.f32 %v2475, %v3068
  %v3070 = vpop.f32.mrb[0].mxu0
  %v3071 = vadd.f32 %v2477, %v3070
  %v3072 = vpop.f32.mrb[0].mxu0
  %v3073 = vadd.f32 %v2479, %v3072
  %v3074 = vpop.f32.mrb[0].mxu0
  %v3075 = vadd.f32 %v2481, %v3074
  %3076 = vmatprep.mubr.bf16.mxu0 %v534
  %3077 = vmatmul.mubr.bf16.gmra.mrb[0].mxu0 %v533
  %v3078 = vpop.f32.mrb[0].mxu0
  %v3079 = vadd.f32 %v2485, %v3078
  %v3080 = vpop.f32.mrb[0].mxu0
  %v3081 = vadd.f32 %v2487, %v3080
  %v3082 = vpop.f32.mrb[0].mxu0
  %v3083 = vadd.f32 %v2489, %v3082
  %v3084 = vpop.f32.mrb[0].mxu0
  %v3085 = vadd.f32 %v2491, %v3084
  %3086 = vmatprep.mubr.bf16.mxu0 %v537
  %3087 = vmatmul.mubr.bf16.gmra.mrb[0].mxu0 %v536
  %v3088 = vpop.f32.mrb[0].mxu0
  %v3089 = vadd.f32 %v2495, %v3088
  %v3090 = vpop.f32.mrb[0].mxu0
  %v3091 = vadd.f32 %v2497, %v3090
  %v3092 = vpop.f32.mrb[0].mxu0
  %v3093 = vadd.f32 %v2499, %v3092
  %v3094 = vpop.f32.mrb[0].mxu0
  %v3095 = vadd.f32 %v2501, %v3094
  %3096 = vmatprep.mubr.bf16.mxu0 %v540
  %3097 = vmatmul.mubr.bf16.gmra.mrb[0].mxu0 %v539
  %v3098 = vpop.f32.mrb[0].mxu0
  %v3099 = vadd.f32 %v2505, %v3098
  %v3100 = vpop.f32.mrb[0].mxu0
  %v3101 = vadd.f32 %v2507, %v3100
  %v3102 = vpop.f32.mrb[0].mxu0
  %v3103 = vadd.f32 %v2509, %v3102
  %v3104 = vpop.f32.mrb[0].mxu0
  %v3105 = vadd.f32 %v2511, %v3104
  %3106 = vdwg.mxu0
  %3107 = vmatprep.subr.bf16.mxu0 %v2899
  %3108 = vmatpush1.bf16.msra.mxu0 %v2898
  %3109 = vmatprep.subr.bf16.mxu0 %v2902
  %3110 = vmatpush1.bf16.msra.mxu0 %v2901
  %3111 = vmatprep.subr.bf16.mxu0 %v2905
  %3112 = vmatpush1.bf16.msra.mxu0 %v2904
  %3113 = vmatprep.subr.bf16.mxu0 %v2908
  %3114 = vmatpush1.bf16.msra.mxu0 %v2907
  %3115 = vmatprep.subr.bf16.mxu0 %v2911
  %3116 = vmatpush1.bf16.msra.mxu0 %v2910
  %3117 = vmatprep.subr.bf16.mxu0 %v2914
  %3118 = vmatpush1.bf16.msra.mxu0 %v2913
  %3119 = vmatprep.subr.bf16.mxu0 %v2917
  %3120 = vmatpush1.bf16.msra.mxu0 %v2916
  %3121 = vmatprep.subr.bf16.mxu0 %v2920
  %3122 = vmatpush1.bf16.msra.mxu0 %v2919
  %3123 = vmatprep.subr.bf16.mxu0 0
  %3124 = vmatpush1.bf16.msra.mxu0 0
  %3125 = vmatprep.subr.bf16.mxu0 0
  %3126 = vmatpush1.bf16.msra.mxu0 0
  %3127 = vmatprep.subr.bf16.mxu0 0
  %3128 = vmatpush1.bf16.msra.mxu0 0
  %3129 = vmatprep.subr.bf16.mxu0 0
  %3130 = vmatpush1.bf16.msra.mxu0 0
  %3131 = vmatprep.subr.bf16.mxu0 0
  %3132 = vmatpush1.bf16.msra.mxu0 0
  %3133 = vmatprep.subr.bf16.mxu0 0
  %3134 = vmatpush1.bf16.msra.mxu0 0
  %3135 = vmatprep.subr.bf16.mxu0 0
  %3136 = vmatpush1.bf16.msra.mxu0 0
  %3137 = vmatprep.subr.bf16.mxu0 0
  %3138 = vmatpush1.bf16.msra.mxu0 0
  %3139 = vmatprep.mubr.bf16.mxu0 0
  %3140 = vmatmul.mubr.bf16.gmra.mrb[0].mxu0 %v520
  %v3141 = vpop.f32.mrb[0].mxu0
  %v3142 = vadd.f32 %v3029, %v3141
  %v3143 = vpop.f32.mrb[0].mxu0
  %v3144 = vadd.f32 %v3031, %v3143
  %v3145 = vpop.f32.mrb[0].mxu0
  %v3146 = vadd.f32 %v3033, %v3145
  %v3147 = vpop.f32.mrb[0].mxu0
  %v3148 = vadd.f32 %v3035, %v3147
  %3149 = vmatprep.mubr.bf16.mxu0 0
  %3150 = vmatmul.mubr.bf16.gmra.mrb[0].mxu0 %v523
  %v3151 = vpop.f32.mrb[0].mxu0
  %v3152 = vadd.f32 %v3039, %v3151
  %v3153 = vpop.f32.mrb[0].mxu0
  %v3154 = vadd.f32 %v3041, %v3153
  %v3155 = vpop.f32.mrb[0].mxu0
  %v3156 = vadd.f32 %v3043, %v3155
  %v3157 = vpop.f32.mrb[0].mxu0
  %v3158 = vadd.f32 %v3045, %v3157
  %3159 = vmatprep.mubr.bf16.mxu0 0
  %3160 = vmatmul.mubr.bf16.gmra.mrb[0].mxu0 %v526
  %v3161 = vpop.f32.mrb[0].mxu0
  %v3162 = vadd.f32 %v3049, %v3161
  %v3163 = vpop.f32.mrb[0].mxu0
  %v3164 = vadd.f32 %v3051, %v3163
  %v3165 = vpop.f32.mrb[0].mxu0
  %v3166 = vadd.f32 %v3053, %v3165
  %v3167 = vpop.f32.mrb[0].mxu0
  %v3168 = vadd.f32 %v3055, %v3167
  %3169 = vmatprep.mubr.bf16.mxu0 0
  %3170 = vmatmul.mubr.bf16.gmra.mrb[0].mxu0 %v529
  %v3171 = vpop.f32.mrb[0].mxu0
  %v3172 = vadd.f32 %v3059, %v3171
  %v3173 = vpop.f32.mrb[0].mxu0
  %v3174 = vadd.f32 %v3061, %v3173
  %v3175 = vpop.f32.mrb[0].mxu0
  %v3176 = vadd.f32 %v3063, %v3175
  %v3177 = vpop.f32.mrb[0].mxu0
  %v3178 = vadd.f32 %v3065, %v3177
  %3179 = vmatprep.mubr.bf16.mxu0 0
  %3180 = vmatmul.mubr.bf16.gmra.mrb[0].mxu0 %v532
  %v3181 = vpop.f32.mrb[0].mxu0
  %v3182 = vadd.f32 %v3069, %v3181
  %v3183 = vpop.f32.mrb[0].mxu0
  %v3184 = vadd.f32 %v3071, %v3183
  %v3185 = vpop.f32.mrb[0].mxu0
  %v3186 = vadd.f32 %v3073, %v3185
  %v3187 = vpop.f32.mrb[0].mxu0
  %v3188 = vadd.f32 %v3075, %v3187
  %3189 = vmatprep.mubr.bf16.mxu0 0
  %3190 = vmatmul.mubr.bf16.gmra.mrb[0].mxu0 %v535
  %v3191 = vpop.f32.mrb[0].mxu0
  %v3192 = vadd.f32 %v3079, %v3191
  %v3193 = vpop.f32.mrb[0].mxu0
  %v3194 = vadd.f32 %v3081, %v3193
  %v3195 = vpop.f32.mrb[0].mxu0
  %v3196 = vadd.f32 %v3083, %v3195
  %v3197 = vpop.f32.mrb[0].mxu0
  %v3198 = vadd.f32 %v3085, %v3197
  %3199 = vmatprep.mubr.bf16.mxu0 0
  %3200 = vmatmul.mubr.bf16.gmra.mrb[0].mxu0 %v538
  %v3201 = vpop.f32.mrb[0].mxu0
  %v3202 = vadd.f32 %v3089, %v3201
  %v3203 = vpop.f32.mrb[0].mxu0
  %v3204 = vadd.f32 %v3091, %v3203
  %v3205 = vpop.f32.mrb[0].mxu0
  %v3206 = vadd.f32 %v3093, %v3205
  %v3207 = vpop.f32.mrb[0].mxu0
  %v3208 = vadd.f32 %v3095, %v3207
  %3209 = vmatprep.mubr.bf16.mxu0 0
  %3210 = vmatmul.mubr.bf16.gmra.mrb[0].mxu0 %v541
  %v3211 = vpop.f32.mrb[0].mxu0
  %v3212 = vadd.f32 %v3099, %v3211
  %v3213 = vpop.f32.mrb[0].mxu0
  %v3214 = vadd.f32 %v3101, %v3213
  %v3215 = vpop.f32.mrb[0].mxu0
  %v3216 = vadd.f32 %v3103, %v3215
  %v3217 = vpop.f32.mrb[0].mxu0
  %v3218 = vadd.f32 %v3105, %v3217
  %3219 = vdwg.mxu0
  %3220 = vmatprep.subr.bf16.mxu0 0
  %3221 = vmatpush1.bf16.msra.mxu0 %v2852
  %3222 = vmatprep.subr.bf16.mxu0 0
  %3223 = vmatpush1.bf16.msra.mxu0 %v2855
  %3224 = vmatprep.subr.bf16.mxu0 0
  %3225 = vmatpush1.bf16.msra.mxu0 %v2858
  %3226 = vmatprep.subr.bf16.mxu0 0
  %3227 = vmatpush1.bf16.msra.mxu0 %v2861
  %3228 = vmatprep.subr.bf16.mxu0 0
  %3229 = vmatpush1.bf16.msra.mxu0 %v2864
  %3230 = vmatprep.subr.bf16.mxu0 0
  %3231 = vmatpush1.bf16.msra.mxu0 %v2867
  %3232 = vmatprep.subr.bf16.mxu0 0
  %3233 = vmatpush1.bf16.msra.mxu0 %v2870
  %3234 = vmatprep.subr.bf16.mxu0 0
  %3235 = vmatpush1.bf16.msra.mxu0 %v2873
  %3236 = vmatprep.subr.bf16.mxu0 0
  %3237 = vmatpush1.bf16.msra.mxu0 %v2876
  %3238 = vmatprep.subr.bf16.mxu0 0
  %3239 = vmatpush1.bf16.msra.mxu0 %v2879
  %3240 = vmatprep.subr.bf16.mxu0 0
  %3241 = vmatpush1.bf16.msra.mxu0 %v2882
  %3242 = vmatprep.subr.bf16.mxu0 0
  %3243 = vmatpush1.bf16.msra.mxu0 %v2885
  %3244 = vmatprep.subr.bf16.mxu0 0
  %3245 = vmatpush1.bf16.msra.mxu0 %v2888
  %3246 = vmatprep.subr.bf16.mxu0 0
  %3247 = vmatpush1.bf16.msra.mxu0 %v2891
  %3248 = vmatprep.subr.bf16.mxu0 0
  %3249 = vmatpush1.bf16.msra.mxu0 %v2894
  %3250 = vmatprep.subr.bf16.mxu0 0
  %3251 = vmatpush1.bf16.msra.mxu0 %v2897
  %3252 = vmatprep.mubr.bf16.mxu0 %v519
  %3253 = vmatmul.mubr.bf16.gmra.mrb[0].mxu0 %v518
  %v3254 = vpop.f32.mrb[0].mxu0
  %v3255 = vadd.f32 %v2548, %v3254
  %v3256 = vpop.f32.mrb[0].mxu0
  %v3257 = vpop.f32.mrb[0].mxu0
  %v3258 = vadd.f32 %v2551, %v3257
  %v3259 = vpop.f32.mrb[0].mxu0
  %3260 = vmatprep.mubr.bf16.mxu0 %v522
  %3261 = vmatmul.mubr.bf16.gmra.mrb[0].mxu0 %v521
  %v3262 = vpop.f32.mrb[0].mxu0
  %v3263 = vadd.f32 %v2556, %v3262
  %v3264 = vpop.f32.mrb[0].mxu0
  %v3265 = vpop.f32.mrb[0].mxu0
  %v3266 = vadd.f32 %v2559, %v3265
  %v3267 = vpop.f32.mrb[0].mxu0
  %3268 = vmatprep.mubr.bf16.mxu0 %v525
  %3269 = vmatmul.mubr.bf16.gmra.mrb[0].mxu0 %v524
  %v3270 = vpop.f32.mrb[0].mxu0
  %v3271 = vadd.f32 %v2564, %v3270
  %v3272 = vpop.f32.mrb[0].mxu0
  %v3273 = vpop.f32.mrb[0].mxu0
  %v3274 = vadd.f32 %v2567, %v3273
  %v3275 = vpop.f32.mrb[0].mxu0
  %3276 = vmatprep.mubr.bf16.mxu0 %v528
  %3277 = vmatmul.mubr.bf16.gmra.mrb[0].mxu0 %v527
  %v3278 = vpop.f32.mrb[0].mxu0
  %v3279 = vadd.f32 %v2572, %v3278
  %v3280 = vpop.f32.mrb[0].mxu0
  %v3281 = vpop.f32.mrb[0].mxu0
  %v3282 = vadd.f32 %v2575, %v3281
  %v3283 = vpop.f32.mrb[0].mxu0
  %3284 = vmatprep.mubr.bf16.mxu0 %v531
  %3285 = vmatmul.mubr.bf16.gmra.mrb[0].mxu0 %v530
  %v3286 = vpop.f32.mrb[0].mxu0
  %v3287 = vadd.f32 %v2580, %v3286
  %v3288 = vpop.f32.mrb[0].mxu0
  %v3289 = vpop.f32.mrb[0].mxu0
  %v3290 = vadd.f32 %v2583, %v3289
  %v3291 = vpop.f32.mrb[0].mxu0
  %3292 = vmatprep.mubr.bf16.mxu0 %v534
  %3293 = vmatmul.mubr.bf16.gmra.mrb[0].mxu0 %v533
  %v3294 = vpop.f32.mrb[0].mxu0
  %v3295 = vadd.f32 %v2588, %v3294
  %v3296 = vpop.f32.mrb[0].mxu0
  %v3297 = vpop.f32.mrb[0].mxu0
  %v3298 = vadd.f32 %v2591, %v3297
  %v3299 = vpop.f32.mrb[0].mxu0
  %3300 = vmatprep.mubr.bf16.mxu0 %v537
  %3301 = vmatmul.mubr.bf16.gmra.mrb[0].mxu0 %v536
  %v3302 = vpop.f32.mrb[0].mxu0
  %v3303 = vadd.f32 %v2596, %v3302
  %v3304 = vpop.f32.mrb[0].mxu0
  %v3305 = vpop.f32.mrb[0].mxu0
  %v3306 = vadd.f32 %v2599, %v3305
  %v3307 = vpop.f32.mrb[0].mxu0
  %3308 = vmatprep.mubr.bf16.mxu0 %v540
  %3309 = vmatmul.mubr.bf16.gmra.mrb[0].mxu0 %v539
  %v3310 = vpop.f32.mrb[0].mxu0
  %v3311 = vadd.f32 %v2604, %v3310
  %v3312 = vpop.f32.mrb[0].mxu0
  %v3313 = vpop.f32.mrb[0].mxu0
  %v3314 = vadd.f32 %v2607, %v3313
  %v3315 = vpop.f32.mrb[0].mxu0
  %3316 = vdwg.mxu0
  %3317 = vmatprep.subr.bf16.mxu0 0
  %3318 = vmatpush1.bf16.msra.mxu0 %v2900
  %3319 = vmatprep.subr.bf16.mxu0 0
  %3320 = vmatpush1.bf16.msra.mxu0 %v2903
  %3321 = vmatprep.subr.bf16.mxu0 0
  %3322 = vmatpush1.bf16.msra.mxu0 %v2906
  %3323 = vmatprep.subr.bf16.mxu0 0
  %3324 = vmatpush1.bf16.msra.mxu0 %v2909
  %3325 = vmatprep.subr.bf16.mxu0 0
  %3326 = vmatpush1.bf16.msra.mxu0 %v2912
  %3327 = vmatprep.subr.bf16.mxu0 0
  %3328 = vmatpush1.bf16.msra.mxu0 %v2915
  %3329 = vmatprep.subr.bf16.mxu0 0
  %3330 = vmatpush1.bf16.msra.mxu0 %v2918
  %3331 = vmatprep.subr.bf16.mxu0 0
  %3332 = vmatpush1.bf16.msra.mxu0 %v2921
  %3333 = vmatprep.subr.bf16.mxu0 0
  %3334 = vmatpush1.bf16.msra.mxu0 0
  %3335 = vmatprep.subr.bf16.mxu0 0
  %3336 = vmatpush1.bf16.msra.mxu0 0
  %3337 = vmatprep.subr.bf16.mxu0 0
  %3338 = vmatpush1.bf16.msra.mxu0 0
  %3339 = vmatprep.subr.bf16.mxu0 0
  %3340 = vmatpush1.bf16.msra.mxu0 0
  %3341 = vmatprep.subr.bf16.mxu0 0
  %3342 = vmatpush1.bf16.msra.mxu0 0
  %3343 = vmatprep.subr.bf16.mxu0 0
  %3344 = vmatpush1.bf16.msra.mxu0 0
  %3345 = vmatprep.subr.bf16.mxu0 0
  %3346 = vmatpush1.bf16.msra.mxu0 0
  %3347 = vmatprep.subr.bf16.mxu0 0
  %3348 = vmatpush1.bf16.msra.mxu0 0
  %3349 = vmatprep.mubr.bf16.mxu0 0
  %3350 = vmatmul.mubr.bf16.gmra.mrb[0].mxu0 %v520
  %v3351 = vpop.f32.mrb[0].mxu0
  %v3352 = vadd.f32 %v3255, %v3351
  %v3353 = vpop.f32.mrb[0].mxu0
  %v3354 = vpop.f32.mrb[0].mxu0
  %v3355 = vadd.f32 %v3258, %v3354
  %v3356 = vpop.f32.mrb[0].mxu0
  %3357 = vmatprep.mubr.bf16.mxu0 0
  %3358 = vmatmul.mubr.bf16.gmra.mrb[0].mxu0 %v523
  %v3359 = vpop.f32.mrb[0].mxu0
  %v3360 = vadd.f32 %v3263, %v3359
  %v3361 = vpop.f32.mrb[0].mxu0
  %v3362 = vpop.f32.mrb[0].mxu0
  %v3363 = vadd.f32 %v3266, %v3362
  %v3364 = vpop.f32.mrb[0].mxu0
  %3365 = vmatprep.mubr.bf16.mxu0 0
  %3366 = vmatmul.mubr.bf16.gmra.mrb[0].mxu0 %v526
  %v3367 = vpop.f32.mrb[0].mxu0
  %v3368 = vadd.f32 %v3271, %v3367
  %v3369 = vpop.f32.mrb[0].mxu0
  %v3370 = vpop.f32.mrb[0].mxu0
  %v3371 = vadd.f32 %v3274, %v3370
  %v3372 = vpop.f32.mrb[0].mxu0
  %3373 = vmatprep.mubr.bf16.mxu0 0
  %3374 = vmatmul.mubr.bf16.gmra.mrb[0].mxu0 %v529
  %v3375 = vpop.f32.mrb[0].mxu0
  %v3376 = vadd.f32 %v3279, %v3375
  %v3377 = vpop.f32.mrb[0].mxu0
  %v3378 = vpop.f32.mrb[0].mxu0
  %v3379 = vadd.f32 %v3282, %v3378
  %v3380 = vpop.f32.mrb[0].mxu0
  %3381 = vmatprep.mubr.bf16.mxu0 0
  %3382 = vmatmul.mubr.bf16.gmra.mrb[0].mxu0 %v532
  %v3383 = vpop.f32.mrb[0].mxu0
  %v3384 = vadd.f32 %v3287, %v3383
  %v3385 = vpop.f32.mrb[0].mxu0
  %v3386 = vpop.f32.mrb[0].mxu0
  %v3387 = vadd.f32 %v3290, %v3386
  %v3388 = vpop.f32.mrb[0].mxu0
  %3389 = vmatprep.mubr.bf16.mxu0 0
  %3390 = vmatmul.mubr.bf16.gmra.mrb[0].mxu0 %v535
  %v3391 = vpop.f32.mrb[0].mxu0
  %v3392 = vadd.f32 %v3295, %v3391
  %v3393 = vpop.f32.mrb[0].mxu0
  %v3394 = vpop.f32.mrb[0].mxu0
  %v3395 = vadd.f32 %v3298, %v3394
  %v3396 = vpop.f32.mrb[0].mxu0
  %3397 = vmatprep.mubr.bf16.mxu0 0
  %3398 = vmatmul.mubr.bf16.gmra.mrb[0].mxu0 %v538
  %v3399 = vpop.f32.mrb[0].mxu0
  %v3400 = vadd.f32 %v3303, %v3399
  %v3401 = vpop.f32.mrb[0].mxu0
  %v3402 = vpop.f32.mrb[0].mxu0
  %v3403 = vadd.f32 %v3306, %v3402
  %v3404 = vpop.f32.mrb[0].mxu0
  %3405 = vmatprep.mubr.bf16.mxu0 0
  %3406 = vmatmul.mubr.bf16.gmra.mrb[0].mxu0 %v541
  %v3407 = vpop.f32.mrb[0].mxu0
  %v3408 = vadd.f32 %v3311, %v3407
  %v3409 = vpop.f32.mrb[0].mxu0
  %v3410 = vpop.f32.mrb[0].mxu0
  %v3411 = vadd.f32 %v3314, %v3410
  %v3412 = vpop.f32.mrb[0].mxu0
  %3413 = vdwg.mxu0
  %v3414 = vld [vmem:[%s9] sm:$0x7]
  %v3416 = vlaneseq
  %v3417 = vshrl.u32 %v3416, 7
  %v3418 = vsub.s32 0, %v3417
  %v3419 = vrot.slane %v3414, %v3418
  %v3420 = vlaneseq
  %v3421 = vshrl.u32 %v3420, 7
  %v3422 = vsub.s32 1, %v3421
  %v3423 = vrot.slane %v3414, %v3422
  %v3424 = vlaneseq
  %v3425 = vshrl.u32 %v3424, 7
  %v3426 = vsub.s32 2, %v3425
  %v3427 = vrot.slane %v3414, %v3426
  %v3431 = vadd.f32 %v3142, %v3419
  %v3432 = vadd.f32 %v3144, %v3423
  %v3433 = vadd.f32 %v3352, %v3427
  %v3434 = vadd.f32 %v3146, %v3419
  %v3435 = vadd.f32 %v3148, %v3423
  %v3436 = vadd.f32 %v3355, %v3427
  %v3437 = vadd.f32 %v3152, %v3419
  %v3438 = vadd.f32 %v3154, %v3423
  %v3439 = vadd.f32 %v3360, %v3427
  %v3440 = vadd.f32 %v3156, %v3419
  %v3441 = vadd.f32 %v3158, %v3423
  %v3442 = vadd.f32 %v3363, %v3427
  %v3443 = vadd.f32 %v3162, %v3419
  %v3444 = vadd.f32 %v3164, %v3423
  %v3445 = vadd.f32 %v3368, %v3427
  %v3446 = vadd.f32 %v3166, %v3419
  %v3447 = vadd.f32 %v3168, %v3423
  %v3448 = vadd.f32 %v3371, %v3427
  %v3449 = vadd.f32 %v3172, %v3419
  %v3450 = vadd.f32 %v3174, %v3423
  %v3451 = vadd.f32 %v3376, %v3427
  %v3452 = vadd.f32 %v3176, %v3419
  %v3453 = vadd.f32 %v3178, %v3423
  %v3454 = vadd.f32 %v3379, %v3427
  %v3455 = vadd.f32 %v3182, %v3419
  %v3456 = vadd.f32 %v3184, %v3423
  %v3457 = vadd.f32 %v3384, %v3427
  %v3458 = vadd.f32 %v3186, %v3419
  %v3459 = vadd.f32 %v3188, %v3423
  %v3460 = vadd.f32 %v3387, %v3427
  %v3461 = vadd.f32 %v3192, %v3419
  %v3462 = vadd.f32 %v3194, %v3423
  %v3463 = vadd.f32 %v3392, %v3427
  %v3464 = vadd.f32 %v3196, %v3419
  %v3465 = vadd.f32 %v3198, %v3423
  %v3466 = vadd.f32 %v3395, %v3427
  %v3467 = vadd.f32 %v3202, %v3419
  %v3468 = vadd.f32 %v3204, %v3423
  %v3469 = vadd.f32 %v3400, %v3427
  %v3470 = vadd.f32 %v3206, %v3419
  %v3471 = vadd.f32 %v3208, %v3423
  %v3472 = vadd.f32 %v3403, %v3427
  %v3473 = vadd.f32 %v3212, %v3419
  %v3474 = vadd.f32 %v3214, %v3423
  %v3475 = vadd.f32 %v3408, %v3427
  %v3476 = vadd.f32 %v3216, %v3419
  %v3477 = vadd.f32 %v3218, %v3423
  %v3478 = vadd.f32 %v3411, %v3427
  %3479 = vxpose.xlu0.b32.start [1/16] %v3431, 128
  %3480 = vxpose.xlu0.b32.cont [2/16] %v3434, 128
  %3481 = vxpose.xlu0.b32.cont [3/16] %v3437, 128
  %3482 = vxpose.xlu0.b32.cont [4/16] %v3440, 128
  %3483 = vxpose.xlu0.b32.cont [5/16] %v3443, 128
  %3484 = vxpose.xlu0.b32.cont [6/16] %v3446, 128
  %3485 = vxpose.xlu0.b32.cont [7/16] %v3449, 128
  %3486 = vxpose.xlu0.b32.cont [8/16] %v3452, 128
  %3487 = vxpose.xlu0.b32.cont [9/16] 0.0, 128
  %3488 = vxpose.xlu0.b32.cont [10/16] 0.0, 128
  %3489 = vxpose.xlu0.b32.cont [11/16] 0.0, 128
  %3490 = vxpose.xlu0.b32.cont [12/16] 0.0, 128
  %3491 = vxpose.xlu0.b32.cont [13/16] 0.0, 128
  %3492 = vxpose.xlu0.b32.cont [14/16] 0.0, 128
  %3493 = vxpose.xlu0.b32.cont [15/16] 0.0, 128
  %3494 = vxpose.xlu0.b32.end [16/16] 0.0, 128
  %v3495 = vpop.trf.xlu0
  %v3496 = vpop.trf.xlu0
  %v3497 = vpop.trf.xlu0
  %v3498 = vpop.trf.xlu0
  %v3499 = vpop.trf.xlu0
  %v3500 = vpop.trf.xlu0
  %v3501 = vpop.trf.xlu0
  %v3502 = vpop.trf.xlu0
  %v3503 = vpop.trf.xlu0
  %v3504 = vpop.trf.xlu0
  %v3505 = vpop.trf.xlu0
  %v3506 = vpop.trf.xlu0
  %v3507 = vpop.trf.xlu0
  %v3508 = vpop.trf.xlu0
  %v3509 = vpop.trf.xlu0
  %v3510 = vpop.trf.xlu0
  %3511 = vxpose.xlu0.b32.start [1/16] %v3432, 128
  %3512 = vxpose.xlu0.b32.cont [2/16] %v3435, 128
  %3513 = vxpose.xlu0.b32.cont [3/16] %v3438, 128
  %3514 = vxpose.xlu0.b32.cont [4/16] %v3441, 128
  %3515 = vxpose.xlu0.b32.cont [5/16] %v3444, 128
  %3516 = vxpose.xlu0.b32.cont [6/16] %v3447, 128
  %3517 = vxpose.xlu0.b32.cont [7/16] %v3450, 128
  %3518 = vxpose.xlu0.b32.cont [8/16] %v3453, 128
  %3519 = vxpose.xlu0.b32.cont [9/16] 0.0, 128
  %3520 = vxpose.xlu0.b32.cont [10/16] 0.0, 128
  %3521 = vxpose.xlu0.b32.cont [11/16] 0.0, 128
  %3522 = vxpose.xlu0.b32.cont [12/16] 0.0, 128
  %3523 = vxpose.xlu0.b32.cont [13/16] 0.0, 128
  %3524 = vxpose.xlu0.b32.cont [14/16] 0.0, 128
  %3525 = vxpose.xlu0.b32.cont [15/16] 0.0, 128
  %3526 = vxpose.xlu0.b32.end [16/16] 0.0, 128
  %v3527 = vpop.trf.xlu0
  %v3528 = vpop.trf.xlu0
  %v3529 = vpop.trf.xlu0
  %v3530 = vpop.trf.xlu0
  %v3531 = vpop.trf.xlu0
  %v3532 = vpop.trf.xlu0
  %v3533 = vpop.trf.xlu0
  %v3534 = vpop.trf.xlu0
  %v3535 = vpop.trf.xlu0
  %v3536 = vpop.trf.xlu0
  %v3537 = vpop.trf.xlu0
  %v3538 = vpop.trf.xlu0
  %v3539 = vpop.trf.xlu0
  %v3540 = vpop.trf.xlu0
  %v3541 = vpop.trf.xlu0
  %v3542 = vpop.trf.xlu0
  %3543 = vxpose.xlu0.b32.start [1/16] %v3433, 128
  %3544 = vxpose.xlu0.b32.cont [2/16] %v3436, 128
  %3545 = vxpose.xlu0.b32.cont [3/16] %v3439, 128
  %3546 = vxpose.xlu0.b32.cont [4/16] %v3442, 128
  %3547 = vxpose.xlu0.b32.cont [5/16] %v3445, 128
  %3548 = vxpose.xlu0.b32.cont [6/16] %v3448, 128
  %3549 = vxpose.xlu0.b32.cont [7/16] %v3451, 128
  %3550 = vxpose.xlu0.b32.cont [8/16] %v3454, 128
  %3551 = vxpose.xlu0.b32.cont [9/16] 0.0, 128
  %3552 = vxpose.xlu0.b32.cont [10/16] 0.0, 128
  %3553 = vxpose.xlu0.b32.cont [11/16] 0.0, 128
  %3554 = vxpose.xlu0.b32.cont [12/16] 0.0, 128
  %3555 = vxpose.xlu0.b32.cont [13/16] 0.0, 128
  %3556 = vxpose.xlu0.b32.cont [14/16] 0.0, 128
  %3557 = vxpose.xlu0.b32.cont [15/16] 0.0, 128
  %3558 = vxpose.xlu0.b32.end [16/16] 0.0, 128
  %v3559 = vpop.trf.xlu0
  %v3560 = vpop.trf.xlu0
  %v3561 = vpop.trf.xlu0
  %v3562 = vpop.trf.xlu0
  %v3563 = vpop.trf.xlu0
  %v3564 = vpop.trf.xlu0
  %v3565 = vpop.trf.xlu0
  %v3566 = vpop.trf.xlu0
  %v3567 = vpop.trf.xlu0
  %v3568 = vpop.trf.xlu0
  %v3569 = vpop.trf.xlu0
  %v3570 = vpop.trf.xlu0
  %v3571 = vpop.trf.xlu0
  %v3572 = vpop.trf.xlu0
  %v3573 = vpop.trf.xlu0
  %v3574 = vpop.trf.xlu0
  %vm3575 = vcmask 523264
  %3576 = vst.msk [vmem:[%s10] sm:$0xff] %vm3575, %v3495
  %3577 = vst.msk [vmem:[%s10 + $0x8] sm:$0xff] %vm3575, %v3496
  %3578 = vst.msk [vmem:[%s10 + $0x10] sm:$0xff] %vm3575, %v3497
  %3579 = vst.msk [vmem:[%s10 + $0x18] sm:$0xff] %vm3575, %v3498
  %3580 = vst.msk [vmem:[%s10 + $0x20] sm:$0xff] %vm3575, %v3499
  %3581 = vst.msk [vmem:[%s10 + $0x28] sm:$0xff] %vm3575, %v3500
  %3582 = vst.msk [vmem:[%s10 + $0x30] sm:$0xff] %vm3575, %v3501
  %3583 = vst.msk [vmem:[%s10 + $0x38] sm:$0xff] %vm3575, %v3502
  %3584 = vst.msk [vmem:[%s10 + $0x40] sm:$0xff] %vm3575, %v3503
  %3585 = vst.msk [vmem:[%s10 + $0x48] sm:$0xff] %vm3575, %v3504
  %3586 = vst.msk [vmem:[%s10 + $0x50] sm:$0xff] %vm3575, %v3505
  %3587 = vst.msk [vmem:[%s10 + $0x58] sm:$0xff] %vm3575, %v3506
  %3588 = vst.msk [vmem:[%s10 + $0x60] sm:$0xff] %vm3575, %v3507
  %3589 = vst.msk [vmem:[%s10 + $0x68] sm:$0xff] %vm3575, %v3508
  %3590 = vst.msk [vmem:[%s10 + $0x70] sm:$0xff] %vm3575, %v3509
  %3591 = vst.msk [vmem:[%s10 + $0x78] sm:$0xff] %vm3575, %v3510
  %3592 = vst.msk [vmem:[%s10 + $0x80] sm:$0xff] %vm3575, %v3527
  %3593 = vst.msk [vmem:[%s10 + $0x88] sm:$0xff] %vm3575, %v3528
  %3594 = vst.msk [vmem:[%s10 + $0x90] sm:$0xff] %vm3575, %v3529
  %3595 = vst.msk [vmem:[%s10 + $0x98] sm:$0xff] %vm3575, %v3530
  %3596 = vst.msk [vmem:[%s10 + $0xa0] sm:$0xff] %vm3575, %v3531
  %3597 = vst.msk [vmem:[%s10 + $0xa8] sm:$0xff] %vm3575, %v3532
  %3598 = vst.msk [vmem:[%s10 + $0xb0] sm:$0xff] %vm3575, %v3533
  %3599 = vst.msk [vmem:[%s10 + $0xb8] sm:$0xff] %vm3575, %v3534
  %3600 = vst.msk [vmem:[%s10 + $0xc0] sm:$0xff] %vm3575, %v3535
  %3601 = vst.msk [vmem:[%s10 + $0xc8] sm:$0xff] %vm3575, %v3536
  %3602 = vst.msk [vmem:[%s10 + $0xd0] sm:$0xff] %vm3575, %v3537
  %3603 = vst.msk [vmem:[%s10 + $0xd8] sm:$0xff] %vm3575, %v3538
  %3604 = vst.msk [vmem:[%s10 + $0xe0] sm:$0xff] %vm3575, %v3539
  %3605 = vst.msk [vmem:[%s10 + $0xe8] sm:$0xff] %vm3575, %v3540
  %3606 = vst.msk [vmem:[%s10 + $0xf0] sm:$0xff] %vm3575, %v3541
  %3607 = vst.msk [vmem:[%s10 + $0xf8] sm:$0xff] %vm3575, %v3542
  %3608 = vst.msk [vmem:[%s10 + $0x100] sm:$0xff] %vm3575, %v3559
  %3609 = vst.msk [vmem:[%s10 + $0x108] sm:$0xff] %vm3575, %v3560
  %3610 = vst.msk [vmem:[%s10 + $0x110] sm:$0xff] %vm3575, %v3561
  %3611 = vst.msk [vmem:[%s10 + $0x118] sm:$0xff] %vm3575, %v3562
  %3612 = vst.msk [vmem:[%s10 + $0x120] sm:$0xff] %vm3575, %v3563
  %3613 = vst.msk [vmem:[%s10 + $0x128] sm:$0xff] %vm3575, %v3564
  %3614 = vst.msk [vmem:[%s10 + $0x130] sm:$0xff] %vm3575, %v3565
  %3615 = vst.msk [vmem:[%s10 + $0x138] sm:$0xff] %vm3575, %v3566
  %3616 = vst.msk [vmem:[%s10 + $0x140] sm:$0xff] %vm3575, %v3567
  %3617 = vst.msk [vmem:[%s10 + $0x148] sm:$0xff] %vm3575, %v3568
  %3618 = vst.msk [vmem:[%s10 + $0x150] sm:$0xff] %vm3575, %v3569
  %3619 = vst.msk [vmem:[%s10 + $0x158] sm:$0xff] %vm3575, %v3570
  %3620 = vst.msk [vmem:[%s10 + $0x160] sm:$0xff] %vm3575, %v3571
  %3621 = vst.msk [vmem:[%s10 + $0x168] sm:$0xff] %vm3575, %v3572
  %3622 = vst.msk [vmem:[%s10 + $0x170] sm:$0xff] %vm3575, %v3573
  %3623 = vst.msk [vmem:[%s10 + $0x178] sm:$0xff] %vm3575, %v3574
  %3624 = vxpose.xlu0.b32.start [1/16] %v3455, 128
  %3625 = vxpose.xlu0.b32.cont [2/16] %v3458, 128
  %3626 = vxpose.xlu0.b32.cont [3/16] %v3461, 128
  %3627 = vxpose.xlu0.b32.cont [4/16] %v3464, 128
  %3628 = vxpose.xlu0.b32.cont [5/16] %v3467, 128
  %3629 = vxpose.xlu0.b32.cont [6/16] %v3470, 128
  %3630 = vxpose.xlu0.b32.cont [7/16] %v3473, 128
  %3631 = vxpose.xlu0.b32.cont [8/16] %v3476, 128
  %3632 = vxpose.xlu0.b32.cont [9/16] 0.0, 128
  %3633 = vxpose.xlu0.b32.cont [10/16] 0.0, 128
  %3634 = vxpose.xlu0.b32.cont [11/16] 0.0, 128
  %3635 = vxpose.xlu0.b32.cont [12/16] 0.0, 128
  %3636 = vxpose.xlu0.b32.cont [13/16] 0.0, 128
  %3637 = vxpose.xlu0.b32.cont [14/16] 0.0, 128
  %3638 = vxpose.xlu0.b32.cont [15/16] 0.0, 128
  %3639 = vxpose.xlu0.b32.end [16/16] 0.0, 128
  %v3640 = vpop.trf.xlu0
  %v3641 = vpop.trf.xlu0
  %v3642 = vpop.trf.xlu0
  %v3643 = vpop.trf.xlu0
  %v3644 = vpop.trf.xlu0
  %v3645 = vpop.trf.xlu0
  %v3646 = vpop.trf.xlu0
  %v3647 = vpop.trf.xlu0
  %v3648 = vpop.trf.xlu0
  %v3649 = vpop.trf.xlu0
  %v3650 = vpop.trf.xlu0
  %v3651 = vpop.trf.xlu0
  %v3652 = vpop.trf.xlu0
  %v3653 = vpop.trf.xlu0
  %v3654 = vpop.trf.xlu0
  %v3655 = vpop.trf.xlu0
  %3656 = vxpose.xlu0.b32.start [1/16] %v3456, 128
  %3657 = vxpose.xlu0.b32.cont [2/16] %v3459, 128
  %3658 = vxpose.xlu0.b32.cont [3/16] %v3462, 128
  %3659 = vxpose.xlu0.b32.cont [4/16] %v3465, 128
  %3660 = vxpose.xlu0.b32.cont [5/16] %v3468, 128
  %3661 = vxpose.xlu0.b32.cont [6/16] %v3471, 128
  %3662 = vxpose.xlu0.b32.cont [7/16] %v3474, 128
  %3663 = vxpose.xlu0.b32.cont [8/16] %v3477, 128
  %3664 = vxpose.xlu0.b32.cont [9/16] 0.0, 128
  %3665 = vxpose.xlu0.b32.cont [10/16] 0.0, 128
  %3666 = vxpose.xlu0.b32.cont [11/16] 0.0, 128
  %3667 = vxpose.xlu0.b32.cont [12/16] 0.0, 128
  %3668 = vxpose.xlu0.b32.cont [13/16] 0.0, 128
  %3669 = vxpose.xlu0.b32.cont [14/16] 0.0, 128
  %3670 = vxpose.xlu0.b32.cont [15/16] 0.0, 128
  %3671 = vxpose.xlu0.b32.end [16/16] 0.0, 128
  %v3672 = vpop.trf.xlu0
  %v3673 = vpop.trf.xlu0
  %v3674 = vpop.trf.xlu0
  %v3675 = vpop.trf.xlu0
  %v3676 = vpop.trf.xlu0
  %v3677 = vpop.trf.xlu0
  %v3678 = vpop.trf.xlu0
  %v3679 = vpop.trf.xlu0
  %v3680 = vpop.trf.xlu0
  %v3681 = vpop.trf.xlu0
  %v3682 = vpop.trf.xlu0
  %v3683 = vpop.trf.xlu0
  %v3684 = vpop.trf.xlu0
  %v3685 = vpop.trf.xlu0
  %v3686 = vpop.trf.xlu0
  %v3687 = vpop.trf.xlu0
  %3688 = vxpose.xlu0.b32.start [1/16] %v3457, 128
  %3689 = vxpose.xlu0.b32.cont [2/16] %v3460, 128
  %3690 = vxpose.xlu0.b32.cont [3/16] %v3463, 128
  %3691 = vxpose.xlu0.b32.cont [4/16] %v3466, 128
  %3692 = vxpose.xlu0.b32.cont [5/16] %v3469, 128
  %3693 = vxpose.xlu0.b32.cont [6/16] %v3472, 128
  %3694 = vxpose.xlu0.b32.cont [7/16] %v3475, 128
  %3695 = vxpose.xlu0.b32.cont [8/16] %v3478, 128
  %3696 = vxpose.xlu0.b32.cont [9/16] 0.0, 128
  %3697 = vxpose.xlu0.b32.cont [10/16] 0.0, 128
  %3698 = vxpose.xlu0.b32.cont [11/16] 0.0, 128
  %3699 = vxpose.xlu0.b32.cont [12/16] 0.0, 128
  %3700 = vxpose.xlu0.b32.cont [13/16] 0.0, 128
  %3701 = vxpose.xlu0.b32.cont [14/16] 0.0, 128
  %3702 = vxpose.xlu0.b32.cont [15/16] 0.0, 128
  %3703 = vxpose.xlu0.b32.end [16/16] 0.0, 128
  %v3704 = vpop.trf.xlu0
  %v3705 = vpop.trf.xlu0
  %v3706 = vpop.trf.xlu0
  %v3707 = vpop.trf.xlu0
  %v3708 = vpop.trf.xlu0
  %v3709 = vpop.trf.xlu0
  %v3710 = vpop.trf.xlu0
  %v3711 = vpop.trf.xlu0
  %v3712 = vpop.trf.xlu0
  %v3713 = vpop.trf.xlu0
  %v3714 = vpop.trf.xlu0
  %v3715 = vpop.trf.xlu0
  %v3716 = vpop.trf.xlu0
  %v3717 = vpop.trf.xlu0
  %v3718 = vpop.trf.xlu0
  %v3719 = vpop.trf.xlu0
  %s3720 = scalar_lea.vmem %s10, 384
  %3721 = vst.msk [vmem:[%s3720] sm:$0xff] %vm3575, %v3640
  %3722 = vst.msk [vmem:[%s3720 + $0x8] sm:$0xff] %vm3575, %v3641
  %3723 = vst.msk [vmem:[%s3720 + $0x10] sm:$0xff] %vm3575, %v3642
  %3724 = vst.msk [vmem:[%s3720 + $0x18] sm:$0xff] %vm3575, %v3643
  %3725 = vst.msk [vmem:[%s3720 + $0x20] sm:$0xff] %vm3575, %v3644
  %3726 = vst.msk [vmem:[%s3720 + $0x28] sm:$0xff] %vm3575, %v3645
  %3727 = vst.msk [vmem:[%s3720 + $0x30] sm:$0xff] %vm3575, %v3646
  %3728 = vst.msk [vmem:[%s3720 + $0x38] sm:$0xff] %vm3575, %v3647
  %3729 = vst.msk [vmem:[%s3720 + $0x40] sm:$0xff] %vm3575, %v3648
  %3730 = vst.msk [vmem:[%s3720 + $0x48] sm:$0xff] %vm3575, %v3649
  %3731 = vst.msk [vmem:[%s3720 + $0x50] sm:$0xff] %vm3575, %v3650
  %3732 = vst.msk [vmem:[%s3720 + $0x58] sm:$0xff] %vm3575, %v3651
  %3733 = vst.msk [vmem:[%s3720 + $0x60] sm:$0xff] %vm3575, %v3652
  %3734 = vst.msk [vmem:[%s3720 + $0x68] sm:$0xff] %vm3575, %v3653
  %3735 = vst.msk [vmem:[%s3720 + $0x70] sm:$0xff] %vm3575, %v3654
  %3736 = vst.msk [vmem:[%s3720 + $0x78] sm:$0xff] %vm3575, %v3655
  %3737 = vst.msk [vmem:[%s3720 + $0x80] sm:$0xff] %vm3575, %v3672
  %3738 = vst.msk [vmem:[%s3720 + $0x88] sm:$0xff] %vm3575, %v3673
  %3739 = vst.msk [vmem:[%s3720 + $0x90] sm:$0xff] %vm3575, %v3674
  %3740 = vst.msk [vmem:[%s3720 + $0x98] sm:$0xff] %vm3575, %v3675
  %3741 = vst.msk [vmem:[%s3720 + $0xa0] sm:$0xff] %vm3575, %v3676
  %3742 = vst.msk [vmem:[%s3720 + $0xa8] sm:$0xff] %vm3575, %v3677
  %3743 = vst.msk [vmem:[%s3720 + $0xb0] sm:$0xff] %vm3575, %v3678
  %3744 = vst.msk [vmem:[%s3720 + $0xb8] sm:$0xff] %vm3575, %v3679
  %3745 = vst.msk [vmem:[%s3720 + $0xc0] sm:$0xff] %vm3575, %v3680
  %3746 = vst.msk [vmem:[%s3720 + $0xc8] sm:$0xff] %vm3575, %v3681
  %3747 = vst.msk [vmem:[%s3720 + $0xd0] sm:$0xff] %vm3575, %v3682
  %3748 = vst.msk [vmem:[%s3720 + $0xd8] sm:$0xff] %vm3575, %v3683
  %3749 = vst.msk [vmem:[%s3720 + $0xe0] sm:$0xff] %vm3575, %v3684
  %3750 = vst.msk [vmem:[%s3720 + $0xe8] sm:$0xff] %vm3575, %v3685
  %3751 = vst.msk [vmem:[%s3720 + $0xf0] sm:$0xff] %vm3575, %v3686
  %3752 = vst.msk [vmem:[%s3720 + $0xf8] sm:$0xff] %vm3575, %v3687
  %3753 = vst.msk [vmem:[%s3720 + $0x100] sm:$0xff] %vm3575, %v3704
  %3754 = vst.msk [vmem:[%s3720 + $0x108] sm:$0xff] %vm3575, %v3705
  %3755 = vst.msk [vmem:[%s3720 + $0x110] sm:$0xff] %vm3575, %v3706
  %3756 = vst.msk [vmem:[%s3720 + $0x118] sm:$0xff] %vm3575, %v3707
  %3757 = vst.msk [vmem:[%s3720 + $0x120] sm:$0xff] %vm3575, %v3708
  %3758 = vst.msk [vmem:[%s3720 + $0x128] sm:$0xff] %vm3575, %v3709
  %3759 = vst.msk [vmem:[%s3720 + $0x130] sm:$0xff] %vm3575, %v3710
  %3760 = vst.msk [vmem:[%s3720 + $0x138] sm:$0xff] %vm3575, %v3711
  %3761 = vst.msk [vmem:[%s3720 + $0x140] sm:$0xff] %vm3575, %v3712
  %3762 = vst.msk [vmem:[%s3720 + $0x148] sm:$0xff] %vm3575, %v3713
  %3763 = vst.msk [vmem:[%s3720 + $0x150] sm:$0xff] %vm3575, %v3714
  %3764 = vst.msk [vmem:[%s3720 + $0x158] sm:$0xff] %vm3575, %v3715
  %3765 = vst.msk [vmem:[%s3720 + $0x160] sm:$0xff] %vm3575, %v3716
  %3766 = vst.msk [vmem:[%s3720 + $0x168] sm:$0xff] %vm3575, %v3717
  %3767 = vst.msk [vmem:[%s3720 + $0x170] sm:$0xff] %vm3575, %v3718
  %3768 = vst.msk [vmem:[%s3720 + $0x178] sm:$0xff] %vm3575, %v3719
  // Predicated region
  $region42: #{learnable_align_vlm.1} parent=0 // pred_check
    _
  $region43: #{learnable_align_vlm.1} parent=0 // pred_check_branch
    %3770 = sbr.rel (0) target = $region45
  $region44: #{learnable_align_vlm.1} parent=0 // pred_region
    _
  $region45: #{learnable_align_vlm.1} parent=0 // pred_fallthru
    _
  // Predicated region
  $region46: #{learnable_align_vlm.1} parent=0 // pred_check
    _
  $region47: #{learnable_align_vlm.1} parent=0 // pred_check_branch
    %3772 = sbr.rel (0) target = $region49
  $region48: #{learnable_align_vlm.1} parent=0 // pred_region
    _
  $region49: #{learnable_align_vlm.1} parent=0 // pred_fallthru
    _

</llo_original>
